<compile_context>
chip_gen: v7x
topology: tpu7x:2x2x1
jax: 0.10.0
libtpu: 0.0.40
codegen_flags: <defaults>
</compile_context>

<pallas_src>
import functools

import jax
import jax.numpy as jnp
from jax.experimental import pallas as pl
from jax.experimental.pallas import tpu as pltpu

EPS = 1e-5      # PyTorch BatchNorm2d default eps
LANE = 128      # channel dims are zero-padded to a multiple of this


def _round_up(n, m):
    return (n + m - 1) // m * m


def _pick_tile(dim, target, quantum):
    """Largest tile <= target that divides `dim` and is a multiple of `quantum`
    (falls back to the full dim, which always satisfies the (8,128) rule)."""
    if dim <= target:
        return dim
    t = (target // quantum) * quantum
    while t >= quantum:
        if dim % t == 0:
            return t
        t -= quantum
    return dim   # TODO(synk): zero-pad M instead of giving up on tiling here.


def _tpu_config():
    """Per-generation tile targets and scoped-VMEM limit."""
    try:
        kind = jax.devices()[0].device_kind.lower()
    except Exception:
        kind = ""
    if "v5" in kind:            # v5e: 128 MiB VMEM, 4x128x128 MXU -> tn=128
        cfg = {"tm": 1024, "tn": 128, "vmem": 96 * 1024 * 1024}
    elif "7" in kind:           # v7x: only 64 MiB physical VMEM
        cfg = {"tm": 512, "tn": 256, "vmem": 40 * 1024 * 1024}
    else:                       # v6e / default: 2x256x256 MXU, 128 MiB VMEM
        cfg = {"tm": 1024, "tn": 256, "vmem": 96 * 1024 * 1024}
    try:
        cap = pltpu.get_tpu_info().vmem_capacity_bytes
        cfg["vmem"] = min(cfg["vmem"], int(cap * 3 // 4))
    except Exception:
        pass
    return cfg


# ---------------------------------------------------------------------------
# in-kernel helpers
# ---------------------------------------------------------------------------
def _stats_rows(y_f32, tn):
    """Per-channel (sum, sumsq) packed into a lane-dense (8, tn) block."""
    s1 = jnp.sum(y_f32, axis=0, keepdims=True)
    s2 = jnp.sum(y_f32 * y_f32, axis=0, keepdims=True)
    row = jax.lax.broadcasted_iota(jnp.int32, (8, tn), 0)
    return jnp.where(row == 0, s1, jnp.where(row == 1, s2, 0.0))


def _bn_fold(stats_partial, count, gamma, beta):
    """Cross-tile reduce of partial stats -> hoisted per-channel scale/offset."""
    s = jnp.sum(stats_partial.astype(jnp.float32), axis=0)     # (8, C)
    mean = s[0] / count
    var = jnp.maximum(s[1] / count - mean * mean, 0.0)          # biased variance
    # TODO(synk): Welford / shifted accumulation for very large counts.
    scale = gamma.astype(jnp.float32) * jax.lax.rsqrt(var + EPS)
    offset = beta.astype(jnp.float32) - mean * scale
    return scale, offset


# ---------------------------------------------------------------------------
# Pallas kernels
# ---------------------------------------------------------------------------
def _matmul_stats_kernel(*refs, in_bn, in_relu):
    """Raw 1x1-conv matmul tile + partial BN stats; optional fused input-side
    BN+ReLU (the normalised x tile is cached in VMEM once per M tile)."""
    if in_bn:
        x_ref, w_ref, si_ref, oi_ref, y_ref, st_ref, xn_ref = refs

        @pl.when(pl.program_id(1) == 0)        # recompute once per M tile
        def _():
            xn = x_ref[...].astype(jnp.float32) * si_ref[...] + oi_ref[...]
            if in_relu:
                xn = jnp.maximum(xn, 0.0)
            xn_ref[...] = xn.astype(jnp.bfloat16)

        xv = xn_ref[...]
    else:
        x_ref, w_ref, y_ref, st_ref = refs
        xv = x_ref[...]

    acc = jnp.dot(xv, w_ref[...], preferred_element_type=jnp.float32)
    y = acc.astype(y_ref.dtype)
    y_ref[...] = y
    st_ref[...] = _stats_rows(y.astype(jnp.float32),
                              y_ref.shape[1]).reshape(st_ref.shape)


def _make_conv3x3_kernel(stride, hout, wout, nphase):
    """3x3 conv as 9 accumulating matmuls over spatial phases (per sample)."""
    m = hout * wout

    def kernel(*refs):
        ph_refs = refs[:nphase]
        w_ref, y_ref, st_ref, acc_ref = refs[nphase:]
        cin = ph_refs[0].shape[-1]
        tn = y_ref.shape[-1]

        acc_ref[...] = jnp.zeros_like(acc_ref)
        # Stride is absorbed by the phase decomposition, so every tap is a
        # static contiguous slice (no strided VMEM loads, no HBM im2col).
        # TODO(synk): pltpu.roll-based shifts to avoid tap-slice relayouts.
        for dy in range(3):
            for dx in range(3):
                p = (dy % stride) * stride + (dx % stride)
                hs, ws = dy // stride, dx // stride
                xt = ph_refs[p][0, hs:hs + hout, ws:ws + wout, :]
                xt = xt.reshape(m, cin)
                acc_ref[...] += jnp.dot(xt, w_ref[dy * 3 + dx],
                                        preferred_element_type=jnp.float32)

        y = acc_ref[...].astype(y_ref.dtype)
        y_ref[...] = y.reshape(y_ref.shape)
        st_ref[...] = _stats_rows(y.astype(jnp.float32), tn).reshape(st_ref.shape)

    return kernel


def _bn_add_relu_kernel(y_ref, s_ref, o_ref, r_ref, rs_ref, ro_ref, out_ref):
    a = y_ref[...].astype(jnp.float32) * s_ref[...] + o_ref[...]
    b = r_ref[...].astype(jnp.float32) * rs_ref[...] + ro_ref[...]
    out_ref[...] = jnp.maximum(a + b, 0.0).astype(out_ref.dtype)


# ---------------------------------------------------------------------------
# pallas_call wrappers
# ---------------------------------------------------------------------------
def matmul_stats(x, w, *, tm, tn, vmem_limit,
                 in_scale=None, in_offset=None, in_relu=False):
    """(M,K)@(K,N) 1x1 conv with optional fused input-side BN+ReLU.
    Returns (raw bf16 output, per-M-tile partial BN stats)."""
    M, K = x.shape
    K2, N = w.shape
    assert K == K2 and K % LANE == 0 and N % LANE == 0
    assert M % tm == 0 and N % tn == 0

    x = x.astype(jnp.bfloat16)
    w = w.astype(jnp.bfloat16)

    inputs = [x, w]
    in_specs = [
        pl.BlockSpec((tm, K), lambda i, j: (i, 0)),   # resident across j
        pl.BlockSpec((K, tn), lambda i, j: (0, j)),
    ]
    scratch = []
    in_bn = in_scale is not None
    if in_bn:
        inputs += [in_scale.reshape(1, K).astype(jnp.float32),
                   in_offset.reshape(1, K).astype(jnp.float32)]
        in_specs += [pl.BlockSpec((1, K), lambda i, j: (0, 0)),
                     pl.BlockSpec((1, K), lambda i, j: (0, 0))]
        scratch = [pltpu.VMEM((tm, K), jnp.bfloat16)]

    kernel = functools.partial(_matmul_stats_kernel, in_bn=in_bn, in_relu=in_relu)

    n_mt = M // tm
    cost = pl.CostEstimate(
        flops=2 * M * K * N, transcendentals=0,
        bytes_accessed=int(2 * M * K + 2 * n_mt * K * N + 2 * M * N
                           + 4 * n_mt * 8 * N))

    return pl.pallas_call(
        kernel,
        grid=(n_mt, N // tn),
        in_specs=in_specs,
        out_specs=(pl.BlockSpec((tm, tn), lambda i, j: (i, j)),
                   pl.BlockSpec((1, 8, tn), lambda i, j: (i, 0, j))),
        out_shape=(jax.ShapeDtypeStruct((M, N), jnp.bfloat16),
                   jax.ShapeDtypeStruct((n_mt, 8, N), jnp.float32)),
        scratch_shapes=scratch,
        compiler_params=pltpu.CompilerParams(
            # j stays "arbitrary" so the cached normalised x tile is valid;
            # TODO(synk): pltpu.CORE_PARALLEL on the M axis for v7x megacore.
            dimension_semantics=("parallel", "arbitrary"),
            vmem_limit_bytes=vmem_limit),
        cost_estimate=cost,
    )(*inputs)


def conv3x3_stats(phases, w9, *, stride, hout, wout, tn, vmem_limit):
    """3x3/stride/pad-1 conv from phase-decomposed padded inputs.
    Returns (raw bf16 output (nb, hout*wout, Cout), per-sample partial stats)."""
    nphase = stride * stride
    assert len(phases) == nphase
    nb, _, _, cin_p = phases[0].shape
    ntap, cin_p2, ncout = w9.shape
    assert ntap == 9 and cin_p == cin_p2 and ncout % tn == 0
    m = hout * wout

    phases = [p.astype(jnp.bfloat16) for p in phases]
    w9 = w9.astype(jnp.bfloat16)

    in_specs = [pl.BlockSpec((1, p.shape[1], p.shape[2], cin_p),
                             lambda b, j: (b, 0, 0, 0)) for p in phases]
    in_specs.append(pl.BlockSpec((9, cin_p, tn), lambda b, j: (0, 0, j)))

    cost = pl.CostEstimate(
        flops=2 * nb * m * 9 * cin_p * ncout, transcendentals=0,
        bytes_accessed=int(2 * sum(int(p.size) for p in phases)
                           + 2 * nb * 9 * cin_p * ncout + 2 * nb * m * ncout))

    return pl.pallas_call(
        _make_conv3x3_kernel(stride, hout, wout, nphase),
        grid=(nb, ncout // tn),
        in_specs=in_specs,
        out_specs=(pl.BlockSpec((1, m, tn), lambda b, j: (b, 0, j)),
                   pl.BlockSpec((1, 8, tn), lambda b, j: (b, 0, j))),
        out_shape=(jax.ShapeDtypeStruct((nb, m, ncout), jnp.bfloat16),
                   jax.ShapeDtypeStruct((nb, 8, ncout), jnp.float32)),
        scratch_shapes=[pltpu.VMEM((m, tn), jnp.float32)],
        compiler_params=pltpu.CompilerParams(
            dimension_semantics=("parallel", "arbitrary"),
            vmem_limit_bytes=vmem_limit),
        cost_estimate=cost,
    )(*phases, w9)


def bn_add_relu(y, scale, offset, res, res_scale, res_offset, *, tm, tn,
                vmem_limit):
    """out = relu(bn3(y) + bn_s(res)); bf16 in / bf16 out, y aliased to out."""
    M, N = y.shape
    assert res.shape == (M, N) and M % tm == 0 and N % tn == 0
    y = y.astype(jnp.bfloat16)
    res = res.astype(jnp.bfloat16)
    vec = lambda v: v.reshape(1, N).astype(jnp.float32)
    blk = pl.BlockSpec((tm, tn), lambda i, j: (i, j))
    cvec = pl.BlockSpec((1, tn), lambda i, j: (0, j))
    return pl.pallas_call(
        _bn_add_relu_kernel,
        grid=(M // tm, N // tn),
        in_specs=[blk, cvec, cvec, blk, cvec, cvec],
        out_specs=blk,
        out_shape=jax.ShapeDtypeStruct((M, N), jnp.bfloat16),
        input_output_aliases={0: 0},
        compiler_params=pltpu.CompilerParams(
            dimension_semantics=("parallel", "parallel"),
            vmem_limit_bytes=vmem_limit),
    )(y, vec(scale), vec(offset), res, vec(res_scale), vec(res_offset))


# ---------------------------------------------------------------------------
# Bottleneck forward (layout glue in XLA, hot paths in Pallas)
# ---------------------------------------------------------------------------
def bottleneck_forward(x_nchw, params, *, stride, cout):
    n, cin, h, w = x_nchw.shape
    cin_p = params["w1"].shape[0]
    planes_p = params["w1"].shape[1]
    cout_p = params["w3"].shape[1]
    cfg = _tpu_config()
    vmem = cfg["vmem"]

    # NCHW -> NHWC, channels zero-padded to the lane width, bf16 operands.
    x = jnp.transpose(x_nchw, (0, 2, 3, 1))
    x = jnp.pad(x, ((0, 0), (0, 0), (0, 0), (0, cin_p - cin))).astype(jnp.bfloat16)

    # ---- conv1 (1x1) + bn1 stats ------------------------------------------
    M1 = n * h * w
    tm1 = _pick_tile(M1, cfg["tm"], 8)
    tn_pl = _pick_tile(planes_p, cfg["tn"], LANE)
    y1, st1 = matmul_stats(x.reshape(M1, cin_p), params["w1"],
                           tm=tm1, tn=tn_pl, vmem_limit=vmem)
    s1, o1 = _bn_fold(st1, float(M1), params["g1"], params["b1"])

    # bn1 apply + ReLU + spatial pad + stride-phase split in XLA (fuses into
    # one elementwise/pad pass).
    # TODO(synk): emit conv1's output directly in the padded/phase layout to
    # drop this extra HBM round trip entirely.
    act1 = jnp.maximum(y1.astype(jnp.float32) * s1 + o1, 0.0).astype(jnp.bfloat16)
    act1 = act1.reshape(n, h, w, planes_p)
    hout = (h - 1) // stride + 1
    wout = (w - 1) // stride + 1
    xp = jnp.pad(act1, ((0, 0), (1, 1), (1, 1), (0, 0)))
    phases = [xp[:, py::stride, px::stride, :]
              for py in range(stride) for px in range(stride)]
    hph = max(p.shape[1] for p in phases)
    wph = max(p.shape[2] for p in phases)
    phases = [jnp.pad(p, ((0, 0), (0, hph - p.shape[1]),
                          (0, wph - p.shape[2]), (0, 0))) for p in phases]

    # ---- conv2 (3x3, stride, pad=1) + bn2 stats -----------------------------
    y2, st2 = conv3x3_stats(phases, params["w2"], stride=stride,
                            hout=hout, wout=wout, tn=tn_pl, vmem_limit=vmem)
    M2 = n * hout * wout
    s2, o2 = _bn_fold(st2, float(M2), params["g2"], params["b2"])

    # ---- conv3 (1x1) + bn3 stats, with bn2+ReLU fused on the input ----------
    tm2 = _pick_tile(M2, cfg["tm"], 8)
    tn_co = _pick_tile(cout_p, cfg["tn"], LANE)
    y3, st3 = matmul_stats(y2.reshape(M2, planes_p), params["w3"],
                           in_scale=s2, in_offset=o2, in_relu=True,
                           tm=tm2, tn=tn_co, vmem_limit=vmem)
    s3, o3 = _bn_fold(st3, float(M2), params["g3"], params["b3"])

    # ---- shortcut ------------------------------------------------------------
    if stride != 1 or cin != cout:
        xs = x[:, ::stride, ::stride, :].reshape(M2, cin_p)
        ysc, stsc = matmul_stats(xs, params["ws"],
                                 tm=tm2, tn=tn_co, vmem_limit=vmem)
        ss, os_ = _bn_fold(stsc, float(M2), params["gs"], params["bs"])
    else:
        ysc = x.reshape(M2, cin_p)                    # identity (cin_p == cout_p)
        ss = jnp.ones((cout_p,), jnp.float32)
        os_ = jnp.zeros((cout_p,), jnp.float32)

    # ---- bn3 apply + shortcut-BN apply + residual add + ReLU (fused) --------
    out = bn_add_relu(y3, s3, o3, ysc, ss, os_,
                      tm=tm2, tn=tn_co, vmem_limit=vmem)

    out = out.reshape(n, hout, wout, cout_p)[:, :, :, :cout]
    return jnp.transpose(out, (0, 3, 1, 2)).astype(jnp.float32)   # back to NCHW


def init_params(key, in_planes, planes, expansion=4):
    """Conv weights in matmul layout, zero-padded to lane multiples, bf16.

    NOTE: to import real PyTorch Conv2d weights ((Cout,Cin,kH,kW)), permute
    1x1 weights to (Cin,Cout) and 3x3 weights to (kH,kW,Cin,Cout) first."""
    k1, k2, k3, k4 = jax.random.split(key, 4)
    cout = expansion * planes
    cin_p = _round_up(in_planes, LANE)
    planes_p = _round_up(planes, LANE)
    cout_p = _round_up(cout, LANE)

    def pad2(a, r, c):
        return jnp.pad(a, ((0, r - a.shape[0]), (0, c - a.shape[1])))

    def bn(real, padded):
        g = jnp.pad(jnp.ones((real,), jnp.float32), (0, padded - real))
        b = jnp.zeros((padded,), jnp.float32)
        return g, b

    w1 = 0.1 * jax.random.normal(k1, (in_planes, planes), jnp.float32)
    w2 = 0.1 * jax.random.normal(k2, (3, 3, planes, planes), jnp.float32)
    w3 = 0.1 * jax.random.normal(k3, (planes, cout), jnp.float32)
    ws = 0.1 * jax.random.normal(k4, (in_planes, cout), jnp.float32)

    w2p = jnp.pad(w2, ((0, 0), (0, 0), (0, planes_p - planes),
                       (0, planes_p - planes))).reshape(9, planes_p, planes_p)

    g1, b1 = bn(planes, planes_p)
    g2, b2 = bn(planes, planes_p)
    g3, b3 = bn(cout, cout_p)
    gs, bs = bn(cout, cout_p)

    return {
        "w1": pad2(w1, cin_p, planes_p).astype(jnp.bfloat16),
        "w2": w2p.astype(jnp.bfloat16),
        "w3": pad2(w3, planes_p, cout_p).astype(jnp.bfloat16),
        "ws": pad2(ws, cin_p, cout_p).astype(jnp.bfloat16),
        "g1": g1, "b1": b1, "g2": g2, "b2": b2,
        "g3": g3, "b3": b3, "gs": gs, "bs": bs,
    }


if __name__ == "__main__":
    key = jax.random.PRNGKey(0)
    kx, kp = jax.random.split(key)

    in_planes, planes, stride = 4, 4, 2          # expansion*planes = 16 channels
    cout = 4 * planes
    x = jax.random.normal(kx, (2, in_planes, 16, 16), jnp.float32)   # NCHW
    params = init_params(kp, in_planes, planes)

    fwd = jax.jit(bottleneck_forward, static_argnames=("stride", "cout"))
    out = jax.block_until_ready(fwd(x, params, stride=stride, cout=cout))

    expected = (2, cout, 16 // stride, 16 // stride)
    assert out.shape == expected, (out.shape, expected)
    assert bool(jnp.all(jnp.isfinite(out)))
    assert bool(jnp.all(out >= 0.0))             # final ReLU
    print("KERNEL_OK")
</pallas_src>

<mosaic_0001>
module attributes {stable_mosaic.version = 11 : i64} {
  func.func @_matmul_stats_kernel(%arg0: i32, %arg1: i32, %arg2: memref<512x128xbf16, #tpu.memory_space<vmem>>, %arg3: memref<128x128xbf16, #tpu.memory_space<vmem>>, %arg4: memref<512x128xbf16, #tpu.memory_space<vmem>>, %arg5: memref<1x8x128xf32, #tpu.memory_space<vmem>>) attributes {dimension_semantics = [#tpu.dimension_semantics<parallel>, #tpu.dimension_semantics<arbitrary>], iteration_bounds = array<i64: 1, 1>, scalar_prefetch = 0 : i64, scratch_operands = 0 : i64, tpu.core_type = #tpu.core_type<tc>, window_params = [{transform_indices = @transform_0, window_bounds = array<i64: 512, 128>}, {transform_indices = @transform_1, window_bounds = array<i64: 128, 128>}, {transform_indices = @transform_2, window_bounds = array<i64: 512, 128>}, {transform_indices = @transform_3, window_bounds = array<i64: 1, 8, 128>}]} {
    %c0 = arith.constant 0 : index
    %c0_0 = arith.constant 0 : index
    %0 = vector.load %arg2[%c0, %c0_0] : memref<512x128xbf16, #tpu.memory_space<vmem>>, vector<512x128xbf16>
    %c0_1 = arith.constant 0 : index
    %c0_2 = arith.constant 0 : index
    %1 = vector.load %arg3[%c0_1, %c0_2] : memref<128x128xbf16, #tpu.memory_space<vmem>>, vector<128x128xbf16>
    %cst = arith.constant dense<0.000000e+00> : vector<512x128xf32>
    %2 = tpu.matmul %0, %1, %cst {dimension_numbers = #tpu.dot_dimension_numbers<[1], [0], [0], [1], [0, 0, 1, 1], [], []>} : vector<512x128xbf16>, vector<128x128xbf16>, vector<512x128xf32> -> vector<512x128xf32>
    %3 = arith.truncf %2 : vector<512x128xf32> to vector<512x128xbf16>
    %c0_3 = arith.constant 0 : index
    %c0_4 = arith.constant 0 : index
    %4 = vector.load %arg4[%c0_3, %c0_4] : memref<512x128xbf16, #tpu.memory_space<vmem>>, vector<512x128xbf16>
    tpu.vector_store %arg4[%c0_3, %c0_4], %3 {strides = array<i32>} : memref<512x128xbf16, #tpu.memory_space<vmem>>, vector<512x128xbf16>,
    %5 = arith.extf %3 : vector<512x128xbf16> to vector<512x128xf32>
    %cst_5 = arith.constant dense<0.000000e+00> : vector<128xf32>
    %6 = vector.multi_reduction <add>, %5, %cst_5 [0] : vector<512x128xf32> to vector<128xf32>
    %7 = vector.shape_cast %6 : vector<128xf32> to vector<1x128xf32>
    %8 = arith.mulf %5, %5 : vector<512x128xf32>
    %cst_6 = arith.constant dense<0.000000e+00> : vector<128xf32>
    %9 = vector.multi_reduction <add>, %8, %cst_6 [0] : vector<512x128xf32> to vector<128xf32>
    %10 = vector.shape_cast %9 : vector<128xf32> to vector<1x128xf32>
    %11 = tpu.iota {dimensions = array<i32: 0>} : vector<8x128xi32>
    %c0_i32 = arith.constant 0 : i32
    %12 = vector.broadcast %c0_i32 : i32 to vector<8x128xi32>
    %13 = arith.cmpi eq, %11, %12 : vector<8x128xi32>
    %c1_i32 = arith.constant 1 : i32
    %14 = vector.broadcast %c1_i32 : i32 to vector<8x128xi32>
    %15 = arith.cmpi eq, %11, %14 : vector<8x128xi32>
    %cst_7 = arith.constant 0.000000e+00 : f32
    %16 = vector.shape_cast %10 : vector<1x128xf32> to vector<1x128xf32>
    %17 = vector.broadcast %16 : vector<1x128xf32> to vector<8x128xf32>
    %18 = vector.broadcast %cst_7 : f32 to vector<8x128xf32>
    %19 = arith.select %15, %17, %18 : vector<8x128xi1>, vector<8x128xf32>
    %20 = vector.shape_cast %7 : vector<1x128xf32> to vector<1x128xf32>
    %21 = vector.broadcast %20 : vector<1x128xf32> to vector<8x128xf32>
    %22 = arith.select %13, %21, %19 : vector<8x128xi1>, vector<8x128xf32>
    %23 = vector.shape_cast %22 : vector<8x128xf32> to vector<1x8x128xf32>
    %c0_8 = arith.constant 0 : index
    %c0_9 = arith.constant 0 : index
    %c0_10 = arith.constant 0 : index
    %24 = vector.load %arg5[%c0_8, %c0_9, %c0_10] : memref<1x8x128xf32, #tpu.memory_space<vmem>>, vector<1x8x128xf32>
    tpu.vector_store %arg5[%c0_8, %c0_9, %c0_10], %23 {strides = array<i32>} : memref<1x8x128xf32, #tpu.memory_space<vmem>>, vector<1x8x128xf32>,
    return
  }
  func.func @transform_0(%arg0: i32, %arg1: i32) -> (i32, i32) {
    %c0_i32 = arith.constant 0 : i32
    %c0_i32_0 = arith.constant 0 : i32
    return %arg0, %c0_i32 : i32, i32
  }
  func.func @transform_1(%arg0: i32, %arg1: i32) -> (i32, i32) {
    %c0_i32 = arith.constant 0 : i32
    %c0_i32_0 = arith.constant 0 : i32
    return %c0_i32, %arg1 : i32, i32
  }
  func.func @transform_2(%arg0: i32, %arg1: i32) -> (i32, i32) {
    %c0_i32 = arith.constant 0 : i32
    return %arg0, %arg1 : i32, i32
  }
  func.func @transform_3(%arg0: i32, %arg1: i32) -> (i32, i32, i32) {
    %c0_i32 = arith.constant 0 : i32
    %c0_i32_0 = arith.constant 0 : i32
    return %arg0, %c0_i32, %arg1 : i32, i32, i32
  }
}

module attributes {stable_mosaic.version = 11 : i64} {
  func.func @kernel(%arg0: i32, %arg1: i32, %arg2: memref<1x9x9x128xbf16, #tpu.memory_space<vmem>>, %arg3: memref<1x9x9x128xbf16, #tpu.memory_space<vmem>>, %arg4: memref<1x9x9x128xbf16, #tpu.memory_space<vmem>>, %arg5: memref<1x9x9x128xbf16, #tpu.memory_space<vmem>>, %arg6: memref<9x128x128xbf16, #tpu.memory_space<vmem>>, %arg7: memref<1x64x128xbf16, #tpu.memory_space<vmem>>, %arg8: memref<1x8x128xf32, #tpu.memory_space<vmem>>, %arg9: memref<64x128xf32, #tpu.memory_space<vmem>>) attributes {dimension_semantics = [#tpu.dimension_semantics<parallel>, #tpu.dimension_semantics<arbitrary>], iteration_bounds = array<i64: 2, 1>, scalar_prefetch = 0 : i64, scratch_operands = 1 : i64, tpu.core_type = #tpu.core_type<tc>, window_params = [{transform_indices = @transform_0, window_bounds = array<i64: 1, 9, 9, 128>}, {transform_indices = @transform_1, window_bounds = array<i64: 1, 9, 9, 128>}, {transform_indices = @transform_2, window_bounds = array<i64: 1, 9, 9, 128>}, {transform_indices = @transform_3, window_bounds = array<i64: 1, 9, 9, 128>}, {transform_indices = @transform_4, window_bounds = array<i64: 9, 128, 128>}, {transform_indices = @transform_5, window_bounds = array<i64: 1, 64, 128>}, {transform_indices = @transform_6, window_bounds = array<i64: 1, 8, 128>}]} {
    %cst = arith.constant 0.000000e+00 : f32
    %0 = vector.broadcast %cst : f32 to vector<64x128xf32>
    %c0 = arith.constant 0 : index
    %c0_0 = arith.constant 0 : index
    %1 = vector.load %arg9[%c0, %c0_0] : memref<64x128xf32, #tpu.memory_space<vmem>>, vector<64x128xf32>
    tpu.vector_store %arg9[%c0, %c0_0], %0 {strides = array<i32>} : memref<64x128xf32, #tpu.memory_space<vmem>>, vector<64x128xf32>,
    %c0_1 = arith.constant 0 : index
    %c0_2 = arith.constant 0 : index
    %c0_3 = arith.constant 0 : index
    %c0_4 = arith.constant 0 : index
    %2 = vector.load %arg2[%c0_1, %c0_2, %c0_3, %c0_4] : memref<1x9x9x128xbf16, #tpu.memory_space<vmem>>, vector<1x8x8x128xbf16>
    %3 = vector.shape_cast %2 : vector<1x8x8x128xbf16> to vector<8x8x128xbf16>
    %4 = vector.shape_cast %3 : vector<8x8x128xbf16> to vector<64x128xbf16>
    %c0_5 = arith.constant 0 : index
    %c0_6 = arith.constant 0 : index
    %5 = vector.load %arg9[%c0_5, %c0_6] : memref<64x128xf32, #tpu.memory_space<vmem>>, vector<64x128xf32>
    %c0_7 = arith.constant 0 : index
    %c0_8 = arith.constant 0 : index
    %c0_9 = arith.constant 0 : index
    %6 = vector.load %arg6[%c0_7, %c0_8, %c0_9] : memref<9x128x128xbf16, #tpu.memory_space<vmem>>, vector<1x128x128xbf16>
    %7 = vector.shape_cast %6 : vector<1x128x128xbf16> to vector<128x128xbf16>
    %cst_10 = arith.constant dense<0.000000e+00> : vector<64x128xf32>
    %8 = tpu.matmul %4, %7, %cst_10 {dimension_numbers = #tpu.dot_dimension_numbers<[1], [0], [0], [1], [0, 0, 1, 1], [], []>} : vector<64x128xbf16>, vector<128x128xbf16>, vector<64x128xf32> -> vector<64x128xf32>
    %9 = arith.addf %5, %8 : vector<64x128xf32>
    %c0_11 = arith.constant 0 : index
    %c0_12 = arith.constant 0 : index
    %10 = vector.load %arg9[%c0_11, %c0_12] : memref<64x128xf32, #tpu.memory_space<vmem>>, vector<64x128xf32>
    tpu.vector_store %arg9[%c0_11, %c0_12], %9 {strides = array<i32>} : memref<64x128xf32, #tpu.memory_space<vmem>>, vector<64x128xf32>,
    %c0_13 = arith.constant 0 : index
    %c0_14 = arith.constant 0 : index
    %c0_15 = arith.constant 0 : index
    %c0_16 = arith.constant 0 : index
    %11 = vector.load %arg3[%c0_13, %c0_14, %c0_15, %c0_16] : memref<1x9x9x128xbf16, #tpu.memory_space<vmem>>, vector<1x8x8x128xbf16>
    %12 = vector.shape_cast %11 : vector<1x8x8x128xbf16> to vector<8x8x128xbf16>
    %13 = vector.shape_cast %12 : vector<8x8x128xbf16> to vector<64x128xbf16>
    %c0_17 = arith.constant 0 : index
    %c0_18 = arith.constant 0 : index
    %14 = vector.load %arg9[%c0_17, %c0_18] : memref<64x128xf32, #tpu.memory_space<vmem>>, vector<64x128xf32>
    %c1 = arith.constant 1 : index
    %c0_19 = arith.constant 0 : index
    %c0_20 = arith.constant 0 : index
    %15 = vector.load %arg6[%c1, %c0_19, %c0_20] : memref<9x128x128xbf16, #tpu.memory_space<vmem>>, vector<1x128x128xbf16>
    %16 = vector.shape_cast %15 : vector<1x128x128xbf16> to vector<128x128xbf16>
    %cst_21 = arith.constant dense<0.000000e+00> : vector<64x128xf32>
    %17 = tpu.matmul %13, %16, %cst_21 {dimension_numbers = #tpu.dot_dimension_numbers<[1], [0], [0], [1], [0, 0, 1, 1], [], []>} : vector<64x128xbf16>, vector<128x128xbf16>, vector<64x128xf32> -> vector<64x128xf32>
    %18 = arith.addf %14, %17 : vector<64x128xf32>
    %c0_22 = arith.constant 0 : index
    %c0_23 = arith.constant 0 : index
    %19 = vector.load %arg9[%c0_22, %c0_23] : memref<64x128xf32, #tpu.memory_space<vmem>>, vector<64x128xf32>
    tpu.vector_store %arg9[%c0_22, %c0_23], %18 {strides = array<i32>} : memref<64x128xf32, #tpu.memory_space<vmem>>, vector<64x128xf32>,
    %c0_24 = arith.constant 0 : index
    %c0_25 = arith.constant 0 : index
    %c1_26 = arith.constant 1 : index
    %c0_27 = arith.constant 0 : index
    %20 = vector.load %arg2[%c0_24, %c0_25, %c1_26, %c0_27] : memref<1x9x9x128xbf16, #tpu.memory_space<vmem>>, vector<1x8x8x128xbf16>
    %21 = vector.shape_cast %20 : vector<1x8x8x128xbf16> to vector<8x8x128xbf16>
    %22 = vector.shape_cast %21 : vector<8x8x128xbf16> to vector<64x128xbf16>
    %c0_28 = arith.constant 0 : index
    %c0_29 = arith.constant 0 : index
    %23 = vector.load %arg9[%c0_28, %c0_29] : memref<64x128xf32, #tpu.memory_space<vmem>>, vector<64x128xf32>
    %c2 = arith.constant 2 : index
    %c0_30 = arith.constant 0 : index
    %c0_31 = arith.constant 0 : index
    %24 = vector.load %arg6[%c2, %c0_30, %c0_31] : memref<9x128x128xbf16, #tpu.memory_space<vmem>>, vector<1x128x128xbf16>
    %25 = vector.shape_cast %24 : vector<1x128x128xbf16> to vector<128x128xbf16>
    %cst_32 = arith.constant dense<0.000000e+00> : vector<64x128xf32>
    %26 = tpu.matmul %22, %25, %cst_32 {dimension_numbers = #tpu.dot_dimension_numbers<[1], [0], [0], [1], [0, 0, 1, 1], [], []>} : vector<64x128xbf16>, vector<128x128xbf16>, vector<64x128xf32> -> vector<64x128xf32>
    %27 = arith.addf %23, %26 : vector<64x128xf32>
    %c0_33 = arith.constant 0 : index
    %c0_34 = arith.constant 0 : index
    %28 = vector.load %arg9[%c0_33, %c0_34] : memref<64x128xf32, #tpu.memory_space<vmem>>, vector<64x128xf32>
    tpu.vector_store %arg9[%c0_33, %c0_34], %27 {strides = array<i32>} : memref<64x128xf32, #tpu.memory_space<vmem>>, vector<64x128xf32>,
    %c0_35 = arith.constant 0 : index
    %c0_36 = arith.constant 0 : index
    %c0_37 = arith.constant 0 : index
    %c0_38 = arith.constant 0 : index
    %29 = vector.load %arg4[%c0_35, %c0_36, %c0_37, %c0_38] : memref<1x9x9x128xbf16, #tpu.memory_space<vmem>>, vector<1x8x8x128xbf16>
    %30 = vector.shape_cast %29 : vector<1x8x8x128xbf16> to vector<8x8x128xbf16>
    %31 = vector.shape_cast %30 : vector<8x8x128xbf16> to vector<64x128xbf16>
    %c0_39 = arith.constant 0 : index
    %c0_40 = arith.constant 0 : index
    %32 = vector.load %arg9[%c0_39, %c0_40] : memref<64x128xf32, #tpu.memory_space<vmem>>, vector<64x128xf32>
    %c3 = arith.constant 3 : index
    %c0_41 = arith.constant 0 : index
    %c0_42 = arith.constant 0 : index
    %33 = vector.load %arg6[%c3, %c0_41, %c0_42] : memref<9x128x128xbf16, #tpu.memory_space<vmem>>, vector<1x128x128xbf16>
    %34 = vector.shape_cast %33 : vector<1x128x128xbf16> to vector<128x128xbf16>
    %cst_43 = arith.constant dense<0.000000e+00> : vector<64x128xf32>
    %35 = tpu.matmul %31, %34, %cst_43 {dimension_numbers = #tpu.dot_dimension_numbers<[1], [0], [0], [1], [0, 0, 1, 1], [], []>} : vector<64x128xbf16>, vector<128x128xbf16>, vector<64x128xf32> -> vector<64x128xf32>
    %36 = arith.addf %32, %35 : vector<64x128xf32>
    %c0_44 = arith.constant 0 : index
    %c0_45 = arith.constant 0 : index
    %37 = vector.load %arg9[%c0_44, %c0_45] : memref<64x128xf32, #tpu.memory_space<vmem>>, vector<64x128xf32>
    tpu.vector_store %arg9[%c0_44, %c0_45], %36 {strides = array<i32>} : memref<64x128xf32, #tpu.memory_space<vmem>>, vector<64x128xf32>,
    %c0_46 = arith.constant 0 : index
    %c0_47 = arith.constant 0 : index
    %c0_48 = arith.constant 0 : index
    %c0_49 = arith.constant 0 : index
    %38 = vector.load %arg5[%c0_46, %c0_47, %c0_48, %c0_49] : memref<1x9x9x128xbf16, #tpu.memory_space<vmem>>, vector<1x8x8x128xbf16>
    %39 = vector.shape_cast %38 : vector<1x8x8x128xbf16> to vector<8x8x128xbf16>
    %40 = vector.shape_cast %39 : vector<8x8x128xbf16> to vector<64x128xbf16>
    %c0_50 = arith.constant 0 : index
    %c0_51 = arith.constant 0 : index
    %41 = vector.load %arg9[%c0_50, %c0_51] : memref<64x128xf32, #tpu.memory_space<vmem>>, vector<64x128xf32>
    %c4 = arith.constant 4 : index
    %c0_52 = arith.constant 0 : index
    %c0_53 = arith.constant 0 : index
    %42 = vector.load %arg6[%c4, %c0_52, %c0_53] : memref<9x128x128xbf16, #tpu.memory_space<vmem>>, vector<1x128x128xbf16>
    %43 = vector.shape_cast %42 : vector<1x128x128xbf16> to vector<128x128xbf16>
    %cst_54 = arith.constant dense<0.000000e+00> : vector<64x128xf32>
    %44 = tpu.matmul %40, %43, %cst_54 {dimension_numbers = #tpu.dot_dimension_numbers<[1], [0], [0], [1], [0, 0, 1, 1], [], []>} : vector<64x128xbf16>, vector<128x128xbf16>, vector<64x128xf32> -> vector<64x128xf32>
    %45 = arith.addf %41, %44 : vector<64x128xf32>
    %c0_55 = arith.constant 0 : index
    %c0_56 = arith.constant 0 : index
    %46 = vector.load %arg9[%c0_55, %c0_56] : memref<64x128xf32, #tpu.memory_space<vmem>>, vector<64x128xf32>
    tpu.vector_store %arg9[%c0_55, %c0_56], %45 {strides = array<i32>} : memref<64x128xf32, #tpu.memory_space<vmem>>, vector<64x128xf32>,
    %c0_57 = arith.constant 0 : index
    %c0_58 = arith.constant 0 : index
    %c1_59 = arith.constant 1 : index
    %c0_60 = arith.constant 0 : index
    %47 = vector.load %arg4[%c0_57, %c0_58, %c1_59, %c0_60] : memref<1x9x9x128xbf16, #tpu.memory_space<vmem>>, vector<1x8x8x128xbf16>
    %48 = vector.shape_cast %47 : vector<1x8x8x128xbf16> to vector<8x8x128xbf16>
    %49 = vector.shape_cast %48 : vector<8x8x128xbf16> to vector<64x128xbf16>
    %c0_61 = arith.constant 0 : index
    %c0_62 = arith.constant 0 : index
    %50 = vector.load %arg9[%c0_61, %c0_62] : memref<64x128xf32, #tpu.memory_space<vmem>>, vector<64x128xf32>
    %c5 = arith.constant 5 : index
    %c0_63 = arith.constant 0 : index
    %c0_64 = arith.constant 0 : index
    %51 = vector.load %arg6[%c5, %c0_63, %c0_64] : memref<9x128x128xbf16, #tpu.memory_space<vmem>>, vector<1x128x128xbf16>
    %52 = vector.shape_cast %51 : vector<1x128x128xbf16> to vector<128x128xbf16>
    %cst_65 = arith.constant dense<0.000000e+00> : vector<64x128xf32>
    %53 = tpu.matmul %49, %52, %cst_65 {dimension_numbers = #tpu.dot_dimension_numbers<[1], [0], [0], [1], [0, 0, 1, 1], [], []>} : vector<64x128xbf16>, vector<128x128xbf16>, vector<64x128xf32> -> vector<64x128xf32>
    %54 = arith.addf %50, %53 : vector<64x128xf32>
    %c0_66 = arith.constant 0 : index
    %c0_67 = arith.constant 0 : index
    %55 = vector.load %arg9[%c0_66, %c0_67] : memref<64x128xf32, #tpu.memory_space<vmem>>, vector<64x128xf32>
    tpu.vector_store %arg9[%c0_66, %c0_67], %54 {strides = array<i32>} : memref<64x128xf32, #tpu.memory_space<vmem>>, vector<64x128xf32>,
    %c0_68 = arith.constant 0 : index
    %c1_69 = arith.constant 1 : index
    %c0_70 = arith.constant 0 : index
    %c0_71 = arith.constant 0 : index
    %56 = vector.load %arg2[%c0_68, %c1_69, %c0_70, %c0_71] : memref<1x9x9x128xbf16, #tpu.memory_space<vmem>>, vector<1x8x8x128xbf16>
    %57 = vector.shape_cast %56 : vector<1x8x8x128xbf16> to vector<8x8x128xbf16>
    %58 = vector.shape_cast %57 : vector<8x8x128xbf16> to vector<64x128xbf16>
    %c0_72 = arith.constant 0 : index
    %c0_73 = arith.constant 0 : index
    %59 = vector.load %arg9[%c0_72, %c0_73] : memref<64x128xf32, #tpu.memory_space<vmem>>, vector<64x128xf32>
    %c6 = arith.constant 6 : index
    %c0_74 = arith.constant 0 : index
    %c0_75 = arith.constant 0 : index
    %60 = vector.load %arg6[%c6, %c0_74, %c0_75] : memref<9x128x128xbf16, #tpu.memory_space<vmem>>, vector<1x128x128xbf16>
    %61 = vector.shape_cast %60 : vector<1x128x128xbf16> to vector<128x128xbf16>
    %cst_76 = arith.constant dense<0.000000e+00> : vector<64x128xf32>
    %62 = tpu.matmul %58, %61, %cst_76 {dimension_numbers = #tpu.dot_dimension_numbers<[1], [0], [0], [1], [0, 0, 1, 1], [], []>} : vector<64x128xbf16>, vector<128x128xbf16>, vector<64x128xf32> -> vector<64x128xf32>
    %63 = arith.addf %59, %62 : vector<64x128xf32>
    %c0_77 = arith.constant 0 : index
    %c0_78 = arith.constant 0 : index
    %64 = vector.load %arg9[%c0_77, %c0_78] : memref<64x128xf32, #tpu.memory_space<vmem>>, vector<64x128xf32>
    tpu.vector_store %arg9[%c0_77, %c0_78], %63 {strides = array<i32>} : memref<64x128xf32, #tpu.memory_space<vmem>>, vector<64x128xf32>,
    %c0_79 = arith.constant 0 : index
    %c1_80 = arith.constant 1 : index
    %c0_81 = arith.constant 0 : index
    %c0_82 = arith.constant 0 : index
    %65 = vector.load %arg3[%c0_79, %c1_80, %c0_81, %c0_82] : memref<1x9x9x128xbf16, #tpu.memory_space<vmem>>, vector<1x8x8x128xbf16>
    %66 = vector.shape_cast %65 : vector<1x8x8x128xbf16> to vector<8x8x128xbf16>
    %67 = vector.shape_cast %66 : vector<8x8x128xbf16> to vector<64x128xbf16>
    %c0_83 = arith.constant 0 : index
    %c0_84 = arith.constant 0 : index
    %68 = vector.load %arg9[%c0_83, %c0_84] : memref<64x128xf32, #tpu.memory_space<vmem>>, vector<64x128xf32>
    %c7 = arith.constant 7 : index
    %c0_85 = arith.constant 0 : index
    %c0_86 = arith.constant 0 : index
    %69 = vector.load %arg6[%c7, %c0_85, %c0_86] : memref<9x128x128xbf16, #tpu.memory_space<vmem>>, vector<1x128x128xbf16>
    %70 = vector.shape_cast %69 : vector<1x128x128xbf16> to vector<128x128xbf16>
    %cst_87 = arith.constant dense<0.000000e+00> : vector<64x128xf32>
    %71 = tpu.matmul %67, %70, %cst_87 {dimension_numbers = #tpu.dot_dimension_numbers<[1], [0], [0], [1], [0, 0, 1, 1], [], []>} : vector<64x128xbf16>, vector<128x128xbf16>, vector<64x128xf32> -> vector<64x128xf32>
    %72 = arith.addf %68, %71 : vector<64x128xf32>
    %c0_88 = arith.constant 0 : index
    %c0_89 = arith.constant 0 : index
    %73 = vector.load %arg9[%c0_88, %c0_89] : memref<64x128xf32, #tpu.memory_space<vmem>>, vector<64x128xf32>
    tpu.vector_store %arg9[%c0_88, %c0_89], %72 {strides = array<i32>} : memref<64x128xf32, #tpu.memory_space<vmem>>, vector<64x128xf32>,
    %c0_90 = arith.constant 0 : index
    %c1_91 = arith.constant 1 : index
    %c1_92 = arith.constant 1 : index
    %c0_93 = arith.constant 0 : index
    %74 = vector.load %arg2[%c0_90, %c1_91, %c1_92, %c0_93] : memref<1x9x9x128xbf16, #tpu.memory_space<vmem>>, vector<1x8x8x128xbf16>
    %75 = vector.shape_cast %74 : vector<1x8x8x128xbf16> to vector<8x8x128xbf16>
    %76 = vector.shape_cast %75 : vector<8x8x128xbf16> to vector<64x128xbf16>
    %c0_94 = arith.constant 0 : index
    %c0_95 = arith.constant 0 : index
    %77 = vector.load %arg9[%c0_94, %c0_95] : memref<64x128xf32, #tpu.memory_space<vmem>>, vector<64x128xf32>
    %c8 = arith.constant 8 : index
    %c0_96 = arith.constant 0 : index
    %c0_97 = arith.constant 0 : index
    %78 = vector.load %arg6[%c8, %c0_96, %c0_97] : memref<9x128x128xbf16, #tpu.memory_space<vmem>>, vector<1x128x128xbf16>
    %79 = vector.shape_cast %78 : vector<1x128x128xbf16> to vector<128x128xbf16>
    %cst_98 = arith.constant dense<0.000000e+00> : vector<64x128xf32>
    %80 = tpu.matmul %76, %79, %cst_98 {dimension_numbers = #tpu.dot_dimension_numbers<[1], [0], [0], [1], [0, 0, 1, 1], [], []>} : vector<64x128xbf16>, vector<128x128xbf16>, vector<64x128xf32> -> vector<64x128xf32>
    %81 = arith.addf %77, %80 : vector<64x128xf32>
    %c0_99 = arith.constant 0 : index
    %c0_100 = arith.constant 0 : index
    %82 = vector.load %arg9[%c0_99, %c0_100] : memref<64x128xf32, #tpu.memory_space<vmem>>, vector<64x128xf32>
    tpu.vector_store %arg9[%c0_99, %c0_100], %81 {strides = array<i32>} : memref<64x128xf32, #tpu.memory_space<vmem>>, vector<64x128xf32>,
    %c0_101 = arith.constant 0 : index
    %c0_102 = arith.constant 0 : index
    %83 = vector.load %arg9[%c0_101, %c0_102] : memref<64x128xf32, #tpu.memory_space<vmem>>, vector<64x128xf32>
    %84 = arith.truncf %83 : vector<64x128xf32> to vector<64x128xbf16>
    %85 = vector.shape_cast %84 : vector<64x128xbf16> to vector<1x64x128xbf16>
    %c0_103 = arith.constant 0 : index
    %c0_104 = arith.constant 0 : index
    %c0_105 = arith.constant 0 : index
    %86 = vector.load %arg7[%c0_103, %c0_104, %c0_105] : memref<1x64x128xbf16, #tpu.memory_space<vmem>>, vector<1x64x128xbf16>
    tpu.vector_store %arg7[%c0_103, %c0_104, %c0_105], %85 {strides = array<i32>} : memref<1x64x128xbf16, #tpu.memory_space<vmem>>, vector<1x64x128xbf16>,
    %87 = arith.extf %84 : vector<64x128xbf16> to vector<64x128xf32>
    %cst_106 = arith.constant dense<0.000000e+00> : vector<128xf32>
    %88 = vector.multi_reduction <add>, %87, %cst_106 [0] : vector<64x128xf32> to vector<128xf32>
    %89 = vector.shape_cast %88 : vector<128xf32> to vector<1x128xf32>
    %90 = arith.mulf %87, %87 : vector<64x128xf32>
    %cst_107 = arith.constant dense<0.000000e+00> : vector<128xf32>
    %91 = vector.multi_reduction <add>, %90, %cst_107 [0] : vector<64x128xf32> to vector<128xf32>
    %92 = vector.shape_cast %91 : vector<128xf32> to vector<1x128xf32>
    %93 = tpu.iota {dimensions = array<i32: 0>} : vector<8x128xi32>
    %c0_i32 = arith.constant 0 : i32
    %94 = vector.broadcast %c0_i32 : i32 to vector<8x128xi32>
    %95 = arith.cmpi eq, %93, %94 : vector<8x128xi32>
    %c1_i32 = arith.constant 1 : i32
    %96 = vector.broadcast %c1_i32 : i32 to vector<8x128xi32>
    %97 = arith.cmpi eq, %93, %96 : vector<8x128xi32>
    %cst_108 = arith.constant 0.000000e+00 : f32
    %98 = vector.shape_cast %92 : vector<1x128xf32> to vector<1x128xf32>
    %99 = vector.broadcast %98 : vector<1x128xf32> to vector<8x128xf32>
    %100 = vector.broadcast %cst_108 : f32 to vector<8x128xf32>
    %101 = arith.select %97, %99, %100 : vector<8x128xi1>, vector<8x128xf32>
    %102 = vector.shape_cast %89 : vector<1x128xf32> to vector<1x128xf32>
    %103 = vector.broadcast %102 : vector<1x128xf32> to vector<8x128xf32>
    %104 = arith.select %95, %103, %101 : vector<8x128xi1>, vector<8x128xf32>
    %105 = vector.shape_cast %104 : vector<8x128xf32> to vector<1x8x128xf32>
    %c0_109 = arith.constant 0 : index
    %c0_110 = arith.constant 0 : index
    %c0_111 = arith.constant 0 : index
    %106 = vector.load %arg8[%c0_109, %c0_110, %c0_111] : memref<1x8x128xf32, #tpu.memory_space<vmem>>, vector<1x8x128xf32>
    tpu.vector_store %arg8[%c0_109, %c0_110, %c0_111], %105 {strides = array<i32>} : memref<1x8x128xf32, #tpu.memory_space<vmem>>, vector<1x8x128xf32>,
    return
  }
  func.func @transform_0(%arg0: i32, %arg1: i32) -> (i32, i32, i32, i32) {
    %c0_i32 = arith.constant 0 : i32
    %c0_i32_0 = arith.constant 0 : i32
    %c0_i32_1 = arith.constant 0 : i32
    %c0_i32_2 = arith.constant 0 : i32
    return %arg0, %c0_i32, %c0_i32_0, %c0_i32_1 : i32, i32, i32, i32
  }
  func.func @transform_1(%arg0: i32, %arg1: i32) -> (i32, i32, i32, i32) {
    %c0_i32 = arith.constant 0 : i32
    %c0_i32_0 = arith.constant 0 : i32
    %c0_i32_1 = arith.constant 0 : i32
    %c0_i32_2 = arith.constant 0 : i32
    return %arg0, %c0_i32, %c0_i32_0, %c0_i32_1 : i32, i32, i32, i32
  }
  func.func @transform_2(%arg0: i32, %arg1: i32) -> (i32, i32, i32, i32) {
    %c0_i32 = arith.constant 0 : i32
    %c0_i32_0 = arith.constant 0 : i32
    %c0_i32_1 = arith.constant 0 : i32
    %c0_i32_2 = arith.constant 0 : i32
    return %arg0, %c0_i32, %c0_i32_0, %c0_i32_1 : i32, i32, i32, i32
  }
  func.func @transform_3(%arg0: i32, %arg1: i32) -> (i32, i32, i32, i32) {
    %c0_i32 = arith.constant 0 : i32
    %c0_i32_0 = arith.constant 0 : i32
    %c0_i32_1 = arith.constant 0 : i32
    %c0_i32_2 = arith.constant 0 : i32
    return %arg0, %c0_i32, %c0_i32_0, %c0_i32_1 : i32, i32, i32, i32
  }
  func.func @transform_4(%arg0: i32, %arg1: i32) -> (i32, i32, i32) {
    %c0_i32 = arith.constant 0 : i32
    %c0_i32_0 = arith.constant 0 : i32
    %c0_i32_1 = arith.constant 0 : i32
    return %c0_i32, %c0_i32_0, %arg1 : i32, i32, i32
  }
  func.func @transform_5(%arg0: i32, %arg1: i32) -> (i32, i32, i32) {
    %c0_i32 = arith.constant 0 : i32
    %c0_i32_0 = arith.constant 0 : i32
    return %arg0, %c0_i32, %arg1 : i32, i32, i32
  }
  func.func @transform_6(%arg0: i32, %arg1: i32) -> (i32, i32, i32) {
    %c0_i32 = arith.constant 0 : i32
    %c0_i32_0 = arith.constant 0 : i32
    return %arg0, %c0_i32, %arg1 : i32, i32, i32
  }
}

module attributes {stable_mosaic.version = 11 : i64} {
  func.func @_matmul_stats_kernel(%arg0: i32, %arg1: i32, %arg2: memref<128x128xbf16, #tpu.memory_space<vmem>>, %arg3: memref<128x128xbf16, #tpu.memory_space<vmem>>, %arg4: memref<1x128xf32, #tpu.memory_space<vmem>>, %arg5: memref<1x128xf32, #tpu.memory_space<vmem>>, %arg6: memref<128x128xbf16, #tpu.memory_space<vmem>>, %arg7: memref<1x8x128xf32, #tpu.memory_space<vmem>>, %arg8: memref<128x128xbf16, #tpu.memory_space<vmem>>) attributes {dimension_semantics = [#tpu.dimension_semantics<parallel>, #tpu.dimension_semantics<arbitrary>], iteration_bounds = array<i64: 1, 1>, scalar_prefetch = 0 : i64, scratch_operands = 1 : i64, tpu.core_type = #tpu.core_type<tc>, window_params = [{transform_indices = @transform_0, window_bounds = array<i64: 128, 128>}, {transform_indices = @transform_1, window_bounds = array<i64: 128, 128>}, {pipeline_mode = #tpu.pipeline_mode<synchronous>, transform_indices = @transform_2, window_bounds = array<i64: 1, 128>}, {pipeline_mode = #tpu.pipeline_mode<synchronous>, transform_indices = @transform_3, window_bounds = array<i64: 1, 128>}, {transform_indices = @transform_4, window_bounds = array<i64: 128, 128>}, {transform_indices = @transform_5, window_bounds = array<i64: 1, 8, 128>}]} {
    %c0_i32 = arith.constant 0 : i32
    %0 = arith.cmpi eq, %arg1, %c0_i32 : i32
    %1 = arith.extui %0 : i1 to i32
    %c0_i32_0 = arith.constant 0 : i32
    %2 = arith.cmpi ne, %1, %c0_i32_0 : i32
    scf.if %2 {
      %c0_13 = arith.constant 0 : index
      %c0_14 = arith.constant 0 : index
      %28 = vector.load %arg2[%c0_13, %c0_14] : memref<128x128xbf16, #tpu.memory_space<vmem>>, vector<128x128xbf16>
      %29 = arith.extf %28 : vector<128x128xbf16> to vector<128x128xf32>
      %c0_15 = arith.constant 0 : index
      %c0_16 = arith.constant 0 : index
      %30 = vector.load %arg4[%c0_15, %c0_16] : memref<1x128xf32, #tpu.memory_space<vmem>>, vector<1x128xf32>
      %31 = vector.broadcast %30 : vector<1x128xf32> to vector<128x128xf32>
      %32 = arith.mulf %29, %31 : vector<128x128xf32>
      %c0_17 = arith.constant 0 : index
      %c0_18 = arith.constant 0 : index
      %33 = vector.load %arg5[%c0_17, %c0_18] : memref<1x128xf32, #tpu.memory_space<vmem>>, vector<1x128xf32>
      %34 = vector.broadcast %33 : vector<1x128xf32> to vector<128x128xf32>
      %35 = arith.addf %32, %34 : vector<128x128xf32>
      %cst_19 = arith.constant 0.000000e+00 : f32
      %36 = vector.broadcast %cst_19 : f32 to vector<128x128xf32>
      %37 = arith.maximumf %35, %36 : vector<128x128xf32>
      %38 = arith.truncf %37 : vector<128x128xf32> to vector<128x128xbf16>
      %c0_20 = arith.constant 0 : index
      %c0_21 = arith.constant 0 : index
      %39 = vector.load %arg8[%c0_20, %c0_21] : memref<128x128xbf16, #tpu.memory_space<vmem>>, vector<128x128xbf16>
      tpu.vector_store %arg8[%c0_20, %c0_21], %38 {strides = array<i32>} : memref<128x128xbf16, #tpu.memory_space<vmem>>, vector<128x128xbf16>,
    } else {
    }
    %c0 = arith.constant 0 : index
    %c0_1 = arith.constant 0 : index
    %3 = vector.load %arg8[%c0, %c0_1] : memref<128x128xbf16, #tpu.memory_space<vmem>>, vector<128x128xbf16>
    %c0_2 = arith.constant 0 : index
    %c0_3 = arith.constant 0 : index
    %4 = vector.load %arg3[%c0_2, %c0_3] : memref<128x128xbf16, #tpu.memory_space<vmem>>, vector<128x128xbf16>
    %cst = arith.constant dense<0.000000e+00> : vector<128x128xf32>
    %5 = tpu.matmul %3, %4, %cst {dimension_numbers = #tpu.dot_dimension_numbers<[1], [0], [0], [1], [0, 0, 1, 1], [], []>} : vector<128x128xbf16>, vector<128x128xbf16>, vector<128x128xf32> -> vector<128x128xf32>
    %6 = arith.truncf %5 : vector<128x128xf32> to vector<128x128xbf16>
    %c0_4 = arith.constant 0 : index
    %c0_5 = arith.constant 0 : index
    %7 = vector.load %arg6[%c0_4, %c0_5] : memref<128x128xbf16, #tpu.memory_space<vmem>>, vector<128x128xbf16>
    tpu.vector_store %arg6[%c0_4, %c0_5], %6 {strides = array<i32>} : memref<128x128xbf16, #tpu.memory_space<vmem>>, vector<128x128xbf16>,
    %8 = arith.extf %6 : vector<128x128xbf16> to vector<128x128xf32>
    %cst_6 = arith.constant dense<0.000000e+00> : vector<128xf32>
    %9 = vector.multi_reduction <add>, %8, %cst_6 [0] : vector<128x128xf32> to vector<128xf32>
    %10 = vector.shape_cast %9 : vector<128xf32> to vector<1x128xf32>
    %11 = arith.mulf %8, %8 : vector<128x128xf32>
    %cst_7 = arith.constant dense<0.000000e+00> : vector<128xf32>
    %12 = vector.multi_reduction <add>, %11, %cst_7 [0] : vector<128x128xf32> to vector<128xf32>
    %13 = vector.shape_cast %12 : vector<128xf32> to vector<1x128xf32>
    %14 = tpu.iota {dimensions = array<i32: 0>} : vector<8x128xi32>
    %c0_i32_8 = arith.constant 0 : i32
    %15 = vector.broadcast %c0_i32_8 : i32 to vector<8x128xi32>
    %16 = arith.cmpi eq, %14, %15 : vector<8x128xi32>
    %c1_i32 = arith.constant 1 : i32
    %17 = vector.broadcast %c1_i32 : i32 to vector<8x128xi32>
    %18 = arith.cmpi eq, %14, %17 : vector<8x128xi32>
    %cst_9 = arith.constant 0.000000e+00 : f32
    %19 = vector.shape_cast %13 : vector<1x128xf32> to vector<1x128xf32>
    %20 = vector.broadcast %19 : vector<1x128xf32> to vector<8x128xf32>
    %21 = vector.broadcast %cst_9 : f32 to vector<8x128xf32>
    %22 = arith.select %18, %20, %21 : vector<8x128xi1>, vector<8x128xf32>
    %23 = vector.shape_cast %10 : vector<1x128xf32> to vector<1x128xf32>
    %24 = vector.broadcast %23 : vector<1x128xf32> to vector<8x128xf32>
    %25 = arith.select %16, %24, %22 : vector<8x128xi1>, vector<8x128xf32>
    %26 = vector.shape_cast %25 : vector<8x128xf32> to vector<1x8x128xf32>
    %c0_10 = arith.constant 0 : index
    %c0_11 = arith.constant 0 : index
    %c0_12 = arith.constant 0 : index
    %27 = vector.load %arg7[%c0_10, %c0_11, %c0_12] : memref<1x8x128xf32, #tpu.memory_space<vmem>>, vector<1x8x128xf32>
    tpu.vector_store %arg7[%c0_10, %c0_11, %c0_12], %26 {strides = array<i32>} : memref<1x8x128xf32, #tpu.memory_space<vmem>>, vector<1x8x128xf32>,
    return
  }
  func.func @transform_0(%arg0: i32, %arg1: i32) -> (i32, i32) {
    %c0_i32 = arith.constant 0 : i32
    %c0_i32_0 = arith.constant 0 : i32
    return %arg0, %c0_i32 : i32, i32
  }
  func.func @transform_1(%arg0: i32, %arg1: i32) -> (i32, i32) {
    %c0_i32 = arith.constant 0 : i32
    %c0_i32_0 = arith.constant 0 : i32
    return %c0_i32, %arg1 : i32, i32
  }
  func.func @transform_2(%arg0: i32, %arg1: i32) -> (i32, i32) {
    %c0_i32 = arith.constant 0 : i32
    %c0_i32_0 = arith.constant 0 : i32
    %c0_i32_1 = arith.constant 0 : i32
    return %c0_i32, %c0_i32_0 : i32, i32
  }
  func.func @transform_3(%arg0: i32, %arg1: i32) -> (i32, i32) {
    %c0_i32 = arith.constant 0 : i32
    %c0_i32_0 = arith.constant 0 : i32
    %c0_i32_1 = arith.constant 0 : i32
    return %c0_i32, %c0_i32_0 : i32, i32
  }
  func.func @transform_4(%arg0: i32, %arg1: i32) -> (i32, i32) {
    %c0_i32 = arith.constant 0 : i32
    return %arg0, %arg1 : i32, i32
  }
  func.func @transform_5(%arg0: i32, %arg1: i32) -> (i32, i32, i32) {
    %c0_i32 = arith.constant 0 : i32
    %c0_i32_0 = arith.constant 0 : i32
    return %arg0, %c0_i32, %arg1 : i32, i32, i32
  }
}

module attributes {stable_mosaic.version = 11 : i64} {
  func.func @_matmul_stats_kernel(%arg0: i32, %arg1: i32, %arg2: memref<128x128xbf16, #tpu.memory_space<vmem>>, %arg3: memref<128x128xbf16, #tpu.memory_space<vmem>>, %arg4: memref<128x128xbf16, #tpu.memory_space<vmem>>, %arg5: memref<1x8x128xf32, #tpu.memory_space<vmem>>) attributes {dimension_semantics = [#tpu.dimension_semantics<parallel>, #tpu.dimension_semantics<arbitrary>], iteration_bounds = array<i64: 1, 1>, scalar_prefetch = 0 : i64, scratch_operands = 0 : i64, tpu.core_type = #tpu.core_type<tc>, window_params = [{transform_indices = @transform_0, window_bounds = array<i64: 128, 128>}, {transform_indices = @transform_1, window_bounds = array<i64: 128, 128>}, {transform_indices = @transform_2, window_bounds = array<i64: 128, 128>}, {transform_indices = @transform_3, window_bounds = array<i64: 1, 8, 128>}]} {
    %c0 = arith.constant 0 : index
    %c0_0 = arith.constant 0 : index
    %0 = vector.load %arg2[%c0, %c0_0] : memref<128x128xbf16, #tpu.memory_space<vmem>>, vector<128x128xbf16>
    %c0_1 = arith.constant 0 : index
    %c0_2 = arith.constant 0 : index
    %1 = vector.load %arg3[%c0_1, %c0_2] : memref<128x128xbf16, #tpu.memory_space<vmem>>, vector<128x128xbf16>
    %cst = arith.constant dense<0.000000e+00> : vector<128x128xf32>
    %2 = tpu.matmul %0, %1, %cst {dimension_numbers = #tpu.dot_dimension_numbers<[1], [0], [0], [1], [0, 0, 1, 1], [], []>} : vector<128x128xbf16>, vector<128x128xbf16>, vector<128x128xf32> -> vector<128x128xf32>
    %3 = arith.truncf %2 : vector<128x128xf32> to vector<128x128xbf16>
    %c0_3 = arith.constant 0 : index
    %c0_4 = arith.constant 0 : index
    %4 = vector.load %arg4[%c0_3, %c0_4] : memref<128x128xbf16, #tpu.memory_space<vmem>>, vector<128x128xbf16>
    tpu.vector_store %arg4[%c0_3, %c0_4], %3 {strides = array<i32>} : memref<128x128xbf16, #tpu.memory_space<vmem>>, vector<128x128xbf16>,
    %5 = arith.extf %3 : vector<128x128xbf16> to vector<128x128xf32>
    %cst_5 = arith.constant dense<0.000000e+00> : vector<128xf32>
    %6 = vector.multi_reduction <add>, %5, %cst_5 [0] : vector<128x128xf32> to vector<128xf32>
    %7 = vector.shape_cast %6 : vector<128xf32> to vector<1x128xf32>
    %8 = arith.mulf %5, %5 : vector<128x128xf32>
    %cst_6 = arith.constant dense<0.000000e+00> : vector<128xf32>
    %9 = vector.multi_reduction <add>, %8, %cst_6 [0] : vector<128x128xf32> to vector<128xf32>
    %10 = vector.shape_cast %9 : vector<128xf32> to vector<1x128xf32>
    %11 = tpu.iota {dimensions = array<i32: 0>} : vector<8x128xi32>
    %c0_i32 = arith.constant 0 : i32
    %12 = vector.broadcast %c0_i32 : i32 to vector<8x128xi32>
    %13 = arith.cmpi eq, %11, %12 : vector<8x128xi32>
    %c1_i32 = arith.constant 1 : i32
    %14 = vector.broadcast %c1_i32 : i32 to vector<8x128xi32>
    %15 = arith.cmpi eq, %11, %14 : vector<8x128xi32>
    %cst_7 = arith.constant 0.000000e+00 : f32
    %16 = vector.shape_cast %10 : vector<1x128xf32> to vector<1x128xf32>
    %17 = vector.broadcast %16 : vector<1x128xf32> to vector<8x128xf32>
    %18 = vector.broadcast %cst_7 : f32 to vector<8x128xf32>
    %19 = arith.select %15, %17, %18 : vector<8x128xi1>, vector<8x128xf32>
    %20 = vector.shape_cast %7 : vector<1x128xf32> to vector<1x128xf32>
    %21 = vector.broadcast %20 : vector<1x128xf32> to vector<8x128xf32>
    %22 = arith.select %13, %21, %19 : vector<8x128xi1>, vector<8x128xf32>
    %23 = vector.shape_cast %22 : vector<8x128xf32> to vector<1x8x128xf32>
    %c0_8 = arith.constant 0 : index
    %c0_9 = arith.constant 0 : index
    %c0_10 = arith.constant 0 : index
    %24 = vector.load %arg5[%c0_8, %c0_9, %c0_10] : memref<1x8x128xf32, #tpu.memory_space<vmem>>, vector<1x8x128xf32>
    tpu.vector_store %arg5[%c0_8, %c0_9, %c0_10], %23 {strides = array<i32>} : memref<1x8x128xf32, #tpu.memory_space<vmem>>, vector<1x8x128xf32>,
    return
  }
  func.func @transform_0(%arg0: i32, %arg1: i32) -> (i32, i32) {
    %c0_i32 = arith.constant 0 : i32
    %c0_i32_0 = arith.constant 0 : i32
    return %arg0, %c0_i32 : i32, i32
  }
  func.func @transform_1(%arg0: i32, %arg1: i32) -> (i32, i32) {
    %c0_i32 = arith.constant 0 : i32
    %c0_i32_0 = arith.constant 0 : i32
    return %c0_i32, %arg1 : i32, i32
  }
  func.func @transform_2(%arg0: i32, %arg1: i32) -> (i32, i32) {
    %c0_i32 = arith.constant 0 : i32
    return %arg0, %arg1 : i32, i32
  }
  func.func @transform_3(%arg0: i32, %arg1: i32) -> (i32, i32, i32) {
    %c0_i32 = arith.constant 0 : i32
    %c0_i32_0 = arith.constant 0 : i32
    return %arg0, %c0_i32, %arg1 : i32, i32, i32
  }
}

module attributes {stable_mosaic.version = 11 : i64} {
  func.func @_bn_add_relu_kernel(%arg0: i32, %arg1: i32, %arg2: memref<128x128xbf16, #tpu.memory_space<vmem>>, %arg3: memref<1x128xf32, #tpu.memory_space<vmem>>, %arg4: memref<1x128xf32, #tpu.memory_space<vmem>>, %arg5: memref<128x128xbf16, #tpu.memory_space<vmem>>, %arg6: memref<1x128xf32, #tpu.memory_space<vmem>>, %arg7: memref<1x128xf32, #tpu.memory_space<vmem>>, %arg8: memref<128x128xbf16, #tpu.memory_space<vmem>>) attributes {dimension_semantics = [#tpu.dimension_semantics<parallel>, #tpu.dimension_semantics<parallel>], iteration_bounds = array<i64: 1, 1>, scalar_prefetch = 0 : i64, scratch_operands = 0 : i64, tpu.core_type = #tpu.core_type<tc>, window_params = [{transform_indices = @transform_0, window_bounds = array<i64: 128, 128>}, {transform_indices = @transform_1, window_bounds = array<i64: 1, 128>}, {transform_indices = @transform_2, window_bounds = array<i64: 1, 128>}, {transform_indices = @transform_3, window_bounds = array<i64: 128, 128>}, {transform_indices = @transform_4, window_bounds = array<i64: 1, 128>}, {transform_indices = @transform_5, window_bounds = array<i64: 1, 128>}, {transform_indices = @transform_6, window_bounds = array<i64: 128, 128>}]} {
    %c0 = arith.constant 0 : index
    %c0_0 = arith.constant 0 : index
    %0 = vector.load %arg2[%c0, %c0_0] : memref<128x128xbf16, #tpu.memory_space<vmem>>, vector<128x128xbf16>
    %1 = arith.extf %0 : vector<128x128xbf16> to vector<128x128xf32>
    %c0_1 = arith.constant 0 : index
    %c0_2 = arith.constant 0 : index
    %2 = vector.load %arg3[%c0_1, %c0_2] : memref<1x128xf32, #tpu.memory_space<vmem>>, vector<1x128xf32>
    %3 = vector.broadcast %2 : vector<1x128xf32> to vector<128x128xf32>
    %4 = arith.mulf %1, %3 : vector<128x128xf32>
    %c0_3 = arith.constant 0 : index
    %c0_4 = arith.constant 0 : index
    %5 = vector.load %arg4[%c0_3, %c0_4] : memref<1x128xf32, #tpu.memory_space<vmem>>, vector<1x128xf32>
    %6 = vector.broadcast %5 : vector<1x128xf32> to vector<128x128xf32>
    %7 = arith.addf %4, %6 : vector<128x128xf32>
    %c0_5 = arith.constant 0 : index
    %c0_6 = arith.constant 0 : index
    %8 = vector.load %arg5[%c0_5, %c0_6] : memref<128x128xbf16, #tpu.memory_space<vmem>>, vector<128x128xbf16>
    %9 = arith.extf %8 : vector<128x128xbf16> to vector<128x128xf32>
    %c0_7 = arith.constant 0 : index
    %c0_8 = arith.constant 0 : index
    %10 = vector.load %arg6[%c0_7, %c0_8] : memref<1x128xf32, #tpu.memory_space<vmem>>, vector<1x128xf32>
    %11 = vector.broadcast %10 : vector<1x128xf32> to vector<128x128xf32>
    %12 = arith.mulf %9, %11 : vector<128x128xf32>
    %c0_9 = arith.constant 0 : index
    %c0_10 = arith.constant 0 : index
    %13 = vector.load %arg7[%c0_9, %c0_10] : memref<1x128xf32, #tpu.memory_space<vmem>>, vector<1x128xf32>
    %14 = vector.broadcast %13 : vector<1x128xf32> to vector<128x128xf32>
    %15 = arith.addf %12, %14 : vector<128x128xf32>
    %16 = arith.addf %7, %15 : vector<128x128xf32>
    %cst = arith.constant 0.000000e+00 : f32
    %17 = vector.broadcast %cst : f32 to vector<128x128xf32>
    %18 = arith.maximumf %16, %17 : vector<128x128xf32>
    %19 = arith.truncf %18 : vector<128x128xf32> to vector<128x128xbf16>
    %c0_11 = arith.constant 0 : index
    %c0_12 = arith.constant 0 : index
    %20 = vector.load %arg8[%c0_11, %c0_12] : memref<128x128xbf16, #tpu.memory_space<vmem>>, vector<128x128xbf16>
    tpu.vector_store %arg8[%c0_11, %c0_12], %19 {strides = array<i32>} : memref<128x128xbf16, #tpu.memory_space<vmem>>, vector<128x128xbf16>,
    return
  }
  func.func @transform_0(%arg0: i32, %arg1: i32) -> (i32, i32) {
    %c0_i32 = arith.constant 0 : i32
    return %arg0, %arg1 : i32, i32
  }
  func.func @transform_1(%arg0: i32, %arg1: i32) -> (i32, i32) {
    %c0_i32 = arith.constant 0 : i32
    %c0_i32_0 = arith.constant 0 : i32
    return %c0_i32, %arg1 : i32, i32
  }
  func.func @transform_2(%arg0: i32, %arg1: i32) -> (i32, i32) {
    %c0_i32 = arith.constant 0 : i32
    %c0_i32_0 = arith.constant 0 : i32
    return %c0_i32, %arg1 : i32, i32
  }
  func.func @transform_3(%arg0: i32, %arg1: i32) -> (i32, i32) {
    %c0_i32 = arith.constant 0 : i32
    return %arg0, %arg1 : i32, i32
  }
  func.func @transform_4(%arg0: i32, %arg1: i32) -> (i32, i32) {
    %c0_i32 = arith.constant 0 : i32
    %c0_i32_0 = arith.constant 0 : i32
    return %c0_i32, %arg1 : i32, i32
  }
  func.func @transform_5(%arg0: i32, %arg1: i32) -> (i32, i32) {
    %c0_i32 = arith.constant 0 : i32
    %c0_i32_0 = arith.constant 0 : i32
    return %c0_i32, %arg1 : i32, i32
  }
  func.func @transform_6(%arg0: i32, %arg1: i32) -> (i32, i32) {
    %c0_i32 = arith.constant 0 : i32
    return %arg0, %arg1 : i32, i32
  }
}

</mosaic_0001>

<llo_original>
// kernel: bottleneck_forward.5
$region0: #{bottleneck_forward.5}
  #allocation0 [shape = 'u32[]', space=smem, size = 0x4, offset = 0x4, fixed_abs, tag = 'smem constant byte address 0x4 - core index']
  #allocation1 [shape = 'u32[144,128]{1,0:T(1,128)}', space=vmem, size = 0x12000, scoped, tag = 'internal scratch']
  %s0 = inlined_call_operand.hbm [shape: bf16[512,128], index: 0, kind: input, shape index: {}]
  %s1 = inlined_call_operand.hbm [shape: bf16[128,128], index: 1, kind: input, shape index: {}]
  %s2 = inlined_call_operand.hbm [shape: bf16[512,128], index: 2, kind: output, shape index: {0}]
  %s3 = inlined_call_operand.hbm [shape: f32[1,8,128], index: 3, kind: output, shape index: {1}]
  %4 = xla_tuple %s2, %s3
  %s5 = sld [smem:[#allocation0]]
  $region34: #{bottleneck_forward.5} parent=0
    _
  %s7 = ssub.s32 1, %s5
  %s8 = scalar_select 0, %s7, %s5
  $region1: #{bottleneck_forward.5} parent=0
    #allocation2 [shape = 'u8[131072]{0}', space=vmem, size = 0x20000, scoped, tag = 'input window, operand 0, single buffered']
    #allocation3 [shape = 's32[1]{0}', space=sflag, size = 0x4, scoped, tag = 'scoped memory for bottleneck_forward.5']
    #allocation4 [shape = 's32[1]{0}', space=sflag, size = 0x4, scoped, tag = 'scoped memory for bottleneck_forward.5']
    #allocation5 [shape = 'u8[32768]{0}', space=vmem, size = 0x8000, scoped, tag = 'input window, operand 1, single buffered']
    #allocation6 [shape = 's32[1]{0}', space=sflag, size = 0x4, scoped, tag = 'scoped memory for bottleneck_forward.5']
    #allocation7 [shape = 'u8[131072]{0}', space=vmem, size = 0x20000, scoped, tag = 'output window, operand 0, single buffered']
    #allocation8 [shape = 'u8[4096]{0}', space=vmem, size = 0x1000, scoped, tag = 'output window, operand 1, single buffered']
    #allocation9 [shape = 's32[1]{0}', space=sflag, size = 0x4, scoped, tag = 'scoped memory for bottleneck_forward.5']
    %9 = vsyncpa [#allocation3], 0
    %10 = vsyncpa [#allocation6], 0
    %11 = vsyncpa [#allocation4], 0
    %12 = vsyncpa [#allocation9], 0
    // Predicated region
    $region2: #{bottleneck_forward.5} parent=1 // pred_check
      _
    $region3: #{bottleneck_forward.5} parent=1 // pred_check_branch
      %14 = sbr.rel (0) target = $region5
    $region4: #{bottleneck_forward.5} parent=1 // pred_region
      %s16 = ssub.s32 4096, 4096
      %17 = vsyncadd [#allocation3], %s16
      %s18 = sshll.u32 [#allocation2], 4
      %s19 = int_to_ptr.vmem [resolvable:$true] %s18
      %24 = dma.hbm_to_vmem [thread:$0]  %s0, 4096, %s19, [#allocation3], 64, 64, 4
    $region5: #{bottleneck_forward.5} parent=1 // pred_fallthru
      _
    // Predicated region
    $region6: #{bottleneck_forward.5} parent=1 // pred_check
      _
    $region7: #{bottleneck_forward.5} parent=1 // pred_check_branch
      %26 = sbr.rel (0) target = $region9
    $region8: #{bottleneck_forward.5} parent=1 // pred_region
      %s28 = ssub.s32 1024, 1024
      %29 = vsyncadd [#allocation6], %s28
      %s30 = sshll.u32 [#allocation5], 4
      %s31 = int_to_ptr.vmem [resolvable:$true] %s30
      %36 = dma.hbm_to_vmem [thread:$0]  %s1, 1024, %s31, [#allocation6], 64, 64, 4
    $region9: #{bottleneck_forward.5} parent=1 // pred_fallthru
      _
    // Predicated region
    $region10: #{bottleneck_forward.5} parent=1 // pred_check
      _
    $region11: #{bottleneck_forward.5} parent=1 // pred_check_branch
      %38 = sbr.rel (0) target = $region13
    $region12: #{bottleneck_forward.5} parent=1 // pred_region
      %39 = dma.done [#allocation3], 4096
    $region13: #{bottleneck_forward.5} parent=1 // pred_fallthru
      _
    // Predicated region
    $region14: #{bottleneck_forward.5} parent=1 // pred_check
      _
    $region15: #{bottleneck_forward.5} parent=1 // pred_check_branch
      %41 = sbr.rel (0) target = $region17
    $region16: #{bottleneck_forward.5} parent=1 // pred_region
      %42 = dma.done [#allocation6], 1024
    $region17: #{bottleneck_forward.5} parent=1 // pred_fallthru
      _
    %v44 = vld [vmem:[#allocation2] sm:$0xf]
    %v45 = vld [vmem:[#allocation2 + $0x4] sm:$0xf]
    %v46 = vld [vmem:[#allocation2 + $0x8] sm:$0xf]
    %v47 = vld [vmem:[#allocation2 + $0xc] sm:$0xf]
    %v48 = vld [vmem:[#allocation2 + $0x10] sm:$0xf]
    %v49 = vld [vmem:[#allocation2 + $0x14] sm:$0xf]
    %v50 = vld [vmem:[#allocation2 + $0x18] sm:$0xf]
    %v51 = vld [vmem:[#allocation2 + $0x1c] sm:$0xf]
    %v52 = vld [vmem:[#allocation2 + $0x20] sm:$0xf]
    %v53 = vld [vmem:[#allocation2 + $0x24] sm:$0xf]
    %v54 = vld [vmem:[#allocation2 + $0x28] sm:$0xf]
    %v55 = vld [vmem:[#allocation2 + $0x2c] sm:$0xf]
    %v56 = vld [vmem:[#allocation2 + $0x30] sm:$0xf]
    %v57 = vld [vmem:[#allocation2 + $0x34] sm:$0xf]
    %v58 = vld [vmem:[#allocation2 + $0x38] sm:$0xf]
    %v59 = vld [vmem:[#allocation2 + $0x3c] sm:$0xf]
    %v60 = vld [vmem:[#allocation2 + $0x40] sm:$0xf]
    %v61 = vld [vmem:[#allocation2 + $0x44] sm:$0xf]
    %v62 = vld [vmem:[#allocation2 + $0x48] sm:$0xf]
    %v63 = vld [vmem:[#allocation2 + $0x4c] sm:$0xf]
    %v64 = vld [vmem:[#allocation2 + $0x50] sm:$0xf]
    %v65 = vld [vmem:[#allocation2 + $0x54] sm:$0xf]
    %v66 = vld [vmem:[#allocation2 + $0x58] sm:$0xf]
    %v67 = vld [vmem:[#allocation2 + $0x5c] sm:$0xf]
    %v68 = vld [vmem:[#allocation2 + $0x60] sm:$0xf]
    %v69 = vld [vmem:[#allocation2 + $0x64] sm:$0xf]
    %v70 = vld [vmem:[#allocation2 + $0x68] sm:$0xf]
    %v71 = vld [vmem:[#allocation2 + $0x6c] sm:$0xf]
    %v72 = vld [vmem:[#allocation2 + $0x70] sm:$0xf]
    %v73 = vld [vmem:[#allocation2 + $0x74] sm:$0xf]
    %v74 = vld [vmem:[#allocation2 + $0x78] sm:$0xf]
    %v75 = vld [vmem:[#allocation2 + $0x7c] sm:$0xf]
    %v76 = vld [vmem:[#allocation2 + $0x80] sm:$0xf]
    %v77 = vld [vmem:[#allocation2 + $0x84] sm:$0xf]
    %v78 = vld [vmem:[#allocation2 + $0x88] sm:$0xf]
    %v79 = vld [vmem:[#allocation2 + $0x8c] sm:$0xf]
    %v80 = vld [vmem:[#allocation2 + $0x90] sm:$0xf]
    %v81 = vld [vmem:[#allocation2 + $0x94] sm:$0xf]
    %v82 = vld [vmem:[#allocation2 + $0x98] sm:$0xf]
    %v83 = vld [vmem:[#allocation2 + $0x9c] sm:$0xf]
    %v84 = vld [vmem:[#allocation2 + $0xa0] sm:$0xf]
    %v85 = vld [vmem:[#allocation2 + $0xa4] sm:$0xf]
    %v86 = vld [vmem:[#allocation2 + $0xa8] sm:$0xf]
    %v87 = vld [vmem:[#allocation2 + $0xac] sm:$0xf]
    %v88 = vld [vmem:[#allocation2 + $0xb0] sm:$0xf]
    %v89 = vld [vmem:[#allocation2 + $0xb4] sm:$0xf]
    %v90 = vld [vmem:[#allocation2 + $0xb8] sm:$0xf]
    %v91 = vld [vmem:[#allocation2 + $0xbc] sm:$0xf]
    %v92 = vld [vmem:[#allocation2 + $0xc0] sm:$0xf]
    %v93 = vld [vmem:[#allocation2 + $0xc4] sm:$0xf]
    %v94 = vld [vmem:[#allocation2 + $0xc8] sm:$0xf]
    %v95 = vld [vmem:[#allocation2 + $0xcc] sm:$0xf]
    %v96 = vld [vmem:[#allocation2 + $0xd0] sm:$0xf]
    %v97 = vld [vmem:[#allocation2 + $0xd4] sm:$0xf]
    %v98 = vld [vmem:[#allocation2 + $0xd8] sm:$0xf]
    %v99 = vld [vmem:[#allocation2 + $0xdc] sm:$0xf]
    %v100 = vld [vmem:[#allocation2 + $0xe0] sm:$0xf]
    %v101 = vld [vmem:[#allocation2 + $0xe4] sm:$0xf]
    %v102 = vld [vmem:[#allocation2 + $0xe8] sm:$0xf]
    %v103 = vld [vmem:[#allocation2 + $0xec] sm:$0xf]
    %v104 = vld [vmem:[#allocation2 + $0xf0] sm:$0xf]
    %v105 = vld [vmem:[#allocation2 + $0xf4] sm:$0xf]
    %v106 = vld [vmem:[#allocation2 + $0xf8] sm:$0xf]
    %v107 = vld [vmem:[#allocation2 + $0xfc] sm:$0xf]
    %v108 = vld [vmem:[#allocation5] sm:$0xf]
    %v109 = vld [vmem:[#allocation5 + $0x4] sm:$0xf]
    %v110 = vld [vmem:[#allocation5 + $0x8] sm:$0xf]
    %v111 = vld [vmem:[#allocation5 + $0xc] sm:$0xf]
    %v112 = vld [vmem:[#allocation5 + $0x10] sm:$0xf]
    %v113 = vld [vmem:[#allocation5 + $0x14] sm:$0xf]
    %v114 = vld [vmem:[#allocation5 + $0x18] sm:$0xf]
    %v115 = vld [vmem:[#allocation5 + $0x1c] sm:$0xf]
    %v116 = vld [vmem:[#allocation5 + $0x20] sm:$0xf]
    %v117 = vld [vmem:[#allocation5 + $0x24] sm:$0xf]
    %v118 = vld [vmem:[#allocation5 + $0x28] sm:$0xf]
    %v119 = vld [vmem:[#allocation5 + $0x2c] sm:$0xf]
    %v120 = vld [vmem:[#allocation5 + $0x30] sm:$0xf]
    %v121 = vld [vmem:[#allocation5 + $0x34] sm:$0xf]
    %v122 = vld [vmem:[#allocation5 + $0x38] sm:$0xf]
    %v123 = vld [vmem:[#allocation5 + $0x3c] sm:$0xf]
    %v188 = vunpack.c.l.b16 %v44
    %v189 = vunpack.c.l.b16 %v45
    %v190 = vunpack.c.l.b16 %v46
    %v191 = vunpack.c.l.b16 %v47
    %v192 = vunpack.c.l.b16 %v48
    %v193 = vunpack.c.l.b16 %v49
    %v194 = vunpack.c.l.b16 %v50
    %v195 = vunpack.c.l.b16 %v51
    %v196 = vunpack.c.l.b16 %v52
    %v197 = vunpack.c.l.b16 %v53
    %v198 = vunpack.c.l.b16 %v54
    %v199 = vunpack.c.l.b16 %v55
    %v200 = vunpack.c.l.b16 %v56
    %v201 = vunpack.c.l.b16 %v57
    %v202 = vunpack.c.l.b16 %v58
    %v203 = vunpack.c.l.b16 %v59
    %v204 = vunpack.c.l.b16 %v60
    %v205 = vunpack.c.l.b16 %v61
    %v206 = vunpack.c.l.b16 %v62
    %v207 = vunpack.c.l.b16 %v63
    %v208 = vunpack.c.l.b16 %v64
    %v209 = vunpack.c.l.b16 %v65
    %v210 = vunpack.c.l.b16 %v66
    %v211 = vunpack.c.l.b16 %v67
    %v212 = vunpack.c.l.b16 %v68
    %v213 = vunpack.c.l.b16 %v69
    %v214 = vunpack.c.l.b16 %v70
    %v215 = vunpack.c.l.b16 %v71
    %v216 = vunpack.c.l.b16 %v72
    %v217 = vunpack.c.l.b16 %v73
    %v218 = vunpack.c.l.b16 %v74
    %v219 = vunpack.c.l.b16 %v75
    %v220 = vunpack.c.l.b16 %v76
    %v221 = vunpack.c.l.b16 %v77
    %v222 = vunpack.c.l.b16 %v78
    %v223 = vunpack.c.l.b16 %v79
    %v224 = vunpack.c.l.b16 %v80
    %v225 = vunpack.c.l.b16 %v81
    %v226 = vunpack.c.l.b16 %v82
    %v227 = vunpack.c.l.b16 %v83
    %v228 = vunpack.c.l.b16 %v84
    %v229 = vunpack.c.l.b16 %v85
    %v230 = vunpack.c.l.b16 %v86
    %v231 = vunpack.c.l.b16 %v87
    %v232 = vunpack.c.l.b16 %v88
    %v233 = vunpack.c.l.b16 %v89
    %v234 = vunpack.c.l.b16 %v90
    %v235 = vunpack.c.l.b16 %v91
    %v236 = vunpack.c.l.b16 %v92
    %v237 = vunpack.c.l.b16 %v93
    %v238 = vunpack.c.l.b16 %v94
    %v239 = vunpack.c.l.b16 %v95
    %v240 = vunpack.c.l.b16 %v96
    %v241 = vunpack.c.l.b16 %v97
    %v242 = vunpack.c.l.b16 %v98
    %v243 = vunpack.c.l.b16 %v99
    %v244 = vunpack.c.l.b16 %v100
    %v245 = vunpack.c.l.b16 %v101
    %v246 = vunpack.c.l.b16 %v102
    %v247 = vunpack.c.l.b16 %v103
    %v248 = vunpack.c.l.b16 %v104
    %v249 = vunpack.c.l.b16 %v105
    %v250 = vunpack.c.l.b16 %v106
    %v251 = vunpack.c.l.b16 %v107
    %v252 = vpack.c.b16 %v189, %v188
    %v253 = vpack.c.b16 %v191, %v190
    %v254 = vpack.c.b16 %v193, %v192
    %v255 = vpack.c.b16 %v195, %v194
    %v256 = vpack.c.b16 %v197, %v196
    %v257 = vpack.c.b16 %v199, %v198
    %v258 = vpack.c.b16 %v201, %v200
    %v259 = vpack.c.b16 %v203, %v202
    %v260 = vpack.c.b16 %v205, %v204
    %v261 = vpack.c.b16 %v207, %v206
    %v262 = vpack.c.b16 %v209, %v208
    %v263 = vpack.c.b16 %v211, %v210
    %v264 = vpack.c.b16 %v213, %v212
    %v265 = vpack.c.b16 %v215, %v214
    %v266 = vpack.c.b16 %v217, %v216
    %v267 = vpack.c.b16 %v219, %v218
    %v268 = vpack.c.b16 %v221, %v220
    %v269 = vpack.c.b16 %v223, %v222
    %v270 = vpack.c.b16 %v225, %v224
    %v271 = vpack.c.b16 %v227, %v226
    %v272 = vpack.c.b16 %v229, %v228
    %v273 = vpack.c.b16 %v231, %v230
    %v274 = vpack.c.b16 %v233, %v232
    %v275 = vpack.c.b16 %v235, %v234
    %v276 = vpack.c.b16 %v237, %v236
    %v277 = vpack.c.b16 %v239, %v238
    %v278 = vpack.c.b16 %v241, %v240
    %v279 = vpack.c.b16 %v243, %v242
    %v280 = vpack.c.b16 %v245, %v244
    %v281 = vpack.c.b16 %v247, %v246
    %v282 = vpack.c.b16 %v249, %v248
    %v283 = vpack.c.b16 %v251, %v250
    %v332 = vunpack.c.l.b16 %v108
    %v333 = vunpack.c.l.b16 %v109
    %v334 = vunpack.c.l.b16 %v110
    %v335 = vunpack.c.l.b16 %v111
    %v336 = vunpack.c.l.b16 %v112
    %v337 = vunpack.c.l.b16 %v113
    %v338 = vunpack.c.l.b16 %v114
    %v339 = vunpack.c.l.b16 %v115
    %v340 = vunpack.c.l.b16 %v116
    %v341 = vunpack.c.l.b16 %v117
    %v342 = vunpack.c.l.b16 %v118
    %v343 = vunpack.c.l.b16 %v119
    %v344 = vunpack.c.l.b16 %v120
    %v345 = vunpack.c.l.b16 %v121
    %v346 = vunpack.c.l.b16 %v122
    %v347 = vunpack.c.l.b16 %v123
    %v348 = vpack.c.b16 %v333, %v332
    %v349 = vpack.c.b16 %v335, %v334
    %v350 = vpack.c.b16 %v337, %v336
    %v351 = vpack.c.b16 %v339, %v338
    %v352 = vpack.c.b16 %v341, %v340
    %v353 = vpack.c.b16 %v343, %v342
    %v354 = vpack.c.b16 %v345, %v344
    %v355 = vpack.c.b16 %v347, %v346
    %364 = vmatprep.subr.bf16.mxu0 0
    %365 = vmatpush1.bf16.msra.mxu0 %v348
    %366 = vmatprep.subr.bf16.mxu0 0
    %367 = vmatpush1.bf16.msra.mxu0 %v349
    %368 = vmatprep.subr.bf16.mxu0 0
    %369 = vmatpush1.bf16.msra.mxu0 %v350
    %370 = vmatprep.subr.bf16.mxu0 0
    %371 = vmatpush1.bf16.msra.mxu0 %v351
    %372 = vmatprep.subr.bf16.mxu0 0
    %373 = vmatpush1.bf16.msra.mxu0 %v352
    %374 = vmatprep.subr.bf16.mxu0 0
    %375 = vmatpush1.bf16.msra.mxu0 %v353
    %376 = vmatprep.subr.bf16.mxu0 0
    %377 = vmatpush1.bf16.msra.mxu0 %v354
    %378 = vmatprep.subr.bf16.mxu0 0
    %379 = vmatpush1.bf16.msra.mxu0 %v355
    %380 = vmatprep.subr.bf16.mxu0 0
    %381 = vmatpush1.bf16.msra.mxu0 0
    %382 = vmatprep.subr.bf16.mxu0 0
    %383 = vmatpush1.bf16.msra.mxu0 0
    %384 = vmatprep.subr.bf16.mxu0 0
    %385 = vmatpush1.bf16.msra.mxu0 0
    %386 = vmatprep.subr.bf16.mxu0 0
    %387 = vmatpush1.bf16.msra.mxu0 0
    %388 = vmatprep.subr.bf16.mxu0 0
    %389 = vmatpush1.bf16.msra.mxu0 0
    %390 = vmatprep.subr.bf16.mxu0 0
    %391 = vmatpush1.bf16.msra.mxu0 0
    %392 = vmatprep.subr.bf16.mxu0 0
    %393 = vmatpush1.bf16.msra.mxu0 0
    %394 = vmatprep.subr.bf16.mxu0 0
    %395 = vmatpush1.bf16.msra.mxu0 0
    %396 = vmatprep.mubr.bf16.mxu0 0
    %397 = vmatmul.mubr.bf16.gmra.mrb[0].mxu0 %v252
    %v398 = vpop.f32.mrb[0].mxu0
    %v399 = vadd.f32 0.0, %v398
    %v400 = vpop.f32.mrb[0].mxu0
    %v401 = vpop.f32.mrb[0].mxu0
    %v402 = vadd.f32 0.0, %v401
    %v403 = vpop.f32.mrb[0].mxu0
    %404 = vmatprep.mubr.bf16.mxu0 0
    %405 = vmatmul.mubr.bf16.gmra.mrb[0].mxu0 %v253
    %v406 = vpop.f32.mrb[0].mxu0
    %v407 = vadd.f32 0.0, %v406
    %v408 = vpop.f32.mrb[0].mxu0
    %v409 = vpop.f32.mrb[0].mxu0
    %v410 = vadd.f32 0.0, %v409
    %v411 = vpop.f32.mrb[0].mxu0
    %412 = vmatprep.mubr.bf16.mxu0 0
    %413 = vmatmul.mubr.bf16.gmra.mrb[0].mxu0 %v254
    %v414 = vpop.f32.mrb[0].mxu0
    %v415 = vadd.f32 0.0, %v414
    %v416 = vpop.f32.mrb[0].mxu0
    %v417 = vpop.f32.mrb[0].mxu0
    %v418 = vadd.f32 0.0, %v417
    %v419 = vpop.f32.mrb[0].mxu0
    %420 = vmatprep.mubr.bf16.mxu0 0
    %421 = vmatmul.mubr.bf16.gmra.mrb[0].mxu0 %v255
    %v422 = vpop.f32.mrb[0].mxu0
    %v423 = vadd.f32 0.0, %v422
    %v424 = vpop.f32.mrb[0].mxu0
    %v425 = vpop.f32.mrb[0].mxu0
    %v426 = vadd.f32 0.0, %v425
    %v427 = vpop.f32.mrb[0].mxu0
    %428 = vmatprep.mubr.bf16.mxu0 0
    %429 = vmatmul.mubr.bf16.gmra.mrb[0].mxu0 %v256
    %v430 = vpop.f32.mrb[0].mxu0
    %v431 = vadd.f32 0.0, %v430
    %v432 = vpop.f32.mrb[0].mxu0
    %v433 = vpop.f32.mrb[0].mxu0
    %v434 = vadd.f32 0.0, %v433
    %v435 = vpop.f32.mrb[0].mxu0
    %436 = vmatprep.mubr.bf16.mxu0 0
    %437 = vmatmul.mubr.bf16.gmra.mrb[0].mxu0 %v257
    %v438 = vpop.f32.mrb[0].mxu0
    %v439 = vadd.f32 0.0, %v438
    %v440 = vpop.f32.mrb[0].mxu0
    %v441 = vpop.f32.mrb[0].mxu0
    %v442 = vadd.f32 0.0, %v441
    %v443 = vpop.f32.mrb[0].mxu0
    %444 = vmatprep.mubr.bf16.mxu0 0
    %445 = vmatmul.mubr.bf16.gmra.mrb[0].mxu0 %v258
    %v446 = vpop.f32.mrb[0].mxu0
    %v447 = vadd.f32 0.0, %v446
    %v448 = vpop.f32.mrb[0].mxu0
    %v449 = vpop.f32.mrb[0].mxu0
    %v450 = vadd.f32 0.0, %v449
    %v451 = vpop.f32.mrb[0].mxu0
    %452 = vmatprep.mubr.bf16.mxu0 0
    %453 = vmatmul.mubr.bf16.gmra.mrb[0].mxu0 %v259
    %v454 = vpop.f32.mrb[0].mxu0
    %v455 = vadd.f32 0.0, %v454
    %v456 = vpop.f32.mrb[0].mxu0
    %v457 = vpop.f32.mrb[0].mxu0
    %v458 = vadd.f32 0.0, %v457
    %v459 = vpop.f32.mrb[0].mxu0
    %460 = vmatprep.mubr.bf16.mxu0 0
    %461 = vmatmul.mubr.bf16.gmra.mrb[0].mxu0 %v260
    %v462 = vpop.f32.mrb[0].mxu0
    %v463 = vadd.f32 0.0, %v462
    %v464 = vpop.f32.mrb[0].mxu0
    %v465 = vpop.f32.mrb[0].mxu0
    %v466 = vadd.f32 0.0, %v465
    %v467 = vpop.f32.mrb[0].mxu0
    %468 = vmatprep.mubr.bf16.mxu0 0
    %469 = vmatmul.mubr.bf16.gmra.mrb[0].mxu0 %v261
    %v470 = vpop.f32.mrb[0].mxu0
    %v471 = vadd.f32 0.0, %v470
    %v472 = vpop.f32.mrb[0].mxu0
    %v473 = vpop.f32.mrb[0].mxu0
    %v474 = vadd.f32 0.0, %v473
    %v475 = vpop.f32.mrb[0].mxu0
    %476 = vmatprep.mubr.bf16.mxu0 0
    %477 = vmatmul.mubr.bf16.gmra.mrb[0].mxu0 %v262
    %v478 = vpop.f32.mrb[0].mxu0
    %v479 = vadd.f32 0.0, %v478
    %v480 = vpop.f32.mrb[0].mxu0
    %v481 = vpop.f32.mrb[0].mxu0
    %v482 = vadd.f32 0.0, %v481
    %v483 = vpop.f32.mrb[0].mxu0
    %484 = vmatprep.mubr.bf16.mxu0 0
    %485 = vmatmul.mubr.bf16.gmra.mrb[0].mxu0 %v263
    %v486 = vpop.f32.mrb[0].mxu0
    %v487 = vadd.f32 0.0, %v486
    %v488 = vpop.f32.mrb[0].mxu0
    %v489 = vpop.f32.mrb[0].mxu0
    %v490 = vadd.f32 0.0, %v489
    %v491 = vpop.f32.mrb[0].mxu0
    %492 = vmatprep.mubr.bf16.mxu0 0
    %493 = vmatmul.mubr.bf16.gmra.mrb[0].mxu0 %v264
    %v494 = vpop.f32.mrb[0].mxu0
    %v495 = vadd.f32 0.0, %v494
    %v496 = vpop.f32.mrb[0].mxu0
    %v497 = vpop.f32.mrb[0].mxu0
    %v498 = vadd.f32 0.0, %v497
    %v499 = vpop.f32.mrb[0].mxu0
    %500 = vmatprep.mubr.bf16.mxu0 0
    %501 = vmatmul.mubr.bf16.gmra.mrb[0].mxu0 %v265
    %v502 = vpop.f32.mrb[0].mxu0
    %v503 = vadd.f32 0.0, %v502
    %v504 = vpop.f32.mrb[0].mxu0
    %v505 = vpop.f32.mrb[0].mxu0
    %v506 = vadd.f32 0.0, %v505
    %v507 = vpop.f32.mrb[0].mxu0
    %508 = vmatprep.mubr.bf16.mxu0 0
    %509 = vmatmul.mubr.bf16.gmra.mrb[0].mxu0 %v266
    %v510 = vpop.f32.mrb[0].mxu0
    %v511 = vadd.f32 0.0, %v510
    %v512 = vpop.f32.mrb[0].mxu0
    %v513 = vpop.f32.mrb[0].mxu0
    %v514 = vadd.f32 0.0, %v513
    %v515 = vpop.f32.mrb[0].mxu0
    %516 = vmatprep.mubr.bf16.mxu0 0
    %517 = vmatmul.mubr.bf16.gmra.mrb[0].mxu0 %v267
    %v518 = vpop.f32.mrb[0].mxu0
    %v519 = vadd.f32 0.0, %v518
    %v520 = vpop.f32.mrb[0].mxu0
    %v521 = vpop.f32.mrb[0].mxu0
    %v522 = vadd.f32 0.0, %v521
    %v523 = vpop.f32.mrb[0].mxu0
    %524 = vmatprep.mubr.bf16.mxu0 0
    %525 = vmatmul.mubr.bf16.gmra.mrb[0].mxu0 %v268
    %v526 = vpop.f32.mrb[0].mxu0
    %v527 = vadd.f32 0.0, %v526
    %v528 = vpop.f32.mrb[0].mxu0
    %v529 = vpop.f32.mrb[0].mxu0
    %v530 = vadd.f32 0.0, %v529
    %v531 = vpop.f32.mrb[0].mxu0
    %532 = vmatprep.mubr.bf16.mxu0 0
    %533 = vmatmul.mubr.bf16.gmra.mrb[0].mxu0 %v269
    %v534 = vpop.f32.mrb[0].mxu0
    %v535 = vadd.f32 0.0, %v534
    %v536 = vpop.f32.mrb[0].mxu0
    %v537 = vpop.f32.mrb[0].mxu0
    %v538 = vadd.f32 0.0, %v537
    %v539 = vpop.f32.mrb[0].mxu0
    %540 = vmatprep.mubr.bf16.mxu0 0
    %541 = vmatmul.mubr.bf16.gmra.mrb[0].mxu0 %v270
    %v542 = vpop.f32.mrb[0].mxu0
    %v543 = vadd.f32 0.0, %v542
    %v544 = vpop.f32.mrb[0].mxu0
    %v545 = vpop.f32.mrb[0].mxu0
    %v546 = vadd.f32 0.0, %v545
    %v547 = vpop.f32.mrb[0].mxu0
    %548 = vmatprep.mubr.bf16.mxu0 0
    %549 = vmatmul.mubr.bf16.gmra.mrb[0].mxu0 %v271
    %v550 = vpop.f32.mrb[0].mxu0
    %v551 = vadd.f32 0.0, %v550
    %v552 = vpop.f32.mrb[0].mxu0
    %v553 = vpop.f32.mrb[0].mxu0
    %v554 = vadd.f32 0.0, %v553
    %v555 = vpop.f32.mrb[0].mxu0
    %556 = vmatprep.mubr.bf16.mxu0 0
    %557 = vmatmul.mubr.bf16.gmra.mrb[0].mxu0 %v272
    %v558 = vpop.f32.mrb[0].mxu0
    %v559 = vadd.f32 0.0, %v558
    %v560 = vpop.f32.mrb[0].mxu0
    %v561 = vpop.f32.mrb[0].mxu0
    %v562 = vadd.f32 0.0, %v561
    %v563 = vpop.f32.mrb[0].mxu0
    %564 = vmatprep.mubr.bf16.mxu0 0
    %565 = vmatmul.mubr.bf16.gmra.mrb[0].mxu0 %v273
    %v566 = vpop.f32.mrb[0].mxu0
    %v567 = vadd.f32 0.0, %v566
    %v568 = vpop.f32.mrb[0].mxu0
    %v569 = vpop.f32.mrb[0].mxu0
    %v570 = vadd.f32 0.0, %v569
    %v571 = vpop.f32.mrb[0].mxu0
    %572 = vmatprep.mubr.bf16.mxu0 0
    %573 = vmatmul.mubr.bf16.gmra.mrb[0].mxu0 %v274
    %v574 = vpop.f32.mrb[0].mxu0
    %v575 = vadd.f32 0.0, %v574
    %v576 = vpop.f32.mrb[0].mxu0
    %v577 = vpop.f32.mrb[0].mxu0
    %v578 = vadd.f32 0.0, %v577
    %v579 = vpop.f32.mrb[0].mxu0
    %580 = vmatprep.mubr.bf16.mxu0 0
    %581 = vmatmul.mubr.bf16.gmra.mrb[0].mxu0 %v275
    %v582 = vpop.f32.mrb[0].mxu0
    %v583 = vadd.f32 0.0, %v582
    %v584 = vpop.f32.mrb[0].mxu0
    %v585 = vpop.f32.mrb[0].mxu0
    %v586 = vadd.f32 0.0, %v585
    %v587 = vpop.f32.mrb[0].mxu0
    %588 = vmatprep.mubr.bf16.mxu0 0
    %589 = vmatmul.mubr.bf16.gmra.mrb[0].mxu0 %v276
    %v590 = vpop.f32.mrb[0].mxu0
    %v591 = vadd.f32 0.0, %v590
    %v592 = vpop.f32.mrb[0].mxu0
    %v593 = vpop.f32.mrb[0].mxu0
    %v594 = vadd.f32 0.0, %v593
    %v595 = vpop.f32.mrb[0].mxu0
    %596 = vmatprep.mubr.bf16.mxu0 0
    %597 = vmatmul.mubr.bf16.gmra.mrb[0].mxu0 %v277
    %v598 = vpop.f32.mrb[0].mxu0
    %v599 = vadd.f32 0.0, %v598
    %v600 = vpop.f32.mrb[0].mxu0
    %v601 = vpop.f32.mrb[0].mxu0
    %v602 = vadd.f32 0.0, %v601
    %v603 = vpop.f32.mrb[0].mxu0
    %604 = vmatprep.mubr.bf16.mxu0 0
    %605 = vmatmul.mubr.bf16.gmra.mrb[0].mxu0 %v278
    %v606 = vpop.f32.mrb[0].mxu0
    %v607 = vadd.f32 0.0, %v606
    %v608 = vpop.f32.mrb[0].mxu0
    %v609 = vpop.f32.mrb[0].mxu0
    %v610 = vadd.f32 0.0, %v609
    %v611 = vpop.f32.mrb[0].mxu0
    %612 = vmatprep.mubr.bf16.mxu0 0
    %613 = vmatmul.mubr.bf16.gmra.mrb[0].mxu0 %v279
    %v614 = vpop.f32.mrb[0].mxu0
    %v615 = vadd.f32 0.0, %v614
    %v616 = vpop.f32.mrb[0].mxu0
    %v617 = vpop.f32.mrb[0].mxu0
    %v618 = vadd.f32 0.0, %v617
    %v619 = vpop.f32.mrb[0].mxu0
    %620 = vmatprep.mubr.bf16.mxu0 0
    %621 = vmatmul.mubr.bf16.gmra.mrb[0].mxu0 %v280
    %v622 = vpop.f32.mrb[0].mxu0
    %v623 = vadd.f32 0.0, %v622
    %v624 = vpop.f32.mrb[0].mxu0
    %v625 = vpop.f32.mrb[0].mxu0
    %v626 = vadd.f32 0.0, %v625
    %v627 = vpop.f32.mrb[0].mxu0
    %628 = vmatprep.mubr.bf16.mxu0 0
    %629 = vmatmul.mubr.bf16.gmra.mrb[0].mxu0 %v281
    %v630 = vpop.f32.mrb[0].mxu0
    %v631 = vadd.f32 0.0, %v630
    %v632 = vpop.f32.mrb[0].mxu0
    %v633 = vpop.f32.mrb[0].mxu0
    %v634 = vadd.f32 0.0, %v633
    %v635 = vpop.f32.mrb[0].mxu0
    %636 = vmatprep.mubr.bf16.mxu0 0
    %637 = vmatmul.mubr.bf16.gmra.mrb[0].mxu0 %v282
    %v638 = vpop.f32.mrb[0].mxu0
    %v639 = vadd.f32 0.0, %v638
    %v640 = vpop.f32.mrb[0].mxu0
    %v641 = vpop.f32.mrb[0].mxu0
    %v642 = vadd.f32 0.0, %v641
    %v643 = vpop.f32.mrb[0].mxu0
    %644 = vmatprep.mubr.bf16.mxu0 0
    %645 = vmatmul.mubr.bf16.gmra.mrb[0].mxu0 %v283
    %v646 = vpop.f32.mrb[0].mxu0
    %v647 = vadd.f32 0.0, %v646
    %v648 = vpop.f32.mrb[0].mxu0
    %v649 = vpop.f32.mrb[0].mxu0
    %v650 = vadd.f32 0.0, %v649
    %v651 = vpop.f32.mrb[0].mxu0
    %652 = vdwg.mxu0
    %v653 = vpack.c.bf16 %v402, %v399
    %v654 = vpack.c.bf16 %v410, %v407
    %v655 = vpack.c.bf16 %v418, %v415
    %v656 = vpack.c.bf16 %v426, %v423
    %v657 = vpack.c.bf16 %v434, %v431
    %v658 = vpack.c.bf16 %v442, %v439
    %v659 = vpack.c.bf16 %v450, %v447
    %v660 = vpack.c.bf16 %v458, %v455
    %v661 = vpack.c.bf16 %v466, %v463
    %v662 = vpack.c.bf16 %v474, %v471
    %v663 = vpack.c.bf16 %v482, %v479
    %v664 = vpack.c.bf16 %v490, %v487
    %v665 = vpack.c.bf16 %v498, %v495
    %v666 = vpack.c.bf16 %v506, %v503
    %v667 = vpack.c.bf16 %v514, %v511
    %v668 = vpack.c.bf16 %v522, %v519
    %v669 = vpack.c.bf16 %v530, %v527
    %v670 = vpack.c.bf16 %v538, %v535
    %v671 = vpack.c.bf16 %v546, %v543
    %v672 = vpack.c.bf16 %v554, %v551
    %v673 = vpack.c.bf16 %v562, %v559
    %v674 = vpack.c.bf16 %v570, %v567
    %v675 = vpack.c.bf16 %v578, %v575
    %v676 = vpack.c.bf16 %v586, %v583
    %v677 = vpack.c.bf16 %v594, %v591
    %v678 = vpack.c.bf16 %v602, %v599
    %v679 = vpack.c.bf16 %v610, %v607
    %v680 = vpack.c.bf16 %v618, %v615
    %v681 = vpack.c.bf16 %v626, %v623
    %v682 = vpack.c.bf16 %v634, %v631
    %v683 = vpack.c.bf16 %v642, %v639
    %v684 = vpack.c.bf16 %v650, %v647
    %v717 = vunpack.c.l.b16 %v653
    %v718 = vunpack.c.h.b16 %v653
    %v719 = vunpack.c.l.b16 %v654
    %v720 = vunpack.c.h.b16 %v654
    %v721 = vunpack.c.l.b16 %v655
    %v722 = vunpack.c.h.b16 %v655
    %v723 = vunpack.c.l.b16 %v656
    %v724 = vunpack.c.h.b16 %v656
    %v725 = vunpack.c.l.b16 %v657
    %v726 = vunpack.c.h.b16 %v657
    %v727 = vunpack.c.l.b16 %v658
    %v728 = vunpack.c.h.b16 %v658
    %v729 = vunpack.c.l.b16 %v659
    %v730 = vunpack.c.h.b16 %v659
    %v731 = vunpack.c.l.b16 %v660
    %v732 = vunpack.c.h.b16 %v660
    %v733 = vunpack.c.l.b16 %v661
    %v734 = vunpack.c.h.b16 %v661
    %v735 = vunpack.c.l.b16 %v662
    %v736 = vunpack.c.h.b16 %v662
    %v737 = vunpack.c.l.b16 %v663
    %v738 = vunpack.c.h.b16 %v663
    %v739 = vunpack.c.l.b16 %v664
    %v740 = vunpack.c.h.b16 %v664
    %v741 = vunpack.c.l.b16 %v665
    %v742 = vunpack.c.h.b16 %v665
    %v743 = vunpack.c.l.b16 %v666
    %v744 = vunpack.c.h.b16 %v666
    %v745 = vunpack.c.l.b16 %v667
    %v746 = vunpack.c.h.b16 %v667
    %v747 = vunpack.c.l.b16 %v668
    %v748 = vunpack.c.h.b16 %v668
    %v749 = vunpack.c.l.b16 %v669
    %v750 = vunpack.c.h.b16 %v669
    %v751 = vunpack.c.l.b16 %v670
    %v752 = vunpack.c.h.b16 %v670
    %v753 = vunpack.c.l.b16 %v671
    %v754 = vunpack.c.h.b16 %v671
    %v755 = vunpack.c.l.b16 %v672
    %v756 = vunpack.c.h.b16 %v672
    %v757 = vunpack.c.l.b16 %v673
    %v758 = vunpack.c.h.b16 %v673
    %v759 = vunpack.c.l.b16 %v674
    %v760 = vunpack.c.h.b16 %v674
    %v761 = vunpack.c.l.b16 %v675
    %v762 = vunpack.c.h.b16 %v675
    %v763 = vunpack.c.l.b16 %v676
    %v764 = vunpack.c.h.b16 %v676
    %v765 = vunpack.c.l.b16 %v677
    %v766 = vunpack.c.h.b16 %v677
    %v767 = vunpack.c.l.b16 %v678
    %v768 = vunpack.c.h.b16 %v678
    %v769 = vunpack.c.l.b16 %v679
    %v770 = vunpack.c.h.b16 %v679
    %v771 = vunpack.c.l.b16 %v680
    %v772 = vunpack.c.h.b16 %v680
    %v773 = vunpack.c.l.b16 %v681
    %v774 = vunpack.c.h.b16 %v681
    %v775 = vunpack.c.l.b16 %v682
    %v776 = vunpack.c.h.b16 %v682
    %v777 = vunpack.c.l.b16 %v683
    %v778 = vunpack.c.h.b16 %v683
    %v779 = vunpack.c.l.b16 %v684
    %v780 = vunpack.c.h.b16 %v684
    %v781 = vpack.c.b16 %v717, %v717
    %v782 = vpack.c.b16 %v718, %v718
    %v783 = vpack.c.b16 %v719, %v719
    %v784 = vpack.c.b16 %v720, %v720
    %v785 = vpack.c.b16 %v721, %v721
    %v786 = vpack.c.b16 %v722, %v722
    %v787 = vpack.c.b16 %v723, %v723
    %v788 = vpack.c.b16 %v724, %v724
    %v789 = vpack.c.b16 %v725, %v725
    %v790 = vpack.c.b16 %v726, %v726
    %v791 = vpack.c.b16 %v727, %v727
    %v792 = vpack.c.b16 %v728, %v728
    %v793 = vpack.c.b16 %v729, %v729
    %v794 = vpack.c.b16 %v730, %v730
    %v795 = vpack.c.b16 %v731, %v731
    %v796 = vpack.c.b16 %v732, %v732
    %v797 = vpack.c.b16 %v733, %v733
    %v798 = vpack.c.b16 %v734, %v734
    %v799 = vpack.c.b16 %v735, %v735
    %v800 = vpack.c.b16 %v736, %v736
    %v801 = vpack.c.b16 %v737, %v737
    %v802 = vpack.c.b16 %v738, %v738
    %v803 = vpack.c.b16 %v739, %v739
    %v804 = vpack.c.b16 %v740, %v740
    %v805 = vpack.c.b16 %v741, %v741
    %v806 = vpack.c.b16 %v742, %v742
    %v807 = vpack.c.b16 %v743, %v743
    %v808 = vpack.c.b16 %v744, %v744
    %v809 = vpack.c.b16 %v745, %v745
    %v810 = vpack.c.b16 %v746, %v746
    %v811 = vpack.c.b16 %v747, %v747
    %v812 = vpack.c.b16 %v748, %v748
    %v813 = vpack.c.b16 %v749, %v749
    %v814 = vpack.c.b16 %v750, %v750
    %v815 = vpack.c.b16 %v751, %v751
    %v816 = vpack.c.b16 %v752, %v752
    %v817 = vpack.c.b16 %v753, %v753
    %v818 = vpack.c.b16 %v754, %v754
    %v819 = vpack.c.b16 %v755, %v755
    %v820 = vpack.c.b16 %v756, %v756
    %v821 = vpack.c.b16 %v757, %v757
    %v822 = vpack.c.b16 %v758, %v758
    %v823 = vpack.c.b16 %v759, %v759
    %v824 = vpack.c.b16 %v760, %v760
    %v825 = vpack.c.b16 %v761, %v761
    %v826 = vpack.c.b16 %v762, %v762
    %v827 = vpack.c.b16 %v763, %v763
    %v828 = vpack.c.b16 %v764, %v764
    %v829 = vpack.c.b16 %v765, %v765
    %v830 = vpack.c.b16 %v766, %v766
    %v831 = vpack.c.b16 %v767, %v767
    %v832 = vpack.c.b16 %v768, %v768
    %v833 = vpack.c.b16 %v769, %v769
    %v834 = vpack.c.b16 %v770, %v770
    %v835 = vpack.c.b16 %v771, %v771
    %v836 = vpack.c.b16 %v772, %v772
    %v837 = vpack.c.b16 %v773, %v773
    %v838 = vpack.c.b16 %v774, %v774
    %v839 = vpack.c.b16 %v775, %v775
    %v840 = vpack.c.b16 %v776, %v776
    %v841 = vpack.c.b16 %v777, %v777
    %v842 = vpack.c.b16 %v778, %v778
    %v843 = vpack.c.b16 %v779, %v779
    %v844 = vpack.c.b16 %v780, %v780
    %909 = vst [vmem:[#allocation7] sm:$0xf] %v781
    %910 = vst [vmem:[#allocation7 + $0x4] sm:$0xf] %v782
    %911 = vst [vmem:[#allocation7 + $0x8] sm:$0xf] %v783
    %912 = vst [vmem:[#allocation7 + $0xc] sm:$0xf] %v784
    %913 = vst [vmem:[#allocation7 + $0x10] sm:$0xf] %v785
    %914 = vst [vmem:[#allocation7 + $0x14] sm:$0xf] %v786
    %915 = vst [vmem:[#allocation7 + $0x18] sm:$0xf] %v787
    %916 = vst [vmem:[#allocation7 + $0x1c] sm:$0xf] %v788
    %917 = vst [vmem:[#allocation7 + $0x20] sm:$0xf] %v789
    %918 = vst [vmem:[#allocation7 + $0x24] sm:$0xf] %v790
    %919 = vst [vmem:[#allocation7 + $0x28] sm:$0xf] %v791
    %920 = vst [vmem:[#allocation7 + $0x2c] sm:$0xf] %v792
    %921 = vst [vmem:[#allocation7 + $0x30] sm:$0xf] %v793
    %922 = vst [vmem:[#allocation7 + $0x34] sm:$0xf] %v794
    %923 = vst [vmem:[#allocation7 + $0x38] sm:$0xf] %v795
    %924 = vst [vmem:[#allocation7 + $0x3c] sm:$0xf] %v796
    %925 = vst [vmem:[#allocation7 + $0x40] sm:$0xf] %v797
    %926 = vst [vmem:[#allocation7 + $0x44] sm:$0xf] %v798
    %927 = vst [vmem:[#allocation7 + $0x48] sm:$0xf] %v799
    %928 = vst [vmem:[#allocation7 + $0x4c] sm:$0xf] %v800
    %929 = vst [vmem:[#allocation7 + $0x50] sm:$0xf] %v801
    %930 = vst [vmem:[#allocation7 + $0x54] sm:$0xf] %v802
    %931 = vst [vmem:[#allocation7 + $0x58] sm:$0xf] %v803
    %932 = vst [vmem:[#allocation7 + $0x5c] sm:$0xf] %v804
    %933 = vst [vmem:[#allocation7 + $0x60] sm:$0xf] %v805
    %934 = vst [vmem:[#allocation7 + $0x64] sm:$0xf] %v806
    %935 = vst [vmem:[#allocation7 + $0x68] sm:$0xf] %v807
    %936 = vst [vmem:[#allocation7 + $0x6c] sm:$0xf] %v808
    %937 = vst [vmem:[#allocation7 + $0x70] sm:$0xf] %v809
    %938 = vst [vmem:[#allocation7 + $0x74] sm:$0xf] %v810
    %939 = vst [vmem:[#allocation7 + $0x78] sm:$0xf] %v811
    %940 = vst [vmem:[#allocation7 + $0x7c] sm:$0xf] %v812
    %941 = vst [vmem:[#allocation7 + $0x80] sm:$0xf] %v813
    %942 = vst [vmem:[#allocation7 + $0x84] sm:$0xf] %v814
    %943 = vst [vmem:[#allocation7 + $0x88] sm:$0xf] %v815
    %944 = vst [vmem:[#allocation7 + $0x8c] sm:$0xf] %v816
    %945 = vst [vmem:[#allocation7 + $0x90] sm:$0xf] %v817
    %946 = vst [vmem:[#allocation7 + $0x94] sm:$0xf] %v818
    %947 = vst [vmem:[#allocation7 + $0x98] sm:$0xf] %v819
    %948 = vst [vmem:[#allocation7 + $0x9c] sm:$0xf] %v820
    %949 = vst [vmem:[#allocation7 + $0xa0] sm:$0xf] %v821
    %950 = vst [vmem:[#allocation7 + $0xa4] sm:$0xf] %v822
    %951 = vst [vmem:[#allocation7 + $0xa8] sm:$0xf] %v823
    %952 = vst [vmem:[#allocation7 + $0xac] sm:$0xf] %v824
    %953 = vst [vmem:[#allocation7 + $0xb0] sm:$0xf] %v825
    %954 = vst [vmem:[#allocation7 + $0xb4] sm:$0xf] %v826
    %955 = vst [vmem:[#allocation7 + $0xb8] sm:$0xf] %v827
    %956 = vst [vmem:[#allocation7 + $0xbc] sm:$0xf] %v828
    %957 = vst [vmem:[#allocation7 + $0xc0] sm:$0xf] %v829
    %958 = vst [vmem:[#allocation7 + $0xc4] sm:$0xf] %v830
    %959 = vst [vmem:[#allocation7 + $0xc8] sm:$0xf] %v831
    %960 = vst [vmem:[#allocation7 + $0xcc] sm:$0xf] %v832
    %961 = vst [vmem:[#allocation7 + $0xd0] sm:$0xf] %v833
    %962 = vst [vmem:[#allocation7 + $0xd4] sm:$0xf] %v834
    %963 = vst [vmem:[#allocation7 + $0xd8] sm:$0xf] %v835
    %964 = vst [vmem:[#allocation7 + $0xdc] sm:$0xf] %v836
    %965 = vst [vmem:[#allocation7 + $0xe0] sm:$0xf] %v837
    %966 = vst [vmem:[#allocation7 + $0xe4] sm:$0xf] %v838
    %967 = vst [vmem:[#allocation7 + $0xe8] sm:$0xf] %v839
    %968 = vst [vmem:[#allocation7 + $0xec] sm:$0xf] %v840
    %969 = vst [vmem:[#allocation7 + $0xf0] sm:$0xf] %v841
    %970 = vst [vmem:[#allocation7 + $0xf4] sm:$0xf] %v842
    %971 = vst [vmem:[#allocation7 + $0xf8] sm:$0xf] %v843
    %972 = vst [vmem:[#allocation7 + $0xfc] sm:$0xf] %v844
    %v973 = vunpack.c.l.bf16 %v653
    %v974 = vunpack.c.h.bf16 %v653
    %v975 = vunpack.c.l.bf16 %v654
    %v976 = vunpack.c.h.bf16 %v654
    %v977 = vunpack.c.l.bf16 %v655
    %v978 = vunpack.c.h.bf16 %v655
    %v979 = vunpack.c.l.bf16 %v656
    %v980 = vunpack.c.h.bf16 %v656
    %v981 = vunpack.c.l.bf16 %v657
    %v982 = vunpack.c.h.bf16 %v657
    %v983 = vunpack.c.l.bf16 %v658
    %v984 = vunpack.c.h.bf16 %v658
    %v985 = vunpack.c.l.bf16 %v659
    %v986 = vunpack.c.h.bf16 %v659
    %v987 = vunpack.c.l.bf16 %v660
    %v988 = vunpack.c.h.bf16 %v660
    %v989 = vunpack.c.l.bf16 %v661
    %v990 = vunpack.c.h.bf16 %v661
    %v991 = vunpack.c.l.bf16 %v662
    %v992 = vunpack.c.h.bf16 %v662
    %v993 = vunpack.c.l.bf16 %v663
    %v994 = vunpack.c.h.bf16 %v663
    %v995 = vunpack.c.l.bf16 %v664
    %v996 = vunpack.c.h.bf16 %v664
    %v997 = vunpack.c.l.bf16 %v665
    %v998 = vunpack.c.h.bf16 %v665
    %v999 = vunpack.c.l.bf16 %v666
    %v1000 = vunpack.c.h.bf16 %v666
    %v1001 = vunpack.c.l.bf16 %v667
    %v1002 = vunpack.c.h.bf16 %v667
    %v1003 = vunpack.c.l.bf16 %v668
    %v1004 = vunpack.c.h.bf16 %v668
    %v1005 = vunpack.c.l.bf16 %v669
    %v1006 = vunpack.c.h.bf16 %v669
    %v1007 = vunpack.c.l.bf16 %v670
    %v1008 = vunpack.c.h.bf16 %v670
    %v1009 = vunpack.c.l.bf16 %v671
    %v1010 = vunpack.c.h.bf16 %v671
    %v1011 = vunpack.c.l.bf16 %v672
    %v1012 = vunpack.c.h.bf16 %v672
    %v1013 = vunpack.c.l.bf16 %v673
    %v1014 = vunpack.c.h.bf16 %v673
    %v1015 = vunpack.c.l.bf16 %v674
    %v1016 = vunpack.c.h.bf16 %v674
    %v1017 = vunpack.c.l.bf16 %v675
    %v1018 = vunpack.c.h.bf16 %v675
    %v1019 = vunpack.c.l.bf16 %v676
    %v1020 = vunpack.c.h.bf16 %v676
    %v1021 = vunpack.c.l.bf16 %v677
    %v1022 = vunpack.c.h.bf16 %v677
    %v1023 = vunpack.c.l.bf16 %v678
    %v1024 = vunpack.c.h.bf16 %v678
    %v1025 = vunpack.c.l.bf16 %v679
    %v1026 = vunpack.c.h.bf16 %v679
    %v1027 = vunpack.c.l.bf16 %v680
    %v1028 = vunpack.c.h.bf16 %v680
    %v1029 = vunpack.c.l.bf16 %v681
    %v1030 = vunpack.c.h.bf16 %v681
    %v1031 = vunpack.c.l.bf16 %v682
    %v1032 = vunpack.c.h.bf16 %v682
    %v1033 = vunpack.c.l.bf16 %v683
    %v1034 = vunpack.c.h.bf16 %v683
    %v1035 = vunpack.c.l.bf16 %v684
    %v1036 = vunpack.c.h.bf16 %v684
    %v1037 = vadd.f32 %v973, %v974
    %v1038 = vadd.f32 %v1037, %v975
    %v1039 = vadd.f32 %v1038, %v976
    %v1040 = vadd.f32 %v1039, %v977
    %v1041 = vadd.f32 %v1040, %v978
    %v1042 = vadd.f32 %v1041, %v979
    %v1043 = vadd.f32 %v1042, %v980
    %v1044 = vadd.f32 %v1043, %v981
    %v1045 = vadd.f32 %v1044, %v982
    %v1046 = vadd.f32 %v1045, %v983
    %v1047 = vadd.f32 %v1046, %v984
    %v1048 = vadd.f32 %v1047, %v985
    %v1049 = vadd.f32 %v1048, %v986
    %v1050 = vadd.f32 %v1049, %v987
    %v1051 = vadd.f32 %v1050, %v988
    %v1052 = vadd.f32 %v1051, %v989
    %v1053 = vadd.f32 %v1052, %v990
    %v1054 = vadd.f32 %v1053, %v991
    %v1055 = vadd.f32 %v1054, %v992
    %v1056 = vadd.f32 %v1055, %v993
    %v1057 = vadd.f32 %v1056, %v994
    %v1058 = vadd.f32 %v1057, %v995
    %v1059 = vadd.f32 %v1058, %v996
    %v1060 = vadd.f32 %v1059, %v997
    %v1061 = vadd.f32 %v1060, %v998
    %v1062 = vadd.f32 %v1061, %v999
    %v1063 = vadd.f32 %v1062, %v1000
    %v1064 = vadd.f32 %v1063, %v1001
    %v1065 = vadd.f32 %v1064, %v1002
    %v1066 = vadd.f32 %v1065, %v1003
    %v1067 = vadd.f32 %v1066, %v1004
    %v1068 = vadd.f32 %v1067, %v1005
    %v1069 = vadd.f32 %v1068, %v1006
    %v1070 = vadd.f32 %v1069, %v1007
    %v1071 = vadd.f32 %v1070, %v1008
    %v1072 = vadd.f32 %v1071, %v1009
    %v1073 = vadd.f32 %v1072, %v1010
    %v1074 = vadd.f32 %v1073, %v1011
    %v1075 = vadd.f32 %v1074, %v1012
    %v1076 = vadd.f32 %v1075, %v1013
    %v1077 = vadd.f32 %v1076, %v1014
    %v1078 = vadd.f32 %v1077, %v1015
    %v1079 = vadd.f32 %v1078, %v1016
    %v1080 = vadd.f32 %v1079, %v1017
    %v1081 = vadd.f32 %v1080, %v1018
    %v1082 = vadd.f32 %v1081, %v1019
    %v1083 = vadd.f32 %v1082, %v1020
    %v1084 = vadd.f32 %v1083, %v1021
    %v1085 = vadd.f32 %v1084, %v1022
    %v1086 = vadd.f32 %v1085, %v1023
    %v1087 = vadd.f32 %v1086, %v1024
    %v1088 = vadd.f32 %v1087, %v1025
    %v1089 = vadd.f32 %v1088, %v1026
    %v1090 = vadd.f32 %v1089, %v1027
    %v1091 = vadd.f32 %v1090, %v1028
    %v1092 = vadd.f32 %v1091, %v1029
    %v1093 = vadd.f32 %v1092, %v1030
    %v1094 = vadd.f32 %v1093, %v1031
    %v1095 = vadd.f32 %v1094, %v1032
    %v1096 = vadd.f32 %v1095, %v1033
    %v1097 = vadd.f32 %v1096, %v1034
    %v1098 = vadd.f32 %v1097, %v1035
    %v1099 = vadd.f32 %v1098, %v1036
    %v1100 = vrot.slane %v1099, 4
    %v1101 = vadd.f32 %v1099, %v1100
    %v1102 = vrot.slane %v1101, 2
    %v1103 = vadd.f32 %v1101, %v1102
    %v1104 = vrot.slane %v1103, 1
    %v1105 = vadd.f32 %v1103, %v1104
    %v1106 = vmul.f32 %v973, %v973
    %v1107 = vmul.f32 %v974, %v974
    %v1108 = vmul.f32 %v975, %v975
    %v1109 = vmul.f32 %v976, %v976
    %v1110 = vmul.f32 %v977, %v977
    %v1111 = vmul.f32 %v978, %v978
    %v1112 = vmul.f32 %v979, %v979
    %v1113 = vmul.f32 %v980, %v980
    %v1114 = vmul.f32 %v981, %v981
    %v1115 = vmul.f32 %v982, %v982
    %v1116 = vmul.f32 %v983, %v983
    %v1117 = vmul.f32 %v984, %v984
    %v1118 = vmul.f32 %v985, %v985
    %v1119 = vmul.f32 %v986, %v986
    %v1120 = vmul.f32 %v987, %v987
    %v1121 = vmul.f32 %v988, %v988
    %v1122 = vmul.f32 %v989, %v989
    %v1123 = vmul.f32 %v990, %v990
    %v1124 = vmul.f32 %v991, %v991
    %v1125 = vmul.f32 %v992, %v992
    %v1126 = vmul.f32 %v993, %v993
    %v1127 = vmul.f32 %v994, %v994
    %v1128 = vmul.f32 %v995, %v995
    %v1129 = vmul.f32 %v996, %v996
    %v1130 = vmul.f32 %v997, %v997
    %v1131 = vmul.f32 %v998, %v998
    %v1132 = vmul.f32 %v999, %v999
    %v1133 = vmul.f32 %v1000, %v1000
    %v1134 = vmul.f32 %v1001, %v1001
    %v1135 = vmul.f32 %v1002, %v1002
    %v1136 = vmul.f32 %v1003, %v1003
    %v1137 = vmul.f32 %v1004, %v1004
    %v1138 = vmul.f32 %v1005, %v1005
    %v1139 = vmul.f32 %v1006, %v1006
    %v1140 = vmul.f32 %v1007, %v1007
    %v1141 = vmul.f32 %v1008, %v1008
    %v1142 = vmul.f32 %v1009, %v1009
    %v1143 = vmul.f32 %v1010, %v1010
    %v1144 = vmul.f32 %v1011, %v1011
    %v1145 = vmul.f32 %v1012, %v1012
    %v1146 = vmul.f32 %v1013, %v1013
    %v1147 = vmul.f32 %v1014, %v1014
    %v1148 = vmul.f32 %v1015, %v1015
    %v1149 = vmul.f32 %v1016, %v1016
    %v1150 = vmul.f32 %v1017, %v1017
    %v1151 = vmul.f32 %v1018, %v1018
    %v1152 = vmul.f32 %v1019, %v1019
    %v1153 = vmul.f32 %v1020, %v1020
    %v1154 = vmul.f32 %v1021, %v1021
    %v1155 = vmul.f32 %v1022, %v1022
    %v1156 = vmul.f32 %v1023, %v1023
    %v1157 = vmul.f32 %v1024, %v1024
    %v1158 = vmul.f32 %v1025, %v1025
    %v1159 = vmul.f32 %v1026, %v1026
    %v1160 = vmul.f32 %v1027, %v1027
    %v1161 = vmul.f32 %v1028, %v1028
    %v1162 = vmul.f32 %v1029, %v1029
    %v1163 = vmul.f32 %v1030, %v1030
    %v1164 = vmul.f32 %v1031, %v1031
    %v1165 = vmul.f32 %v1032, %v1032
    %v1166 = vmul.f32 %v1033, %v1033
    %v1167 = vmul.f32 %v1034, %v1034
    %v1168 = vmul.f32 %v1035, %v1035
    %v1169 = vmul.f32 %v1036, %v1036
    %v1170 = vadd.f32 %v1106, %v1107
    %v1171 = vadd.f32 %v1170, %v1108
    %v1172 = vadd.f32 %v1171, %v1109
    %v1173 = vadd.f32 %v1172, %v1110
    %v1174 = vadd.f32 %v1173, %v1111
    %v1175 = vadd.f32 %v1174, %v1112
    %v1176 = vadd.f32 %v1175, %v1113
    %v1177 = vadd.f32 %v1176, %v1114
    %v1178 = vadd.f32 %v1177, %v1115
    %v1179 = vadd.f32 %v1178, %v1116
    %v1180 = vadd.f32 %v1179, %v1117
    %v1181 = vadd.f32 %v1180, %v1118
    %v1182 = vadd.f32 %v1181, %v1119
    %v1183 = vadd.f32 %v1182, %v1120
    %v1184 = vadd.f32 %v1183, %v1121
    %v1185 = vadd.f32 %v1184, %v1122
    %v1186 = vadd.f32 %v1185, %v1123
    %v1187 = vadd.f32 %v1186, %v1124
    %v1188 = vadd.f32 %v1187, %v1125
    %v1189 = vadd.f32 %v1188, %v1126
    %v1190 = vadd.f32 %v1189, %v1127
    %v1191 = vadd.f32 %v1190, %v1128
    %v1192 = vadd.f32 %v1191, %v1129
    %v1193 = vadd.f32 %v1192, %v1130
    %v1194 = vadd.f32 %v1193, %v1131
    %v1195 = vadd.f32 %v1194, %v1132
    %v1196 = vadd.f32 %v1195, %v1133
    %v1197 = vadd.f32 %v1196, %v1134
    %v1198 = vadd.f32 %v1197, %v1135
    %v1199 = vadd.f32 %v1198, %v1136
    %v1200 = vadd.f32 %v1199, %v1137
    %v1201 = vadd.f32 %v1200, %v1138
    %v1202 = vadd.f32 %v1201, %v1139
    %v1203 = vadd.f32 %v1202, %v1140
    %v1204 = vadd.f32 %v1203, %v1141
    %v1205 = vadd.f32 %v1204, %v1142
    %v1206 = vadd.f32 %v1205, %v1143
    %v1207 = vadd.f32 %v1206, %v1144
    %v1208 = vadd.f32 %v1207, %v1145
    %v1209 = vadd.f32 %v1208, %v1146
    %v1210 = vadd.f32 %v1209, %v1147
    %v1211 = vadd.f32 %v1210, %v1148
    %v1212 = vadd.f32 %v1211, %v1149
    %v1213 = vadd.f32 %v1212, %v1150
    %v1214 = vadd.f32 %v1213, %v1151
    %v1215 = vadd.f32 %v1214, %v1152
    %v1216 = vadd.f32 %v1215, %v1153
    %v1217 = vadd.f32 %v1216, %v1154
    %v1218 = vadd.f32 %v1217, %v1155
    %v1219 = vadd.f32 %v1218, %v1156
    %v1220 = vadd.f32 %v1219, %v1157
    %v1221 = vadd.f32 %v1220, %v1158
    %v1222 = vadd.f32 %v1221, %v1159
    %v1223 = vadd.f32 %v1222, %v1160
    %v1224 = vadd.f32 %v1223, %v1161
    %v1225 = vadd.f32 %v1224, %v1162
    %v1226 = vadd.f32 %v1225, %v1163
    %v1227 = vadd.f32 %v1226, %v1164
    %v1228 = vadd.f32 %v1227, %v1165
    %v1229 = vadd.f32 %v1228, %v1166
    %v1230 = vadd.f32 %v1229, %v1167
    %v1231 = vadd.f32 %v1230, %v1168
    %v1232 = vadd.f32 %v1231, %v1169
    %v1233 = vrot.slane %v1232, 4
    %v1234 = vadd.f32 %v1232, %v1233
    %v1235 = vrot.slane %v1234, 2
    %v1236 = vadd.f32 %v1234, %v1235
    %v1237 = vrot.slane %v1236, 1
    %v1238 = vadd.f32 %v1236, %v1237
    %v1239 = vlaneseq
    %v1240 = vshrl.u32 %v1239, 7
    %vm1241 = vcmp.eq.s32.totalorder %v1240, 0
    %vm1242 = vcmp.eq.s32.totalorder %v1240, 1
    %v1243 = vsel %vm1242, %v1238, 0.0
    %v1244 = vsel %vm1241, %v1105, %v1243
    %1245 = vst [vmem:[#allocation8] sm:$0xff] %v1244
    // Predicated region
    $region18: #{bottleneck_forward.5} parent=1 // pred_check
      _
    $region19: #{bottleneck_forward.5} parent=1 // pred_check_branch
      %1247 = sbr.rel (0) target = $region21
    $region20: #{bottleneck_forward.5} parent=1 // pred_region
      %s1249 = ssub.s32 4096, 4096
      %1250 = vsyncadd [#allocation4], %s1249
      %s1251 = sshll.u32 [#allocation7], 4
      %s1252 = int_to_ptr.vmem [resolvable:$true] %s1251
      %1257 = dma.vmem_to_hbm [thread:$0]  %s1252, 4096, %s2, [#allocation4], 64, 64, 4
    $region21: #{bottleneck_forward.5} parent=1 // pred_fallthru
      _
    // Predicated region
    $region22: #{bottleneck_forward.5} parent=1 // pred_check
      _
    $region23: #{bottleneck_forward.5} parent=1 // pred_check_branch
      %1259 = sbr.rel (0) target = $region25
    $region24: #{bottleneck_forward.5} parent=1 // pred_region
      %s1261 = ssub.s32 128, 128
      %1262 = vsyncadd [#allocation9], %s1261
      %s1264 = sshll.u32 [#allocation8], 4
      %s1265 = int_to_ptr.vmem [resolvable:$true] %s1264
      %1267 = dma.vmem_to_hbm [thread:$0]  %s1265, 128, %s3, [#allocation9]
    $region25: #{bottleneck_forward.5} parent=1 // pred_fallthru
      _
    // Predicated region
    $region26: #{bottleneck_forward.5} parent=1 // pred_check
      _
    $region27: #{bottleneck_forward.5} parent=1 // pred_check_branch
      %1269 = sbr.rel (0) target = $region29
    $region28: #{bottleneck_forward.5} parent=1 // pred_region
      %1270 = dma.done [#allocation4], 4096
    $region29: #{bottleneck_forward.5} parent=1 // pred_fallthru
      _
    // Predicated region
    $region30: #{bottleneck_forward.5} parent=1 // pred_check
      _
    $region31: #{bottleneck_forward.5} parent=1 // pred_check_branch
      %1272 = sbr.rel (0) target = $region33
    $region32: #{bottleneck_forward.5} parent=1 // pred_region
      %1273 = dma.done [#allocation9], 128
    $region33: #{bottleneck_forward.5} parent=1 // pred_fallthru
      _
    %1274 = vsyncpa [#allocation3], 1
    %1275 = vsyncpa [#allocation6], 1
    %1276 = vsyncpa [#allocation4], 1
    %1277 = vsyncpa [#allocation9], 1

// kernel: bottleneck_forward.7
$region0: #{bottleneck_forward.7}
  #allocation0 [shape = 'u32[]', space=smem, size = 0x4, offset = 0x4, fixed_abs, tag = 'smem constant byte address 0x4 - core index']
  #allocation1 [shape = 'u32[144,128]{1,0:T(1,128)}', space=vmem, size = 0x12000, scoped, tag = 'internal scratch']
  #allocation2 [shape = 'bf16[128,128]{1,0:T(16,128)(2,1)}', space=vmem, size = 0x8000, scoped, tag = 'scratch operand']
  %s0 = inlined_call_operand.hbm [shape: bf16[128,128], index: 0, kind: input, shape index: {}]
  %s1 = inlined_call_operand.hbm [shape: bf16[128,128], index: 1, kind: input, shape index: {}]
  %s2 = inlined_call_operand.hbm [shape: f32[1,128], index: 2, kind: input, shape index: {}]
  %s3 = inlined_call_operand.hbm [shape: f32[1,128], index: 3, kind: input, shape index: {}]
  %s4 = inlined_call_operand.hbm [shape: bf16[128,128], index: 4, kind: output, shape index: {0}]
  %s5 = inlined_call_operand.hbm [shape: f32[1,8,128], index: 5, kind: output, shape index: {1}]
  %6 = xla_tuple %s4, %s5
  %s7 = sld [smem:[#allocation0]]
  $region54: #{bottleneck_forward.7} parent=0
    _
  %s9 = ssub.s32 1, %s7
  %s10 = scalar_select 0, %s9, %s7
  $region1: #{bottleneck_forward.7} parent=0
    #allocation3 [shape = 'u8[32768]{0}', space=vmem, size = 0x8000, scoped, tag = 'input window, operand 0, single buffered']
    #allocation4 [shape = 's32[1]{0}', space=sflag, size = 0x4, scoped, tag = 'scoped memory for bottleneck_forward.7']
    #allocation5 [shape = 's32[1]{0}', space=sflag, size = 0x4, scoped, tag = 'scoped memory for bottleneck_forward.7']
    #allocation6 [shape = 'u8[32768]{0}', space=vmem, size = 0x8000, scoped, tag = 'input window, operand 1, single buffered']
    #allocation7 [shape = 's32[1]{0}', space=sflag, size = 0x4, scoped, tag = 'scoped memory for bottleneck_forward.7']
    #allocation8 [shape = 'u8[512]{0}', space=vmem, size = 0x400, scoped, tag = 'input window, operand 2, single buffered']
    #allocation9 [shape = 'u8[512]{0}', space=vmem, size = 0x400, scoped, tag = 'input window, operand 3, single buffered']
    #allocation10 [shape = 's32[1]{0}', space=sflag, size = 0x4, scoped, tag = 'scoped memory for bottleneck_forward.7']
    #allocation11 [shape = 'u8[32768]{0}', space=vmem, size = 0x8000, scoped, tag = 'output window, operand 0, single buffered']
    #allocation12 [shape = 'u8[4096]{0}', space=vmem, size = 0x1000, scoped, tag = 'output window, operand 1, single buffered']
    #allocation13 [shape = 's32[1]{0}', space=sflag, size = 0x4, scoped, tag = 'scoped memory for bottleneck_forward.7']
    %11 = vsyncpa [#allocation4], 0
    %12 = vsyncpa [#allocation7], 0
    %13 = vsyncpa [#allocation10], 0
    %14 = vsyncpa [#allocation5], 0
    %15 = vsyncpa [#allocation13], 0
    // Predicated region
    $region2: #{bottleneck_forward.7} parent=1 // pred_check
      _
    $region3: #{bottleneck_forward.7} parent=1 // pred_check_branch
      %17 = sbr.rel (0) target = $region5
    $region4: #{bottleneck_forward.7} parent=1 // pred_region
      %s19 = ssub.s32 1024, 1024
      %20 = vsyncadd [#allocation4], %s19
      %s21 = sshll.u32 [#allocation3], 4
      %s22 = int_to_ptr.vmem [resolvable:$true] %s21
      %27 = dma.hbm_to_vmem [thread:$0]  %s0, 1024, %s22, [#allocation4], 64, 64, 4
    $region5: #{bottleneck_forward.7} parent=1 // pred_fallthru
      _
    // Predicated region
    $region6: #{bottleneck_forward.7} parent=1 // pred_check
      _
    $region7: #{bottleneck_forward.7} parent=1 // pred_check_branch
      %29 = sbr.rel (0) target = $region9
    $region8: #{bottleneck_forward.7} parent=1 // pred_region
      %s31 = ssub.s32 1024, 1024
      %32 = vsyncadd [#allocation7], %s31
      %s33 = sshll.u32 [#allocation6], 4
      %s34 = int_to_ptr.vmem [resolvable:$true] %s33
      %39 = dma.hbm_to_vmem [thread:$0]  %s1, 1024, %s34, [#allocation7], 64, 64, 4
    $region9: #{bottleneck_forward.7} parent=1 // pred_fallthru
      _
    // Predicated region
    $region10: #{bottleneck_forward.7} parent=1 // pred_check
      _
    $region11: #{bottleneck_forward.7} parent=1 // pred_check_branch
      %41 = sbr.rel (0) target = $region13
    $region12: #{bottleneck_forward.7} parent=1 // pred_region
      %s43 = ssub.s32 16, 16
      %44 = vsyncadd [#allocation7], %s43
      %s46 = sshll.u32 [#allocation8], 4
      %s47 = int_to_ptr.vmem [resolvable:$true] %s46
      %49 = dma.hbm_to_vmem [thread:$0]  %s2, 16, %s47, [#allocation7]
    $region13: #{bottleneck_forward.7} parent=1 // pred_fallthru
      _
    // Predicated region
    $region14: #{bottleneck_forward.7} parent=1 // pred_check
      _
    $region15: #{bottleneck_forward.7} parent=1 // pred_check_branch
      %51 = sbr.rel (0) target = $region17
    $region16: #{bottleneck_forward.7} parent=1 // pred_region
      %s53 = ssub.s32 16, 16
      %54 = vsyncadd [#allocation10], %s53
      %s56 = sshll.u32 [#allocation9], 4
      %s57 = int_to_ptr.vmem [resolvable:$true] %s56
      %59 = dma.hbm_to_vmem [thread:$0]  %s3, 16, %s57, [#allocation10]
    $region17: #{bottleneck_forward.7} parent=1 // pred_fallthru
      _
    // Predicated region
    $region18: #{bottleneck_forward.7} parent=1 // pred_check
      _
    $region19: #{bottleneck_forward.7} parent=1 // pred_check_branch
      %61 = sbr.rel (0) target = $region21
    $region20: #{bottleneck_forward.7} parent=1 // pred_region
      %62 = dma.done [#allocation4], 1024
    $region21: #{bottleneck_forward.7} parent=1 // pred_fallthru
      _
    // Predicated region
    $region22: #{bottleneck_forward.7} parent=1 // pred_check
      _
    $region23: #{bottleneck_forward.7} parent=1 // pred_check_branch
      %64 = sbr.rel (0) target = $region25
    $region24: #{bottleneck_forward.7} parent=1 // pred_region
      %65 = dma.done [#allocation7], 1024
    $region25: #{bottleneck_forward.7} parent=1 // pred_fallthru
      _
    // Predicated region
    $region26: #{bottleneck_forward.7} parent=1 // pred_check
      _
    $region27: #{bottleneck_forward.7} parent=1 // pred_check_branch
      %67 = sbr.rel (0) target = $region29
    $region28: #{bottleneck_forward.7} parent=1 // pred_region
      %68 = dma.done [#allocation7], 16
    $region29: #{bottleneck_forward.7} parent=1 // pred_fallthru
      _
    // Predicated region
    $region30: #{bottleneck_forward.7} parent=1 // pred_check
      _
    $region31: #{bottleneck_forward.7} parent=1 // pred_check_branch
      %70 = sbr.rel (0) target = $region33
    $region32: #{bottleneck_forward.7} parent=1 // pred_region
      %71 = dma.done [#allocation10], 16
    $region33: #{bottleneck_forward.7} parent=1 // pred_fallthru
      _
    %p73 = scmp.eq.s32.totalorder 0, 0
    // Predicated region
    $region34: #{bottleneck_forward.7} parent=1 // pred_check
      %p74 = pneg %p73
    $region35: #{bottleneck_forward.7} parent=1 // pred_check_branch
      %76 = sbr.rel (%p74) target = $region37
    $region36: #{bottleneck_forward.7} parent=1 // pred_region
      %v77 = vld [vmem:[#allocation3] sm:$0xf]
      %v78 = vld [vmem:[#allocation3 + $0x4] sm:$0xf]
      %v79 = vld [vmem:[#allocation3 + $0x8] sm:$0xf]
      %v80 = vld [vmem:[#allocation3 + $0xc] sm:$0xf]
      %v81 = vld [vmem:[#allocation3 + $0x10] sm:$0xf]
      %v82 = vld [vmem:[#allocation3 + $0x14] sm:$0xf]
      %v83 = vld [vmem:[#allocation3 + $0x18] sm:$0xf]
      %v84 = vld [vmem:[#allocation3 + $0x1c] sm:$0xf]
      %v85 = vld [vmem:[#allocation3 + $0x20] sm:$0xf]
      %v86 = vld [vmem:[#allocation3 + $0x24] sm:$0xf]
      %v87 = vld [vmem:[#allocation3 + $0x28] sm:$0xf]
      %v88 = vld [vmem:[#allocation3 + $0x2c] sm:$0xf]
      %v89 = vld [vmem:[#allocation3 + $0x30] sm:$0xf]
      %v90 = vld [vmem:[#allocation3 + $0x34] sm:$0xf]
      %v91 = vld [vmem:[#allocation3 + $0x38] sm:$0xf]
      %v92 = vld [vmem:[#allocation3 + $0x3c] sm:$0xf]
      %v93 = vunpack.c.l.bf16 %v77
      %v94 = vunpack.c.l.bf16 %v78
      %v95 = vunpack.c.l.bf16 %v79
      %v96 = vunpack.c.l.bf16 %v80
      %v97 = vunpack.c.l.bf16 %v81
      %v98 = vunpack.c.l.bf16 %v82
      %v99 = vunpack.c.l.bf16 %v83
      %v100 = vunpack.c.l.bf16 %v84
      %v101 = vunpack.c.l.bf16 %v85
      %v102 = vunpack.c.l.bf16 %v86
      %v103 = vunpack.c.l.bf16 %v87
      %v104 = vunpack.c.l.bf16 %v88
      %v105 = vunpack.c.l.bf16 %v89
      %v106 = vunpack.c.l.bf16 %v90
      %v107 = vunpack.c.l.bf16 %v91
      %v108 = vunpack.c.l.bf16 %v92
      %v109 = vld [vmem:[#allocation8] sm:$0x1]
      %v111 = vlaneseq
      %v112 = vshrl.u32 %v111, 7
      %v113 = vsub.s32 0, %v112
      %v114 = vrot.slane %v109, %v113
      %v116 = vmul.f32 %v93, %v114
      %v117 = vmul.f32 %v94, %v114
      %v118 = vmul.f32 %v95, %v114
      %v119 = vmul.f32 %v96, %v114
      %v120 = vmul.f32 %v97, %v114
      %v121 = vmul.f32 %v98, %v114
      %v122 = vmul.f32 %v99, %v114
      %v123 = vmul.f32 %v100, %v114
      %v124 = vmul.f32 %v101, %v114
      %v125 = vmul.f32 %v102, %v114
      %v126 = vmul.f32 %v103, %v114
      %v127 = vmul.f32 %v104, %v114
      %v128 = vmul.f32 %v105, %v114
      %v129 = vmul.f32 %v106, %v114
      %v130 = vmul.f32 %v107, %v114
      %v131 = vmul.f32 %v108, %v114
      %v132 = vld [vmem:[#allocation9] sm:$0x1]
      %v134 = vlaneseq
      %v135 = vshrl.u32 %v134, 7
      %v136 = vsub.s32 0, %v135
      %v137 = vrot.slane %v132, %v136
      %v139 = vadd.f32 %v116, %v137
      %v140 = vadd.f32 %v117, %v137
      %v141 = vadd.f32 %v118, %v137
      %v142 = vadd.f32 %v119, %v137
      %v143 = vadd.f32 %v120, %v137
      %v144 = vadd.f32 %v121, %v137
      %v145 = vadd.f32 %v122, %v137
      %v146 = vadd.f32 %v123, %v137
      %v147 = vadd.f32 %v124, %v137
      %v148 = vadd.f32 %v125, %v137
      %v149 = vadd.f32 %v126, %v137
      %v150 = vadd.f32 %v127, %v137
      %v151 = vadd.f32 %v128, %v137
      %v152 = vadd.f32 %v129, %v137
      %v153 = vadd.f32 %v130, %v137
      %v154 = vadd.f32 %v131, %v137
      %v155 = vmax.f32 %v139, 0.0
      %v156 = vmax.f32 %v140, 0.0
      %v157 = vmax.f32 %v141, 0.0
      %v158 = vmax.f32 %v142, 0.0
      %v159 = vmax.f32 %v143, 0.0
      %v160 = vmax.f32 %v144, 0.0
      %v161 = vmax.f32 %v145, 0.0
      %v162 = vmax.f32 %v146, 0.0
      %v163 = vmax.f32 %v147, 0.0
      %v164 = vmax.f32 %v148, 0.0
      %v165 = vmax.f32 %v149, 0.0
      %v166 = vmax.f32 %v150, 0.0
      %v167 = vmax.f32 %v151, 0.0
      %v168 = vmax.f32 %v152, 0.0
      %v169 = vmax.f32 %v153, 0.0
      %v170 = vmax.f32 %v154, 0.0
      %v171 = vpack.c.bf16 %v156, %v155
      %v172 = vpack.c.bf16 %v158, %v157
      %v173 = vpack.c.bf16 %v160, %v159
      %v174 = vpack.c.bf16 %v162, %v161
      %v175 = vpack.c.bf16 %v164, %v163
      %v176 = vpack.c.bf16 %v166, %v165
      %v177 = vpack.c.bf16 %v168, %v167
      %v178 = vpack.c.bf16 %v170, %v169
      %179 = vst [vmem:[#allocation2] sm:$0xff] %v171
      %180 = vst [vmem:[#allocation2 + $0x8] sm:$0xff] %v172
      %181 = vst [vmem:[#allocation2 + $0x10] sm:$0xff] %v173
      %182 = vst [vmem:[#allocation2 + $0x18] sm:$0xff] %v174
      %183 = vst [vmem:[#allocation2 + $0x20] sm:$0xff] %v175
      %184 = vst [vmem:[#allocation2 + $0x28] sm:$0xff] %v176
      %185 = vst [vmem:[#allocation2 + $0x30] sm:$0xff] %v177
      %186 = vst [vmem:[#allocation2 + $0x38] sm:$0xff] %v178
    $region37: #{bottleneck_forward.7} parent=1 // pred_fallthru
      _
    %v187 = vld [vmem:[#allocation2] sm:$0xff]
    %v188 = vld [vmem:[#allocation2 + $0x8] sm:$0xff]
    %v189 = vld [vmem:[#allocation2 + $0x10] sm:$0xff]
    %v190 = vld [vmem:[#allocation2 + $0x18] sm:$0xff]
    %v191 = vld [vmem:[#allocation2 + $0x20] sm:$0xff]
    %v192 = vld [vmem:[#allocation2 + $0x28] sm:$0xff]
    %v193 = vld [vmem:[#allocation2 + $0x30] sm:$0xff]
    %v194 = vld [vmem:[#allocation2 + $0x38] sm:$0xff]
    %v195 = vld [vmem:[#allocation6] sm:$0xf]
    %v196 = vld [vmem:[#allocation6 + $0x4] sm:$0xf]
    %v197 = vld [vmem:[#allocation6 + $0x8] sm:$0xf]
    %v198 = vld [vmem:[#allocation6 + $0xc] sm:$0xf]
    %v199 = vld [vmem:[#allocation6 + $0x10] sm:$0xf]
    %v200 = vld [vmem:[#allocation6 + $0x14] sm:$0xf]
    %v201 = vld [vmem:[#allocation6 + $0x18] sm:$0xf]
    %v202 = vld [vmem:[#allocation6 + $0x1c] sm:$0xf]
    %v203 = vld [vmem:[#allocation6 + $0x20] sm:$0xf]
    %v204 = vld [vmem:[#allocation6 + $0x24] sm:$0xf]
    %v205 = vld [vmem:[#allocation6 + $0x28] sm:$0xf]
    %v206 = vld [vmem:[#allocation6 + $0x2c] sm:$0xf]
    %v207 = vld [vmem:[#allocation6 + $0x30] sm:$0xf]
    %v208 = vld [vmem:[#allocation6 + $0x34] sm:$0xf]
    %v209 = vld [vmem:[#allocation6 + $0x38] sm:$0xf]
    %v210 = vld [vmem:[#allocation6 + $0x3c] sm:$0xf]
    %v227 = vunpack.c.l.b16 %v195
    %v228 = vunpack.c.l.b16 %v196
    %v229 = vunpack.c.l.b16 %v197
    %v230 = vunpack.c.l.b16 %v198
    %v231 = vunpack.c.l.b16 %v199
    %v232 = vunpack.c.l.b16 %v200
    %v233 = vunpack.c.l.b16 %v201
    %v234 = vunpack.c.l.b16 %v202
    %v235 = vunpack.c.l.b16 %v203
    %v236 = vunpack.c.l.b16 %v204
    %v237 = vunpack.c.l.b16 %v205
    %v238 = vunpack.c.l.b16 %v206
    %v239 = vunpack.c.l.b16 %v207
    %v240 = vunpack.c.l.b16 %v208
    %v241 = vunpack.c.l.b16 %v209
    %v242 = vunpack.c.l.b16 %v210
    %v243 = vpack.c.b16 %v228, %v227
    %v244 = vpack.c.b16 %v230, %v229
    %v245 = vpack.c.b16 %v232, %v231
    %v246 = vpack.c.b16 %v234, %v233
    %v247 = vpack.c.b16 %v236, %v235
    %v248 = vpack.c.b16 %v238, %v237
    %v249 = vpack.c.b16 %v240, %v239
    %v250 = vpack.c.b16 %v242, %v241
    %259 = vmatprep.subr.bf16.mxu0 0
    %260 = vmatpush1.bf16.msra.mxu0 %v243
    %261 = vmatprep.subr.bf16.mxu0 0
    %262 = vmatpush1.bf16.msra.mxu0 %v244
    %263 = vmatprep.subr.bf16.mxu0 0
    %264 = vmatpush1.bf16.msra.mxu0 %v245
    %265 = vmatprep.subr.bf16.mxu0 0
    %266 = vmatpush1.bf16.msra.mxu0 %v246
    %267 = vmatprep.subr.bf16.mxu0 0
    %268 = vmatpush1.bf16.msra.mxu0 %v247
    %269 = vmatprep.subr.bf16.mxu0 0
    %270 = vmatpush1.bf16.msra.mxu0 %v248
    %271 = vmatprep.subr.bf16.mxu0 0
    %272 = vmatpush1.bf16.msra.mxu0 %v249
    %273 = vmatprep.subr.bf16.mxu0 0
    %274 = vmatpush1.bf16.msra.mxu0 %v250
    %275 = vmatprep.subr.bf16.mxu0 0
    %276 = vmatpush1.bf16.msra.mxu0 0
    %277 = vmatprep.subr.bf16.mxu0 0
    %278 = vmatpush1.bf16.msra.mxu0 0
    %279 = vmatprep.subr.bf16.mxu0 0
    %280 = vmatpush1.bf16.msra.mxu0 0
    %281 = vmatprep.subr.bf16.mxu0 0
    %282 = vmatpush1.bf16.msra.mxu0 0
    %283 = vmatprep.subr.bf16.mxu0 0
    %284 = vmatpush1.bf16.msra.mxu0 0
    %285 = vmatprep.subr.bf16.mxu0 0
    %286 = vmatpush1.bf16.msra.mxu0 0
    %287 = vmatprep.subr.bf16.mxu0 0
    %288 = vmatpush1.bf16.msra.mxu0 0
    %289 = vmatprep.subr.bf16.mxu0 0
    %290 = vmatpush1.bf16.msra.mxu0 0
    %291 = vmatprep.mubr.bf16.mxu0 0
    %292 = vmatmul.mubr.bf16.gmra.mrb[0].mxu0 %v187
    %v293 = vpop.f32.mrb[0].mxu0
    %v294 = vadd.f32 0.0, %v293
    %v295 = vpop.f32.mrb[0].mxu0
    %v296 = vpop.f32.mrb[0].mxu0
    %v297 = vadd.f32 0.0, %v296
    %v298 = vpop.f32.mrb[0].mxu0
    %299 = vmatprep.mubr.bf16.mxu0 0
    %300 = vmatmul.mubr.bf16.gmra.mrb[0].mxu0 %v188
    %v301 = vpop.f32.mrb[0].mxu0
    %v302 = vadd.f32 0.0, %v301
    %v303 = vpop.f32.mrb[0].mxu0
    %v304 = vpop.f32.mrb[0].mxu0
    %v305 = vadd.f32 0.0, %v304
    %v306 = vpop.f32.mrb[0].mxu0
    %307 = vmatprep.mubr.bf16.mxu0 0
    %308 = vmatmul.mubr.bf16.gmra.mrb[0].mxu0 %v189
    %v309 = vpop.f32.mrb[0].mxu0
    %v310 = vadd.f32 0.0, %v309
    %v311 = vpop.f32.mrb[0].mxu0
    %v312 = vpop.f32.mrb[0].mxu0
    %v313 = vadd.f32 0.0, %v312
    %v314 = vpop.f32.mrb[0].mxu0
    %315 = vmatprep.mubr.bf16.mxu0 0
    %316 = vmatmul.mubr.bf16.gmra.mrb[0].mxu0 %v190
    %v317 = vpop.f32.mrb[0].mxu0
    %v318 = vadd.f32 0.0, %v317
    %v319 = vpop.f32.mrb[0].mxu0
    %v320 = vpop.f32.mrb[0].mxu0
    %v321 = vadd.f32 0.0, %v320
    %v322 = vpop.f32.mrb[0].mxu0
    %323 = vmatprep.mubr.bf16.mxu0 0
    %324 = vmatmul.mubr.bf16.gmra.mrb[0].mxu0 %v191
    %v325 = vpop.f32.mrb[0].mxu0
    %v326 = vadd.f32 0.0, %v325
    %v327 = vpop.f32.mrb[0].mxu0
    %v328 = vpop.f32.mrb[0].mxu0
    %v329 = vadd.f32 0.0, %v328
    %v330 = vpop.f32.mrb[0].mxu0
    %331 = vmatprep.mubr.bf16.mxu0 0
    %332 = vmatmul.mubr.bf16.gmra.mrb[0].mxu0 %v192
    %v333 = vpop.f32.mrb[0].mxu0
    %v334 = vadd.f32 0.0, %v333
    %v335 = vpop.f32.mrb[0].mxu0
    %v336 = vpop.f32.mrb[0].mxu0
    %v337 = vadd.f32 0.0, %v336
    %v338 = vpop.f32.mrb[0].mxu0
    %339 = vmatprep.mubr.bf16.mxu0 0
    %340 = vmatmul.mubr.bf16.gmra.mrb[0].mxu0 %v193
    %v341 = vpop.f32.mrb[0].mxu0
    %v342 = vadd.f32 0.0, %v341
    %v343 = vpop.f32.mrb[0].mxu0
    %v344 = vpop.f32.mrb[0].mxu0
    %v345 = vadd.f32 0.0, %v344
    %v346 = vpop.f32.mrb[0].mxu0
    %347 = vmatprep.mubr.bf16.mxu0 0
    %348 = vmatmul.mubr.bf16.gmra.mrb[0].mxu0 %v194
    %v349 = vpop.f32.mrb[0].mxu0
    %v350 = vadd.f32 0.0, %v349
    %v351 = vpop.f32.mrb[0].mxu0
    %v352 = vpop.f32.mrb[0].mxu0
    %v353 = vadd.f32 0.0, %v352
    %v354 = vpop.f32.mrb[0].mxu0
    %355 = vdwg.mxu0
    %v356 = vpack.c.bf16 %v297, %v294
    %v357 = vpack.c.bf16 %v305, %v302
    %v358 = vpack.c.bf16 %v313, %v310
    %v359 = vpack.c.bf16 %v321, %v318
    %v360 = vpack.c.bf16 %v329, %v326
    %v361 = vpack.c.bf16 %v337, %v334
    %v362 = vpack.c.bf16 %v345, %v342
    %v363 = vpack.c.bf16 %v353, %v350
    %v372 = vunpack.c.l.b16 %v356
    %v373 = vunpack.c.h.b16 %v356
    %v374 = vunpack.c.l.b16 %v357
    %v375 = vunpack.c.h.b16 %v357
    %v376 = vunpack.c.l.b16 %v358
    %v377 = vunpack.c.h.b16 %v358
    %v378 = vunpack.c.l.b16 %v359
    %v379 = vunpack.c.h.b16 %v359
    %v380 = vunpack.c.l.b16 %v360
    %v381 = vunpack.c.h.b16 %v360
    %v382 = vunpack.c.l.b16 %v361
    %v383 = vunpack.c.h.b16 %v361
    %v384 = vunpack.c.l.b16 %v362
    %v385 = vunpack.c.h.b16 %v362
    %v386 = vunpack.c.l.b16 %v363
    %v387 = vunpack.c.h.b16 %v363
    %v388 = vpack.c.b16 %v372, %v372
    %v389 = vpack.c.b16 %v373, %v373
    %v390 = vpack.c.b16 %v374, %v374
    %v391 = vpack.c.b16 %v375, %v375
    %v392 = vpack.c.b16 %v376, %v376
    %v393 = vpack.c.b16 %v377, %v377
    %v394 = vpack.c.b16 %v378, %v378
    %v395 = vpack.c.b16 %v379, %v379
    %v396 = vpack.c.b16 %v380, %v380
    %v397 = vpack.c.b16 %v381, %v381
    %v398 = vpack.c.b16 %v382, %v382
    %v399 = vpack.c.b16 %v383, %v383
    %v400 = vpack.c.b16 %v384, %v384
    %v401 = vpack.c.b16 %v385, %v385
    %v402 = vpack.c.b16 %v386, %v386
    %v403 = vpack.c.b16 %v387, %v387
    %420 = vst [vmem:[#allocation11] sm:$0xf] %v388
    %421 = vst [vmem:[#allocation11 + $0x4] sm:$0xf] %v389
    %422 = vst [vmem:[#allocation11 + $0x8] sm:$0xf] %v390
    %423 = vst [vmem:[#allocation11 + $0xc] sm:$0xf] %v391
    %424 = vst [vmem:[#allocation11 + $0x10] sm:$0xf] %v392
    %425 = vst [vmem:[#allocation11 + $0x14] sm:$0xf] %v393
    %426 = vst [vmem:[#allocation11 + $0x18] sm:$0xf] %v394
    %427 = vst [vmem:[#allocation11 + $0x1c] sm:$0xf] %v395
    %428 = vst [vmem:[#allocation11 + $0x20] sm:$0xf] %v396
    %429 = vst [vmem:[#allocation11 + $0x24] sm:$0xf] %v397
    %430 = vst [vmem:[#allocation11 + $0x28] sm:$0xf] %v398
    %431 = vst [vmem:[#allocation11 + $0x2c] sm:$0xf] %v399
    %432 = vst [vmem:[#allocation11 + $0x30] sm:$0xf] %v400
    %433 = vst [vmem:[#allocation11 + $0x34] sm:$0xf] %v401
    %434 = vst [vmem:[#allocation11 + $0x38] sm:$0xf] %v402
    %435 = vst [vmem:[#allocation11 + $0x3c] sm:$0xf] %v403
    %v436 = vunpack.c.l.bf16 %v356
    %v437 = vunpack.c.h.bf16 %v356
    %v438 = vunpack.c.l.bf16 %v357
    %v439 = vunpack.c.h.bf16 %v357
    %v440 = vunpack.c.l.bf16 %v358
    %v441 = vunpack.c.h.bf16 %v358
    %v442 = vunpack.c.l.bf16 %v359
    %v443 = vunpack.c.h.bf16 %v359
    %v444 = vunpack.c.l.bf16 %v360
    %v445 = vunpack.c.h.bf16 %v360
    %v446 = vunpack.c.l.bf16 %v361
    %v447 = vunpack.c.h.bf16 %v361
    %v448 = vunpack.c.l.bf16 %v362
    %v449 = vunpack.c.h.bf16 %v362
    %v450 = vunpack.c.l.bf16 %v363
    %v451 = vunpack.c.h.bf16 %v363
    %v452 = vadd.f32 %v436, %v437
    %v453 = vadd.f32 %v452, %v438
    %v454 = vadd.f32 %v453, %v439
    %v455 = vadd.f32 %v454, %v440
    %v456 = vadd.f32 %v455, %v441
    %v457 = vadd.f32 %v456, %v442
    %v458 = vadd.f32 %v457, %v443
    %v459 = vadd.f32 %v458, %v444
    %v460 = vadd.f32 %v459, %v445
    %v461 = vadd.f32 %v460, %v446
    %v462 = vadd.f32 %v461, %v447
    %v463 = vadd.f32 %v462, %v448
    %v464 = vadd.f32 %v463, %v449
    %v465 = vadd.f32 %v464, %v450
    %v466 = vadd.f32 %v465, %v451
    %v467 = vrot.slane %v466, 4
    %v468 = vadd.f32 %v466, %v467
    %v469 = vrot.slane %v468, 2
    %v470 = vadd.f32 %v468, %v469
    %v471 = vrot.slane %v470, 1
    %v472 = vadd.f32 %v470, %v471
    %v473 = vmul.f32 %v436, %v436
    %v474 = vmul.f32 %v437, %v437
    %v475 = vmul.f32 %v438, %v438
    %v476 = vmul.f32 %v439, %v439
    %v477 = vmul.f32 %v440, %v440
    %v478 = vmul.f32 %v441, %v441
    %v479 = vmul.f32 %v442, %v442
    %v480 = vmul.f32 %v443, %v443
    %v481 = vmul.f32 %v444, %v444
    %v482 = vmul.f32 %v445, %v445
    %v483 = vmul.f32 %v446, %v446
    %v484 = vmul.f32 %v447, %v447
    %v485 = vmul.f32 %v448, %v448
    %v486 = vmul.f32 %v449, %v449
    %v487 = vmul.f32 %v450, %v450
    %v488 = vmul.f32 %v451, %v451
    %v489 = vadd.f32 %v473, %v474
    %v490 = vadd.f32 %v489, %v475
    %v491 = vadd.f32 %v490, %v476
    %v492 = vadd.f32 %v491, %v477
    %v493 = vadd.f32 %v492, %v478
    %v494 = vadd.f32 %v493, %v479
    %v495 = vadd.f32 %v494, %v480
    %v496 = vadd.f32 %v495, %v481
    %v497 = vadd.f32 %v496, %v482
    %v498 = vadd.f32 %v497, %v483
    %v499 = vadd.f32 %v498, %v484
    %v500 = vadd.f32 %v499, %v485
    %v501 = vadd.f32 %v500, %v486
    %v502 = vadd.f32 %v501, %v487
    %v503 = vadd.f32 %v502, %v488
    %v504 = vrot.slane %v503, 4
    %v505 = vadd.f32 %v503, %v504
    %v506 = vrot.slane %v505, 2
    %v507 = vadd.f32 %v505, %v506
    %v508 = vrot.slane %v507, 1
    %v509 = vadd.f32 %v507, %v508
    %v510 = vlaneseq
    %v511 = vshrl.u32 %v510, 7
    %vm512 = vcmp.eq.s32.totalorder %v511, 0
    %vm513 = vcmp.eq.s32.totalorder %v511, 1
    %v514 = vsel %vm513, %v509, 0.0
    %v515 = vsel %vm512, %v472, %v514
    %516 = vst [vmem:[#allocation12] sm:$0xff] %v515
    // Predicated region
    $region38: #{bottleneck_forward.7} parent=1 // pred_check
      _
    $region39: #{bottleneck_forward.7} parent=1 // pred_check_branch
      %518 = sbr.rel (0) target = $region41
    $region40: #{bottleneck_forward.7} parent=1 // pred_region
      %s520 = ssub.s32 1024, 1024
      %521 = vsyncadd [#allocation5], %s520
      %s522 = sshll.u32 [#allocation11], 4
      %s523 = int_to_ptr.vmem [resolvable:$true] %s522
      %528 = dma.vmem_to_hbm [thread:$0]  %s523, 1024, %s4, [#allocation5], 64, 64, 4
    $region41: #{bottleneck_forward.7} parent=1 // pred_fallthru
      _
    // Predicated region
    $region42: #{bottleneck_forward.7} parent=1 // pred_check
      _
    $region43: #{bottleneck_forward.7} parent=1 // pred_check_branch
      %530 = sbr.rel (0) target = $region45
    $region44: #{bottleneck_forward.7} parent=1 // pred_region
      %s532 = ssub.s32 128, 128
      %533 = vsyncadd [#allocation13], %s532
      %s535 = sshll.u32 [#allocation12], 4
      %s536 = int_to_ptr.vmem [resolvable:$true] %s535
      %538 = dma.vmem_to_hbm [thread:$0]  %s536, 128, %s5, [#allocation13]
    $region45: #{bottleneck_forward.7} parent=1 // pred_fallthru
      _
    // Predicated region
    $region46: #{bottleneck_forward.7} parent=1 // pred_check
      _
    $region47: #{bottleneck_forward.7} parent=1 // pred_check_branch
      %540 = sbr.rel (0) target = $region49
    $region48: #{bottleneck_forward.7} parent=1 // pred_region
      %541 = dma.done [#allocation5], 1024
    $region49: #{bottleneck_forward.7} parent=1 // pred_fallthru
      _
    // Predicated region
    $region50: #{bottleneck_forward.7} parent=1 // pred_check
      _
    $region51: #{bottleneck_forward.7} parent=1 // pred_check_branch
      %543 = sbr.rel (0) target = $region53
    $region52: #{bottleneck_forward.7} parent=1 // pred_region
      %544 = dma.done [#allocation13], 128
    $region53: #{bottleneck_forward.7} parent=1 // pred_fallthru
      _
    %545 = vsyncpa [#allocation4], 1
    %546 = vsyncpa [#allocation7], 1
    %547 = vsyncpa [#allocation10], 1
    %548 = vsyncpa [#allocation5], 1
    %549 = vsyncpa [#allocation13], 1

// kernel: bottleneck_forward.6
$region0: #{bottleneck_forward.6}
  #allocation0 [shape = 'u32[]', space=smem, size = 0x4, offset = 0x4, fixed_abs, tag = 'smem constant byte address 0x4 - core index']
  #allocation1 [shape = 'u32[144,128]{1,0:T(1,128)}', space=vmem, size = 0x12000, scoped, tag = 'internal scratch']
  #allocation2 [shape = 'f32[64,128]{1,0:T(8,128)}', space=vmem, size = 0x8000, scoped, tag = 'scratch operand']
  %s0 = inlined_call_operand.hbm [shape: bf16[2,9,9,128], index: 0, kind: input, shape index: {}]
  %s1 = inlined_call_operand.hbm [shape: bf16[2,9,9,128], index: 1, kind: input, shape index: {}]
  %s2 = inlined_call_operand.hbm [shape: bf16[2,9,9,128], index: 2, kind: input, shape index: {}]
  %s3 = inlined_call_operand.hbm [shape: bf16[2,9,9,128], index: 3, kind: input, shape index: {}]
  %s4 = inlined_call_operand.hbm [shape: bf16[9,128,128], index: 4, kind: input, shape index: {}]
  %s5 = inlined_call_operand.hbm [shape: bf16[2,64,128], index: 5, kind: output, shape index: {0}]
  %s6 = inlined_call_operand.hbm [shape: f32[2,8,128], index: 6, kind: output, shape index: {1}]
  %7 = xla_tuple %s5, %s6
  %s8 = sld [smem:[#allocation0]]
  $region81: #{bottleneck_forward.6} parent=0
    _
  %s10 = ssub.s32 1, %s8
  %s11 = scalar_select 0, %s10, %s8
  $region1: #{bottleneck_forward.6} parent=0
    #allocation3 [shape = 'u8[73728]{0}', space=vmem, size = 0x12000, scoped, tag = 'input window, operand 0']
    #allocation4 [shape = 's32[2]{0}', space=sflag, size = 0x8, scoped, tag = 'scoped memory for bottleneck_forward.6']
    #allocation5 [shape = 's32[2]{0}', space=sflag, size = 0x8, scoped, tag = 'scoped memory for bottleneck_forward.6']
    #allocation6 [shape = 'u8[73728]{0}', space=vmem, size = 0x12000, scoped, tag = 'input window, operand 1']
    #allocation7 [shape = 's32[2]{0}', space=sflag, size = 0x8, scoped, tag = 'scoped memory for bottleneck_forward.6']
    #allocation8 [shape = 'u8[73728]{0}', space=vmem, size = 0x12000, scoped, tag = 'input window, operand 2']
    #allocation9 [shape = 'u8[73728]{0}', space=vmem, size = 0x12000, scoped, tag = 'input window, operand 3']
    #allocation10 [shape = 's32[2]{0}', space=sflag, size = 0x8, scoped, tag = 'scoped memory for bottleneck_forward.6']
    #allocation11 [shape = 'u8[294912]{0}', space=vmem, size = 0x48000, scoped, tag = 'input window, operand 4, single buffered']
    #allocation12 [shape = 'u8[32768]{0}', space=vmem, size = 0x8000, scoped, tag = 'output window, operand 0']
    #allocation13 [shape = 'u8[8192]{0}', space=vmem, size = 0x2000, scoped, tag = 'output window, operand 1']
    #allocation14 [shape = 's32[2]{0}', space=sflag, size = 0x8, scoped, tag = 'scoped memory for bottleneck_forward.6']
    %12 = vsyncpa [#allocation4], 0
    %s13 = scalar_lea.sflag [#allocation4], 1
    %14 = vsyncpa %s13, 0
    %15 = vsyncpa [#allocation7], 0
    %s16 = scalar_lea.sflag [#allocation7], 1
    %17 = vsyncpa %s16, 0
    %18 = vsyncpa [#allocation10], 0
    %s19 = scalar_lea.sflag [#allocation10], 1
    %20 = vsyncpa %s19, 0
    %21 = vsyncpa [#allocation5], 0
    %s22 = scalar_lea.sflag [#allocation5], 1
    %23 = vsyncpa %s22, 0
    %24 = vsyncpa [#allocation14], 0
    %s25 = scalar_lea.sflag [#allocation14], 1
    %26 = vsyncpa %s25, 0
    loop: start=0, step=1, limit=4
    $region2: #{bottleneck_forward.6} parent=1 // loop_pre_header
      _
    $region3: #{bottleneck_forward.6} parent=1 // loop_header
      %s28 = sphi 0, %s32
      %p29 = scmp.ge.s32.totalorder %s28, 4
      %s35 = sphi 0, %s47
      %s36 = sphi 0, %s43
      %s37 = sphi 0, %s35
      %s38 = sphi 0, %s36
      %s39 = sphi 0, %s37
      %s40 = sphi 0, %s38
      %s50 = sphi 0, %s52
      %s53 = sphi 0, %s50
      %s54 = sphi 0, %s53
      %s70 = sphi 0, %s54
      %s76 = sphi 0, %s78
      %s79 = sphi 0, %s76
      %s80 = sphi 0, %s79
      %s96 = sphi 0, %s80
      %s102 = sphi 0, %s104
      %s105 = sphi 0, %s102
      %s106 = sphi 0, %s105
      %s122 = sphi 0, %s106
      %s128 = sphi 0, %s130
      %s131 = sphi 0, %s128
      %s132 = sphi 0, %s131
      %s148 = sphi 0, %s132
      %s154 = sphi 0, %s156
      %s157 = sphi 0, %s154
      %s158 = sphi 0, %s157
      %s174 = sphi 0, %s158
      %s182 = sphi 0, %s184
      %s185 = sphi 0, %s182
      %s186 = sphi 0, %s185
      %s202 = sphi 0, %s186
      %s210 = sphi 0, %s212
      %s213 = sphi 0, %s210
      %s214 = sphi 0, %s213
      %s230 = sphi 0, %s214
    $region4: #{bottleneck_forward.6} parent=1 // loop_header_branch
      %31 = sbr.rel (%p29) target = $region8
    $region5: #{bottleneck_forward.6} parent=1 // loop_body
      %s33 = ssub.s32 %s28, 1
      %s34 = ssub.s32 %s28, 2
      %s41 = sadd.s32 1, %s36
      %p42 = scmp.ge.s32.totalorder %s41, 1
      %s43 = scalar_select %p42, 0, %s41
      %s44 = sadd.s32 1, %s35
      %s45 = scalar_select %p42, %s44, %s35
      %p46 = scmp.ge.s32.totalorder %s45, 2
      %s47 = scalar_select %p46, 0, %s45
      %s48 = ssub.s32 %s35, %s47
      %p49 = scmp.eq.s32.totalorder %s48, 0
      %s51 = sadd.s32 %s50, 1
      %s52 = scalar_select %p49, %s50, %s51
      %p55 = pneg %p49
      %p56 = scmp.eq.s32.totalorder %s28, 1
      %p57 = por %p55, %p56
      %p58 = scmp.ne.s32.totalorder %s50, %s53
      %p59 = scmp.eq.s32.totalorder %s28, 0
      %p60 = por %p58, %p59
      %p61 = scmp.ne.s32.totalorder %s50, %s53
      %p62 = scmp.eq.s32.totalorder %s33, 1
      %p63 = por %p61, %p62
      %p64 = scmp.ne.s32.totalorder %s53, %s54
      %p65 = scmp.eq.s32.totalorder %s33, 0
      %p66 = por %p64, %p65
      %p67 = scmp.ne.s32.totalorder %s53, %s54
      %p68 = scmp.eq.s32.totalorder %s34, 1
      %p69 = por %p67, %p68
      %p71 = scmp.ne.s32.totalorder %s54, %s70
      %p72 = scmp.eq.s32.totalorder %s34, 0
      %p73 = por %p71, %p72
      %s74 = ssub.s32 %s35, %s47
      %p75 = scmp.eq.s32.totalorder %s74, 0
      %s77 = sadd.s32 %s76, 1
      %s78 = scalar_select %p75, %s76, %s77
      %p81 = pneg %p75
      %p82 = scmp.eq.s32.totalorder %s28, 1
      %p83 = por %p81, %p82
      %p84 = scmp.ne.s32.totalorder %s76, %s79
      %p85 = scmp.eq.s32.totalorder %s28, 0
      %p86 = por %p84, %p85
      %p87 = scmp.ne.s32.totalorder %s76, %s79
      %p88 = scmp.eq.s32.totalorder %s33, 1
      %p89 = por %p87, %p88
      %p90 = scmp.ne.s32.totalorder %s79, %s80
      %p91 = scmp.eq.s32.totalorder %s33, 0
      %p92 = por %p90, %p91
      %p93 = scmp.ne.s32.totalorder %s79, %s80
      %p94 = scmp.eq.s32.totalorder %s34, 1
      %p95 = por %p93, %p94
      %p97 = scmp.ne.s32.totalorder %s80, %s96
      %p98 = scmp.eq.s32.totalorder %s34, 0
      %p99 = por %p97, %p98
      %s100 = ssub.s32 %s35, %s47
      %p101 = scmp.eq.s32.totalorder %s100, 0
      %s103 = sadd.s32 %s102, 1
      %s104 = scalar_select %p101, %s102, %s103
      %p107 = pneg %p101
      %p108 = scmp.eq.s32.totalorder %s28, 1
      %p109 = por %p107, %p108
      %p110 = scmp.ne.s32.totalorder %s102, %s105
      %p111 = scmp.eq.s32.totalorder %s28, 0
      %p112 = por %p110, %p111
      %p113 = scmp.ne.s32.totalorder %s102, %s105
      %p114 = scmp.eq.s32.totalorder %s33, 1
      %p115 = por %p113, %p114
      %p116 = scmp.ne.s32.totalorder %s105, %s106
      %p117 = scmp.eq.s32.totalorder %s33, 0
      %p118 = por %p116, %p117
      %p119 = scmp.ne.s32.totalorder %s105, %s106
      %p120 = scmp.eq.s32.totalorder %s34, 1
      %p121 = por %p119, %p120
      %p123 = scmp.ne.s32.totalorder %s106, %s122
      %p124 = scmp.eq.s32.totalorder %s34, 0
      %p125 = por %p123, %p124
      %s126 = ssub.s32 %s35, %s47
      %p127 = scmp.eq.s32.totalorder %s126, 0
      %s129 = sadd.s32 %s128, 1
      %s130 = scalar_select %p127, %s128, %s129
      %p133 = pneg %p127
      %p134 = scmp.eq.s32.totalorder %s28, 1
      %p135 = por %p133, %p134
      %p136 = scmp.ne.s32.totalorder %s128, %s131
      %p137 = scmp.eq.s32.totalorder %s28, 0
      %p138 = por %p136, %p137
      %p139 = scmp.ne.s32.totalorder %s128, %s131
      %p140 = scmp.eq.s32.totalorder %s33, 1
      %p141 = por %p139, %p140
      %p142 = scmp.ne.s32.totalorder %s131, %s132
      %p143 = scmp.eq.s32.totalorder %s33, 0
      %p144 = por %p142, %p143
      %p145 = scmp.ne.s32.totalorder %s131, %s132
      %p146 = scmp.eq.s32.totalorder %s34, 1
      %p147 = por %p145, %p146
      %p149 = scmp.ne.s32.totalorder %s132, %s148
      %p150 = scmp.eq.s32.totalorder %s34, 0
      %p151 = por %p149, %p150
      %s152 = ssub.s32 %s36, %s43
      %p153 = scmp.eq.s32.totalorder %s152, 0
      %s155 = sadd.s32 %s154, 1
      %s156 = scalar_select %p153, %s154, %s155
      %p159 = pneg %p153
      %p160 = scmp.eq.s32.totalorder %s28, 1
      %p161 = por %p159, %p160
      %p162 = scmp.ne.s32.totalorder %s154, %s157
      %p163 = scmp.eq.s32.totalorder %s28, 0
      %p164 = por %p162, %p163
      %p165 = scmp.ne.s32.totalorder %s154, %s157
      %p166 = scmp.eq.s32.totalorder %s33, 1
      %p167 = por %p165, %p166
      %p168 = scmp.ne.s32.totalorder %s157, %s158
      %p169 = scmp.eq.s32.totalorder %s33, 0
      %p170 = por %p168, %p169
      %p171 = scmp.ne.s32.totalorder %s157, %s158
      %p172 = scmp.eq.s32.totalorder %s34, 1
      %p173 = por %p171, %p172
      %p175 = scmp.ne.s32.totalorder %s158, %s174
      %p176 = scmp.eq.s32.totalorder %s34, 0
      %p177 = por %p175, %p176
      %s178 = ssub.s32 %s35, %s47
      %s179 = ssub.s32 %s36, %s43
      %s180 = sor.u32 %s178, %s179
      %p181 = scmp.eq.s32.totalorder %s180, 0
      %s183 = sadd.s32 %s182, 1
      %s184 = scalar_select %p181, %s182, %s183
      %p187 = pneg %p181
      %p188 = scmp.eq.s32.totalorder %s28, 1
      %p189 = por %p187, %p188
      %p190 = scmp.ne.s32.totalorder %s182, %s185
      %p191 = scmp.eq.s32.totalorder %s28, 0
      %p192 = por %p190, %p191
      %p193 = scmp.ne.s32.totalorder %s182, %s185
      %p194 = scmp.eq.s32.totalorder %s33, 1
      %p195 = por %p193, %p194
      %p196 = scmp.ne.s32.totalorder %s185, %s186
      %p197 = scmp.eq.s32.totalorder %s33, 0
      %p198 = por %p196, %p197
      %p199 = scmp.ne.s32.totalorder %s185, %s186
      %p200 = scmp.eq.s32.totalorder %s34, 1
      %p201 = por %p199, %p200
      %p203 = scmp.ne.s32.totalorder %s186, %s202
      %p204 = scmp.eq.s32.totalorder %s34, 0
      %p205 = por %p203, %p204
      %s206 = ssub.s32 %s35, %s47
      %s207 = ssub.s32 %s36, %s43
      %s208 = sor.u32 %s206, %s207
      %p209 = scmp.eq.s32.totalorder %s208, 0
      %s211 = sadd.s32 %s210, 1
      %s212 = scalar_select %p209, %s210, %s211
      %p215 = pneg %p209
      %p216 = scmp.eq.s32.totalorder %s28, 1
      %p217 = por %p215, %p216
      %p218 = scmp.ne.s32.totalorder %s210, %s213
      %p219 = scmp.eq.s32.totalorder %s28, 0
      %p220 = por %p218, %p219
      %p221 = scmp.ne.s32.totalorder %s210, %s213
      %p222 = scmp.eq.s32.totalorder %s33, 1
      %p223 = por %p221, %p222
      %p224 = scmp.ne.s32.totalorder %s213, %s214
      %p225 = scmp.eq.s32.totalorder %s33, 0
      %p226 = por %p224, %p225
      %p227 = scmp.ne.s32.totalorder %s213, %s214
      %p228 = scmp.eq.s32.totalorder %s34, 1
      %p229 = por %p227, %p228
      %p231 = scmp.ne.s32.totalorder %s214, %s230
      %p232 = scmp.eq.s32.totalorder %s34, 0
      %p233 = por %p231, %p232
      %p234 = scmp.le.s32.totalorder 1, %s28
      %p235 = scmp.lt.s32.totalorder %s28, 3
      %p236 = pnand %p234, %p235
      %p237 = pneg %p236
      // Predicated region
      $region9: #{bottleneck_forward.6} parent=5 // pred_check
        _
      $region10: #{bottleneck_forward.6} parent=5 // pred_check_branch
        %239 = sbr.rel (%p236) target = $region12
      $region11: #{bottleneck_forward.6} parent=5 // pred_region
        %s240 = ssub.s32 %s28, 1
        // Predicated region
        $region13: #{bottleneck_forward.6} parent=11 // pred_check
          %p241 = pneg %p170
        $region14: #{bottleneck_forward.6} parent=11 // pred_check_branch
          %243 = sbr.rel (%p241) target = $region16
        $region15: #{bottleneck_forward.6} parent=11 // pred_region
          %s245 = ssub.s32 9216, 9216
          %246 = vsyncadd [#allocation10], %s245
          %s247 = smul.addr %s38, 64
          %s248 = scalar_lea.hbm %s4, %s247
          %s249 = sshll.u32 [#allocation11], 4
          %s250 = int_to_ptr.vmem [resolvable:$true] %s249
          %255 = dma.hbm_to_vmem [thread:$0]  %s248, 9216, %s250, [#allocation10], 64, 64, 4
        $region16: #{bottleneck_forward.6} parent=11 // pred_fallthru
          _
      $region12: #{bottleneck_forward.6} parent=5 // pred_fallthru
        _
      %p256 = scmp.lt.s32.totalorder %s28, 2
      // Predicated region
      $region17: #{bottleneck_forward.6} parent=5 // pred_check
        %p257 = pneg %p256
      $region18: #{bottleneck_forward.6} parent=5 // pred_check_branch
        %259 = sbr.rel (%p257) target = $region20
      $region19: #{bottleneck_forward.6} parent=5 // pred_region
        // Predicated region
        $region21: #{bottleneck_forward.6} parent=19 // pred_check
          %p260 = pneg %p60
        $region22: #{bottleneck_forward.6} parent=19 // pred_check_branch
          %262 = sbr.rel (%p260) target = $region24
        $region23: #{bottleneck_forward.6} parent=19 // pred_region
          %s263 = sand.u32 %s50, 1
          %s264 = scalar_lea.sflag [#allocation4], %s263
          %s265 = sand.u32 %s50, 1
          %s266 = smul.addr %s265, 72
          %s267 = scalar_lea.vmem [#allocation3], %s266
          %s269 = ssub.s32 1152, 1152
          %270 = vsyncadd %s264, %s269
          %s271 = smul.addr %s35, 18
          %s272 = smul.addr %s271, 64
          %s273 = scalar_lea.hbm %s0, %s272
          %s274 = sshll.u32 %s267, 4
          %s275 = int_to_ptr.vmem [resolvable:$true] %s274
          %280 = dma.hbm_to_vmem [thread:$0]  %s273, 1152, %s275, %s264, 64, 64, 4
        $region24: #{bottleneck_forward.6} parent=19 // pred_fallthru
          _
        // Predicated region
        $region25: #{bottleneck_forward.6} parent=19 // pred_check
          %p281 = pneg %p86
        $region26: #{bottleneck_forward.6} parent=19 // pred_check_branch
          %283 = sbr.rel (%p281) target = $region28
        $region27: #{bottleneck_forward.6} parent=19 // pred_region
          %s284 = sand.u32 %s28, 1
          %s285 = scalar_lea.sflag [#allocation7], %s284
          %s286 = sand.u32 %s76, 1
          %s287 = smul.addr %s286, 72
          %s288 = scalar_lea.vmem [#allocation6], %s287
          %s290 = ssub.s32 1152, 1152
          %291 = vsyncadd %s285, %s290
          %s292 = smul.addr %s35, 18
          %s293 = smul.addr %s292, 64
          %s294 = scalar_lea.hbm %s1, %s293
          %s295 = sshll.u32 %s288, 4
          %s296 = int_to_ptr.vmem [resolvable:$true] %s295
          %301 = dma.hbm_to_vmem [thread:$0]  %s294, 1152, %s296, %s285, 64, 64, 4
        $region28: #{bottleneck_forward.6} parent=19 // pred_fallthru
          _
        // Predicated region
        $region29: #{bottleneck_forward.6} parent=19 // pred_check
          %p302 = pneg %p112
        $region30: #{bottleneck_forward.6} parent=19 // pred_check_branch
          %304 = sbr.rel (%p302) target = $region32
        $region31: #{bottleneck_forward.6} parent=19 // pred_region
          %s305 = sand.u32 %s28, 1
          %s306 = scalar_lea.sflag [#allocation7], %s305
          %s307 = sand.u32 %s102, 1
          %s308 = smul.addr %s307, 72
          %s309 = scalar_lea.vmem [#allocation8], %s308
          %s311 = ssub.s32 1152, 1152
          %312 = vsyncadd %s306, %s311
          %s313 = smul.addr %s35, 18
          %s314 = smul.addr %s313, 64
          %s315 = scalar_lea.hbm %s2, %s314
          %s316 = sshll.u32 %s309, 4
          %s317 = int_to_ptr.vmem [resolvable:$true] %s316
          %322 = dma.hbm_to_vmem [thread:$0]  %s315, 1152, %s317, %s306, 64, 64, 4
        $region32: #{bottleneck_forward.6} parent=19 // pred_fallthru
          _
        // Predicated region
        $region33: #{bottleneck_forward.6} parent=19 // pred_check
          %p323 = pneg %p138
        $region34: #{bottleneck_forward.6} parent=19 // pred_check_branch
          %325 = sbr.rel (%p323) target = $region36
        $region35: #{bottleneck_forward.6} parent=19 // pred_region
          %s326 = sand.u32 %s28, 1
          %s327 = scalar_lea.sflag [#allocation10], %s326
          %s328 = sand.u32 %s128, 1
          %s329 = smul.addr %s328, 72
          %s330 = scalar_lea.vmem [#allocation9], %s329
          %s332 = ssub.s32 1152, 1152
          %333 = vsyncadd %s327, %s332
          %s334 = smul.addr %s35, 18
          %s335 = smul.addr %s334, 64
          %s336 = scalar_lea.hbm %s3, %s335
          %s337 = sshll.u32 %s330, 4
          %s338 = int_to_ptr.vmem [resolvable:$true] %s337
          %343 = dma.hbm_to_vmem [thread:$0]  %s336, 1152, %s338, %s327, 64, 64, 4
        $region36: #{bottleneck_forward.6} parent=19 // pred_fallthru
          _
      $region20: #{bottleneck_forward.6} parent=5 // pred_fallthru
        _
      %p344 = scmp.le.s32.totalorder 1, %s28
      %p345 = scmp.lt.s32.totalorder %s28, 3
      %p346 = pnand %p344, %p345
      %p347 = pneg %p346
      // Predicated region
      $region37: #{bottleneck_forward.6} parent=5 // pred_check
        _
      $region38: #{bottleneck_forward.6} parent=5 // pred_check_branch
        %349 = sbr.rel (%p346) target = $region40
      $region39: #{bottleneck_forward.6} parent=5 // pred_region
        %s350 = ssub.s32 %s28, 1
        %s351 = sand.u32 %s53, 1
        %s352 = scalar_lea.sflag [#allocation4], %s351
        %s353 = sand.u32 %s53, 1
        %s354 = smul.addr %s353, 72
        %s355 = scalar_lea.vmem [#allocation3], %s354
        // Predicated region
        $region41: #{bottleneck_forward.6} parent=39 // pred_check
          %p356 = pneg %p66
        $region42: #{bottleneck_forward.6} parent=39 // pred_check_branch
          %358 = sbr.rel (%p356) target = $region44
        $region43: #{bottleneck_forward.6} parent=39 // pred_region
          %359 = dma.done %s352, 1152
        $region44: #{bottleneck_forward.6} parent=39 // pred_fallthru
          _
        %s360 = sand.u32 %s33, 1
        %s361 = scalar_lea.sflag [#allocation7], %s360
        %s362 = sand.u32 %s79, 1
        %s363 = smul.addr %s362, 72
        %s364 = scalar_lea.vmem [#allocation6], %s363
        // Predicated region
        $region45: #{bottleneck_forward.6} parent=39 // pred_check
          %p365 = pneg %p92
        $region46: #{bottleneck_forward.6} parent=39 // pred_check_branch
          %367 = sbr.rel (%p365) target = $region48
        $region47: #{bottleneck_forward.6} parent=39 // pred_region
          %368 = dma.done %s361, 1152
        $region48: #{bottleneck_forward.6} parent=39 // pred_fallthru
          _
        %s369 = sand.u32 %s33, 1
        %s370 = scalar_lea.sflag [#allocation7], %s369
        %s371 = sand.u32 %s105, 1
        %s372 = smul.addr %s371, 72
        %s373 = scalar_lea.vmem [#allocation8], %s372
        // Predicated region
        $region49: #{bottleneck_forward.6} parent=39 // pred_check
          %p374 = pneg %p118
        $region50: #{bottleneck_forward.6} parent=39 // pred_check_branch
          %376 = sbr.rel (%p374) target = $region52
        $region51: #{bottleneck_forward.6} parent=39 // pred_region
          %377 = dma.done %s370, 1152
        $region52: #{bottleneck_forward.6} parent=39 // pred_fallthru
          _
        %s378 = sand.u32 %s33, 1
        %s379 = scalar_lea.sflag [#allocation10], %s378
        %s380 = sand.u32 %s131, 1
        %s381 = smul.addr %s380, 72
        %s382 = scalar_lea.vmem [#allocation9], %s381
        // Predicated region
        $region53: #{bottleneck_forward.6} parent=39 // pred_check
          %p383 = pneg %p144
        $region54: #{bottleneck_forward.6} parent=39 // pred_check_branch
          %385 = sbr.rel (%p383) target = $region56
        $region55: #{bottleneck_forward.6} parent=39 // pred_region
          %386 = dma.done %s379, 1152
        $region56: #{bottleneck_forward.6} parent=39 // pred_fallthru
          _
        // Predicated region
        $region57: #{bottleneck_forward.6} parent=39 // pred_check
          %p387 = pneg %p170
        $region58: #{bottleneck_forward.6} parent=39 // pred_check_branch
          %389 = sbr.rel (%p387) target = $region60
        $region59: #{bottleneck_forward.6} parent=39 // pred_region
          %390 = dma.done [#allocation10], 9216
        $region60: #{bottleneck_forward.6} parent=39 // pred_fallthru
          _
        %s391 = sand.u32 %s53, 1
        %s392 = scalar_lea.sflag [#allocation4], %s391
        %s393 = sand.u32 %s53, 1
        %s394 = smul.addr %s393, 72
        %s395 = scalar_lea.vmem [#allocation3], %s394
        %p396 = pneg %p66
        %p397 = pneg %p63
        %s398 = sand.u32 %s33, 1
        %s399 = scalar_lea.sflag [#allocation7], %s398
        %s400 = sand.u32 %s79, 1
        %s401 = smul.addr %s400, 72
        %s402 = scalar_lea.vmem [#allocation6], %s401
        %p403 = pneg %p92
        %p404 = pneg %p89
        %s405 = sand.u32 %s33, 1
        %s406 = scalar_lea.sflag [#allocation7], %s405
        %s407 = sand.u32 %s105, 1
        %s408 = smul.addr %s407, 72
        %s409 = scalar_lea.vmem [#allocation8], %s408
        %p410 = pneg %p118
        %p411 = pneg %p115
        %s412 = sand.u32 %s33, 1
        %s413 = scalar_lea.sflag [#allocation10], %s412
        %s414 = sand.u32 %s131, 1
        %s415 = smul.addr %s414, 72
        %s416 = scalar_lea.vmem [#allocation9], %s415
        %p417 = pneg %p144
        %p418 = pneg %p141
        %p419 = pneg %p170
        %p420 = pneg %p167
        %p421 = pneg %p198
        %p422 = pneg %p195
        %s423 = sand.u32 %s185, 1
        %s424 = scalar_lea.sflag [#allocation5], %s423
        %s425 = sand.u32 %s185, 1
        %s426 = smul.addr %s425, 32
        %s427 = scalar_lea.vmem [#allocation12], %s426
        %p428 = pneg %p226
        %p429 = pneg %p223
        %s430 = sand.u32 %s213, 1
        %s431 = scalar_lea.sflag [#allocation14], %s430
        %s432 = sand.u32 %s213, 1
        %s433 = smul.addr %s432, 8
        %s434 = scalar_lea.vmem [#allocation13], %s433
        %436 = vst [vmem:[#allocation2] sm:$0xff] 0.0
        %437 = vst [vmem:[#allocation2 + $0x8] sm:$0xff] 0.0
        %438 = vst [vmem:[#allocation2 + $0x10] sm:$0xff] 0.0
        %439 = vst [vmem:[#allocation2 + $0x18] sm:$0xff] 0.0
        %440 = vst [vmem:[#allocation2 + $0x20] sm:$0xff] 0.0
        %441 = vst [vmem:[#allocation2 + $0x28] sm:$0xff] 0.0
        %442 = vst [vmem:[#allocation2 + $0x30] sm:$0xff] 0.0
        %443 = vst [vmem:[#allocation2 + $0x38] sm:$0xff] 0.0
        %v444 = vld [vmem:[%s355] sm:$0xf]
        %v445 = vld [vmem:[%s355 + $0x8] sm:$0xf]
        %v446 = vld [vmem:[%s355 + $0x10] sm:$0xf]
        %v447 = vld [vmem:[%s355 + $0x18] sm:$0xf]
        %v448 = vld [vmem:[%s355 + $0x20] sm:$0xf]
        %v449 = vld [vmem:[%s355 + $0x28] sm:$0xf]
        %v450 = vld [vmem:[%s355 + $0x30] sm:$0xf]
        %v451 = vld [vmem:[%s355 + $0x38] sm:$0xf]
        %v452 = vld [vmem:[#allocation2] sm:$0xff]
        %v453 = vld [vmem:[#allocation2 + $0x8] sm:$0xff]
        %v454 = vld [vmem:[#allocation2 + $0x10] sm:$0xff]
        %v455 = vld [vmem:[#allocation2 + $0x18] sm:$0xff]
        %v456 = vld [vmem:[#allocation2 + $0x20] sm:$0xff]
        %v457 = vld [vmem:[#allocation2 + $0x28] sm:$0xff]
        %v458 = vld [vmem:[#allocation2 + $0x30] sm:$0xff]
        %v459 = vld [vmem:[#allocation2 + $0x38] sm:$0xff]
        %v460 = vld [vmem:[#allocation11] sm:$0xf]
        %v461 = vld [vmem:[#allocation11 + $0x4] sm:$0xf]
        %v462 = vld [vmem:[#allocation11 + $0x8] sm:$0xf]
        %v463 = vld [vmem:[#allocation11 + $0xc] sm:$0xf]
        %v464 = vld [vmem:[#allocation11 + $0x10] sm:$0xf]
        %v465 = vld [vmem:[#allocation11 + $0x14] sm:$0xf]
        %v466 = vld [vmem:[#allocation11 + $0x18] sm:$0xf]
        %v467 = vld [vmem:[#allocation11 + $0x1c] sm:$0xf]
        %v468 = vld [vmem:[#allocation11 + $0x20] sm:$0xf]
        %v469 = vld [vmem:[#allocation11 + $0x24] sm:$0xf]
        %v470 = vld [vmem:[#allocation11 + $0x28] sm:$0xf]
        %v471 = vld [vmem:[#allocation11 + $0x2c] sm:$0xf]
        %v472 = vld [vmem:[#allocation11 + $0x30] sm:$0xf]
        %v473 = vld [vmem:[#allocation11 + $0x34] sm:$0xf]
        %v474 = vld [vmem:[#allocation11 + $0x38] sm:$0xf]
        %v475 = vld [vmem:[#allocation11 + $0x3c] sm:$0xf]
        %v484 = vunpack.c.l.b16 %v444
        %v485 = vunpack.c.l.b16 %v445
        %v486 = vunpack.c.l.b16 %v446
        %v487 = vunpack.c.l.b16 %v447
        %v488 = vunpack.c.l.b16 %v448
        %v489 = vunpack.c.l.b16 %v449
        %v490 = vunpack.c.l.b16 %v450
        %v491 = vunpack.c.l.b16 %v451
        %v492 = vpack.c.b16 %v485, %v484
        %v493 = vpack.c.b16 %v487, %v486
        %v494 = vpack.c.b16 %v489, %v488
        %v495 = vpack.c.b16 %v491, %v490
        %v516 = vunpack.c.l.b16 %v460
        %v517 = vunpack.c.l.b16 %v461
        %v518 = vunpack.c.l.b16 %v462
        %v519 = vunpack.c.l.b16 %v463
        %v520 = vunpack.c.l.b16 %v464
        %v521 = vunpack.c.l.b16 %v465
        %v522 = vunpack.c.l.b16 %v466
        %v523 = vunpack.c.l.b16 %v467
        %v524 = vunpack.c.l.b16 %v468
        %v525 = vunpack.c.l.b16 %v469
        %v526 = vunpack.c.l.b16 %v470
        %v527 = vunpack.c.l.b16 %v471
        %v528 = vunpack.c.l.b16 %v472
        %v529 = vunpack.c.l.b16 %v473
        %v530 = vunpack.c.l.b16 %v474
        %v531 = vunpack.c.l.b16 %v475
        %v532 = vpack.c.b16 %v517, %v516
        %v533 = vpack.c.b16 %v519, %v518
        %v534 = vpack.c.b16 %v521, %v520
        %v535 = vpack.c.b16 %v523, %v522
        %v536 = vpack.c.b16 %v525, %v524
        %v537 = vpack.c.b16 %v527, %v526
        %v538 = vpack.c.b16 %v529, %v528
        %v539 = vpack.c.b16 %v531, %v530
        %548 = vmatprep.subr.bf16.mxu0 0
        %549 = vmatpush1.bf16.msra.mxu0 %v532
        %550 = vmatprep.subr.bf16.mxu0 0
        %551 = vmatpush1.bf16.msra.mxu0 %v533
        %552 = vmatprep.subr.bf16.mxu0 0
        %553 = vmatpush1.bf16.msra.mxu0 %v534
        %554 = vmatprep.subr.bf16.mxu0 0
        %555 = vmatpush1.bf16.msra.mxu0 %v535
        %556 = vmatprep.subr.bf16.mxu0 0
        %557 = vmatpush1.bf16.msra.mxu0 %v536
        %558 = vmatprep.subr.bf16.mxu0 0
        %559 = vmatpush1.bf16.msra.mxu0 %v537
        %560 = vmatprep.subr.bf16.mxu0 0
        %561 = vmatpush1.bf16.msra.mxu0 %v538
        %562 = vmatprep.subr.bf16.mxu0 0
        %563 = vmatpush1.bf16.msra.mxu0 %v539
        %564 = vmatprep.subr.bf16.mxu0 0
        %565 = vmatpush1.bf16.msra.mxu0 0
        %566 = vmatprep.subr.bf16.mxu0 0
        %567 = vmatpush1.bf16.msra.mxu0 0
        %568 = vmatprep.subr.bf16.mxu0 0
        %569 = vmatpush1.bf16.msra.mxu0 0
        %570 = vmatprep.subr.bf16.mxu0 0
        %571 = vmatpush1.bf16.msra.mxu0 0
        %572 = vmatprep.subr.bf16.mxu0 0
        %573 = vmatpush1.bf16.msra.mxu0 0
        %574 = vmatprep.subr.bf16.mxu0 0
        %575 = vmatpush1.bf16.msra.mxu0 0
        %576 = vmatprep.subr.bf16.mxu0 0
        %577 = vmatpush1.bf16.msra.mxu0 0
        %578 = vmatprep.subr.bf16.mxu0 0
        %579 = vmatpush1.bf16.msra.mxu0 0
        %580 = vmatprep.mubr.bf16.mxu0 0
        %581 = vmatmul.mubr.bf16.gmra.mrb[0].mxu0 %v492
        %v582 = vpop.f32.mrb[0].mxu0
        %v583 = vadd.f32 0.0, %v582
        %v584 = vpop.f32.mrb[0].mxu0
        %v585 = vpop.f32.mrb[0].mxu0
        %v586 = vadd.f32 0.0, %v585
        %v587 = vpop.f32.mrb[0].mxu0
        %588 = vmatprep.mubr.bf16.mxu0 0
        %589 = vmatmul.mubr.bf16.gmra.mrb[0].mxu0 %v493
        %v590 = vpop.f32.mrb[0].mxu0
        %v591 = vadd.f32 0.0, %v590
        %v592 = vpop.f32.mrb[0].mxu0
        %v593 = vpop.f32.mrb[0].mxu0
        %v594 = vadd.f32 0.0, %v593
        %v595 = vpop.f32.mrb[0].mxu0
        %596 = vmatprep.mubr.bf16.mxu0 0
        %597 = vmatmul.mubr.bf16.gmra.mrb[0].mxu0 %v494
        %v598 = vpop.f32.mrb[0].mxu0
        %v599 = vadd.f32 0.0, %v598
        %v600 = vpop.f32.mrb[0].mxu0
        %v601 = vpop.f32.mrb[0].mxu0
        %v602 = vadd.f32 0.0, %v601
        %v603 = vpop.f32.mrb[0].mxu0
        %604 = vmatprep.mubr.bf16.mxu0 0
        %605 = vmatmul.mubr.bf16.gmra.mrb[0].mxu0 %v495
        %v606 = vpop.f32.mrb[0].mxu0
        %v607 = vadd.f32 0.0, %v606
        %v608 = vpop.f32.mrb[0].mxu0
        %v609 = vpop.f32.mrb[0].mxu0
        %v610 = vadd.f32 0.0, %v609
        %v611 = vpop.f32.mrb[0].mxu0
        %612 = vdwg.mxu0
        %v613 = vadd.f32 %v452, %v583
        %v614 = vadd.f32 %v453, %v586
        %v615 = vadd.f32 %v454, %v591
        %v616 = vadd.f32 %v455, %v594
        %v617 = vadd.f32 %v456, %v599
        %v618 = vadd.f32 %v457, %v602
        %v619 = vadd.f32 %v458, %v607
        %v620 = vadd.f32 %v459, %v610
        %621 = vst [vmem:[#allocation2] sm:$0xff] %v613
        %622 = vst [vmem:[#allocation2 + $0x8] sm:$0xff] %v614
        %623 = vst [vmem:[#allocation2 + $0x10] sm:$0xff] %v615
        %624 = vst [vmem:[#allocation2 + $0x18] sm:$0xff] %v616
        %625 = vst [vmem:[#allocation2 + $0x20] sm:$0xff] %v617
        %626 = vst [vmem:[#allocation2 + $0x28] sm:$0xff] %v618
        %627 = vst [vmem:[#allocation2 + $0x30] sm:$0xff] %v619
        %628 = vst [vmem:[#allocation2 + $0x38] sm:$0xff] %v620
        %v629 = vld [vmem:[%s364] sm:$0xf]
        %v630 = vld [vmem:[%s364 + $0x8] sm:$0xf]
        %v631 = vld [vmem:[%s364 + $0x10] sm:$0xf]
        %v632 = vld [vmem:[%s364 + $0x18] sm:$0xf]
        %v633 = vld [vmem:[%s364 + $0x20] sm:$0xf]
        %v634 = vld [vmem:[%s364 + $0x28] sm:$0xf]
        %v635 = vld [vmem:[%s364 + $0x30] sm:$0xf]
        %v636 = vld [vmem:[%s364 + $0x38] sm:$0xf]
        %v637 = vld [vmem:[#allocation2] sm:$0xff]
        %v638 = vld [vmem:[#allocation2 + $0x8] sm:$0xff]
        %v639 = vld [vmem:[#allocation2 + $0x10] sm:$0xff]
        %v640 = vld [vmem:[#allocation2 + $0x18] sm:$0xff]
        %v641 = vld [vmem:[#allocation2 + $0x20] sm:$0xff]
        %v642 = vld [vmem:[#allocation2 + $0x28] sm:$0xff]
        %v643 = vld [vmem:[#allocation2 + $0x30] sm:$0xff]
        %v644 = vld [vmem:[#allocation2 + $0x38] sm:$0xff]
        %s645 = scalar_lea.vmem [#allocation11], 64
        %v646 = vld [vmem:[%s645] sm:$0xf]
        %v647 = vld [vmem:[%s645 + $0x4] sm:$0xf]
        %v648 = vld [vmem:[%s645 + $0x8] sm:$0xf]
        %v649 = vld [vmem:[%s645 + $0xc] sm:$0xf]
        %v650 = vld [vmem:[%s645 + $0x10] sm:$0xf]
        %v651 = vld [vmem:[%s645 + $0x14] sm:$0xf]
        %v652 = vld [vmem:[%s645 + $0x18] sm:$0xf]
        %v653 = vld [vmem:[%s645 + $0x1c] sm:$0xf]
        %v654 = vld [vmem:[%s645 + $0x20] sm:$0xf]
        %v655 = vld [vmem:[%s645 + $0x24] sm:$0xf]
        %v656 = vld [vmem:[%s645 + $0x28] sm:$0xf]
        %v657 = vld [vmem:[%s645 + $0x2c] sm:$0xf]
        %v658 = vld [vmem:[%s645 + $0x30] sm:$0xf]
        %v659 = vld [vmem:[%s645 + $0x34] sm:$0xf]
        %v660 = vld [vmem:[%s645 + $0x38] sm:$0xf]
        %v661 = vld [vmem:[%s645 + $0x3c] sm:$0xf]
        %v670 = vunpack.c.l.b16 %v629
        %v671 = vunpack.c.l.b16 %v630
        %v672 = vunpack.c.l.b16 %v631
        %v673 = vunpack.c.l.b16 %v632
        %v674 = vunpack.c.l.b16 %v633
        %v675 = vunpack.c.l.b16 %v634
        %v676 = vunpack.c.l.b16 %v635
        %v677 = vunpack.c.l.b16 %v636
        %v678 = vpack.c.b16 %v671, %v670
        %v679 = vpack.c.b16 %v673, %v672
        %v680 = vpack.c.b16 %v675, %v674
        %v681 = vpack.c.b16 %v677, %v676
        %v702 = vunpack.c.l.b16 %v646
        %v703 = vunpack.c.l.b16 %v647
        %v704 = vunpack.c.l.b16 %v648
        %v705 = vunpack.c.l.b16 %v649
        %v706 = vunpack.c.l.b16 %v650
        %v707 = vunpack.c.l.b16 %v651
        %v708 = vunpack.c.l.b16 %v652
        %v709 = vunpack.c.l.b16 %v653
        %v710 = vunpack.c.l.b16 %v654
        %v711 = vunpack.c.l.b16 %v655
        %v712 = vunpack.c.l.b16 %v656
        %v713 = vunpack.c.l.b16 %v657
        %v714 = vunpack.c.l.b16 %v658
        %v715 = vunpack.c.l.b16 %v659
        %v716 = vunpack.c.l.b16 %v660
        %v717 = vunpack.c.l.b16 %v661
        %v718 = vpack.c.b16 %v703, %v702
        %v719 = vpack.c.b16 %v705, %v704
        %v720 = vpack.c.b16 %v707, %v706
        %v721 = vpack.c.b16 %v709, %v708
        %v722 = vpack.c.b16 %v711, %v710
        %v723 = vpack.c.b16 %v713, %v712
        %v724 = vpack.c.b16 %v715, %v714
        %v725 = vpack.c.b16 %v717, %v716
        %734 = vmatprep.subr.bf16.mxu0 0
        %735 = vmatpush1.bf16.msra.mxu0 %v718
        %736 = vmatprep.subr.bf16.mxu0 0
        %737 = vmatpush1.bf16.msra.mxu0 %v719
        %738 = vmatprep.subr.bf16.mxu0 0
        %739 = vmatpush1.bf16.msra.mxu0 %v720
        %740 = vmatprep.subr.bf16.mxu0 0
        %741 = vmatpush1.bf16.msra.mxu0 %v721
        %742 = vmatprep.subr.bf16.mxu0 0
        %743 = vmatpush1.bf16.msra.mxu0 %v722
        %744 = vmatprep.subr.bf16.mxu0 0
        %745 = vmatpush1.bf16.msra.mxu0 %v723
        %746 = vmatprep.subr.bf16.mxu0 0
        %747 = vmatpush1.bf16.msra.mxu0 %v724
        %748 = vmatprep.subr.bf16.mxu0 0
        %749 = vmatpush1.bf16.msra.mxu0 %v725
        %750 = vmatprep.subr.bf16.mxu0 0
        %751 = vmatpush1.bf16.msra.mxu0 0
        %752 = vmatprep.subr.bf16.mxu0 0
        %753 = vmatpush1.bf16.msra.mxu0 0
        %754 = vmatprep.subr.bf16.mxu0 0
        %755 = vmatpush1.bf16.msra.mxu0 0
        %756 = vmatprep.subr.bf16.mxu0 0
        %757 = vmatpush1.bf16.msra.mxu0 0
        %758 = vmatprep.subr.bf16.mxu0 0
        %759 = vmatpush1.bf16.msra.mxu0 0
        %760 = vmatprep.subr.bf16.mxu0 0
        %761 = vmatpush1.bf16.msra.mxu0 0
        %762 = vmatprep.subr.bf16.mxu0 0
        %763 = vmatpush1.bf16.msra.mxu0 0
        %764 = vmatprep.subr.bf16.mxu0 0
        %765 = vmatpush1.bf16.msra.mxu0 0
        %766 = vmatprep.mubr.bf16.mxu0 0
        %767 = vmatmul.mubr.bf16.gmra.mrb[0].mxu0 %v678
        %v768 = vpop.f32.mrb[0].mxu0
        %v769 = vadd.f32 0.0, %v768
        %v770 = vpop.f32.mrb[0].mxu0
        %v771 = vpop.f32.mrb[0].mxu0
        %v772 = vadd.f32 0.0, %v771
        %v773 = vpop.f32.mrb[0].mxu0
        %774 = vmatprep.mubr.bf16.mxu0 0
        %775 = vmatmul.mubr.bf16.gmra.mrb[0].mxu0 %v679
        %v776 = vpop.f32.mrb[0].mxu0
        %v777 = vadd.f32 0.0, %v776
        %v778 = vpop.f32.mrb[0].mxu0
        %v779 = vpop.f32.mrb[0].mxu0
        %v780 = vadd.f32 0.0, %v779
        %v781 = vpop.f32.mrb[0].mxu0
        %782 = vmatprep.mubr.bf16.mxu0 0
        %783 = vmatmul.mubr.bf16.gmra.mrb[0].mxu0 %v680
        %v784 = vpop.f32.mrb[0].mxu0
        %v785 = vadd.f32 0.0, %v784
        %v786 = vpop.f32.mrb[0].mxu0
        %v787 = vpop.f32.mrb[0].mxu0
        %v788 = vadd.f32 0.0, %v787
        %v789 = vpop.f32.mrb[0].mxu0
        %790 = vmatprep.mubr.bf16.mxu0 0
        %791 = vmatmul.mubr.bf16.gmra.mrb[0].mxu0 %v681
        %v792 = vpop.f32.mrb[0].mxu0
        %v793 = vadd.f32 0.0, %v792
        %v794 = vpop.f32.mrb[0].mxu0
        %v795 = vpop.f32.mrb[0].mxu0
        %v796 = vadd.f32 0.0, %v795
        %v797 = vpop.f32.mrb[0].mxu0
        %798 = vdwg.mxu0
        %v799 = vadd.f32 %v637, %v769
        %v800 = vadd.f32 %v638, %v772
        %v801 = vadd.f32 %v639, %v777
        %v802 = vadd.f32 %v640, %v780
        %v803 = vadd.f32 %v641, %v785
        %v804 = vadd.f32 %v642, %v788
        %v805 = vadd.f32 %v643, %v793
        %v806 = vadd.f32 %v644, %v796
        %807 = vst [vmem:[#allocation2] sm:$0xff] %v799
        %808 = vst [vmem:[#allocation2 + $0x8] sm:$0xff] %v800
        %809 = vst [vmem:[#allocation2 + $0x10] sm:$0xff] %v801
        %810 = vst [vmem:[#allocation2 + $0x18] sm:$0xff] %v802
        %811 = vst [vmem:[#allocation2 + $0x20] sm:$0xff] %v803
        %812 = vst [vmem:[#allocation2 + $0x28] sm:$0xff] %v804
        %813 = vst [vmem:[#allocation2 + $0x30] sm:$0xff] %v805
        %814 = vst [vmem:[#allocation2 + $0x38] sm:$0xff] %v806
        %v815 = vld [vmem:[%s355] sm:$0xf]
        %v816 = vld [vmem:[%s355 + $0x4] sm:$0x1]
        %v817 = vld [vmem:[%s355 + $0x8] sm:$0xf]
        %v818 = vld [vmem:[%s355 + $0xc] sm:$0x1]
        %v819 = vld [vmem:[%s355 + $0x10] sm:$0xf]
        %v820 = vld [vmem:[%s355 + $0x14] sm:$0x1]
        %v821 = vld [vmem:[%s355 + $0x18] sm:$0xf]
        %v822 = vld [vmem:[%s355 + $0x1c] sm:$0x1]
        %v823 = vld [vmem:[%s355 + $0x20] sm:$0xf]
        %v824 = vld [vmem:[%s355 + $0x24] sm:$0x1]
        %v825 = vld [vmem:[%s355 + $0x28] sm:$0xf]
        %v826 = vld [vmem:[%s355 + $0x2c] sm:$0x1]
        %v827 = vld [vmem:[%s355 + $0x30] sm:$0xf]
        %v828 = vld [vmem:[%s355 + $0x34] sm:$0x1]
        %v829 = vld [vmem:[%s355 + $0x38] sm:$0xf]
        %v830 = vld [vmem:[%s355 + $0x3c] sm:$0x1]
        %vm831 = vsmask.f32 3328
        %vm832 = vsmask.f32 7440
        %vm833 = vmor %vm831, %vm832
        %v835 = vshrl.u32 %v815, 16
        %v837 = vrot.slane %v835, 4
        %v838 = vshll.u32 %v815, 16
        %v840 = vrot.slane %v838, 5
        %v841 = vor.u32 %v837, %v840
        %v842 = vrot.slane %v841, 4
        %v844 = vshll.u32 %v816, 16
        %v846 = vrot.slane %v844, 5
        %v847 = vsel %vm833, %v842, %v846
        %v849 = vshrl.u32 %v817, 16
        %v851 = vrot.slane %v849, 4
        %v852 = vshll.u32 %v817, 16
        %v854 = vrot.slane %v852, 5
        %v855 = vor.u32 %v851, %v854
        %v856 = vrot.slane %v855, 4
        %v858 = vshll.u32 %v818, 16
        %v860 = vrot.slane %v858, 5
        %v861 = vsel %vm833, %v856, %v860
        %v863 = vshrl.u32 %v819, 16
        %v865 = vrot.slane %v863, 4
        %v866 = vshll.u32 %v819, 16
        %v868 = vrot.slane %v866, 5
        %v869 = vor.u32 %v865, %v868
        %v870 = vrot.slane %v869, 4
        %v872 = vshll.u32 %v820, 16
        %v874 = vrot.slane %v872, 5
        %v875 = vsel %vm833, %v870, %v874
        %v877 = vshrl.u32 %v821, 16
        %v879 = vrot.slane %v877, 4
        %v880 = vshll.u32 %v821, 16
        %v882 = vrot.slane %v880, 5
        %v883 = vor.u32 %v879, %v882
        %v884 = vrot.slane %v883, 4
        %v886 = vshll.u32 %v822, 16
        %v888 = vrot.slane %v886, 5
        %v889 = vsel %vm833, %v884, %v888
        %v891 = vshrl.u32 %v823, 16
        %v893 = vrot.slane %v891, 4
        %v894 = vshll.u32 %v823, 16
        %v896 = vrot.slane %v894, 5
        %v897 = vor.u32 %v893, %v896
        %v898 = vrot.slane %v897, 4
        %v900 = vshll.u32 %v824, 16
        %v902 = vrot.slane %v900, 5
        %v903 = vsel %vm833, %v898, %v902
        %v905 = vshrl.u32 %v825, 16
        %v907 = vrot.slane %v905, 4
        %v908 = vshll.u32 %v825, 16
        %v910 = vrot.slane %v908, 5
        %v911 = vor.u32 %v907, %v910
        %v912 = vrot.slane %v911, 4
        %v914 = vshll.u32 %v826, 16
        %v916 = vrot.slane %v914, 5
        %v917 = vsel %vm833, %v912, %v916
        %v919 = vshrl.u32 %v827, 16
        %v921 = vrot.slane %v919, 4
        %v922 = vshll.u32 %v827, 16
        %v924 = vrot.slane %v922, 5
        %v925 = vor.u32 %v921, %v924
        %v926 = vrot.slane %v925, 4
        %v928 = vshll.u32 %v828, 16
        %v930 = vrot.slane %v928, 5
        %v931 = vsel %vm833, %v926, %v930
        %v933 = vshrl.u32 %v829, 16
        %v935 = vrot.slane %v933, 4
        %v936 = vshll.u32 %v829, 16
        %v938 = vrot.slane %v936, 5
        %v939 = vor.u32 %v935, %v938
        %v940 = vrot.slane %v939, 4
        %v942 = vshll.u32 %v830, 16
        %v944 = vrot.slane %v942, 5
        %v945 = vsel %vm833, %v940, %v944
        %v946 = vld [vmem:[#allocation2] sm:$0xff]
        %v947 = vld [vmem:[#allocation2 + $0x8] sm:$0xff]
        %v948 = vld [vmem:[#allocation2 + $0x10] sm:$0xff]
        %v949 = vld [vmem:[#allocation2 + $0x18] sm:$0xff]
        %v950 = vld [vmem:[#allocation2 + $0x20] sm:$0xff]
        %v951 = vld [vmem:[#allocation2 + $0x28] sm:$0xff]
        %v952 = vld [vmem:[#allocation2 + $0x30] sm:$0xff]
        %v953 = vld [vmem:[#allocation2 + $0x38] sm:$0xff]
        %s954 = scalar_lea.vmem [#allocation11], 128
        %v955 = vld [vmem:[%s954] sm:$0xf]
        %v956 = vld [vmem:[%s954 + $0x4] sm:$0xf]
        %v957 = vld [vmem:[%s954 + $0x8] sm:$0xf]
        %v958 = vld [vmem:[%s954 + $0xc] sm:$0xf]
        %v959 = vld [vmem:[%s954 + $0x10] sm:$0xf]
        %v960 = vld [vmem:[%s954 + $0x14] sm:$0xf]
        %v961 = vld [vmem:[%s954 + $0x18] sm:$0xf]
        %v962 = vld [vmem:[%s954 + $0x1c] sm:$0xf]
        %v963 = vld [vmem:[%s954 + $0x20] sm:$0xf]
        %v964 = vld [vmem:[%s954 + $0x24] sm:$0xf]
        %v965 = vld [vmem:[%s954 + $0x28] sm:$0xf]
        %v966 = vld [vmem:[%s954 + $0x2c] sm:$0xf]
        %v967 = vld [vmem:[%s954 + $0x30] sm:$0xf]
        %v968 = vld [vmem:[%s954 + $0x34] sm:$0xf]
        %v969 = vld [vmem:[%s954 + $0x38] sm:$0xf]
        %v970 = vld [vmem:[%s954 + $0x3c] sm:$0xf]
        %v971 = vunpack.c.l.b16 %v847
        %v972 = vunpack.c.l.b16 %v861
        %v973 = vunpack.c.l.b16 %v875
        %v974 = vunpack.c.l.b16 %v889
        %v975 = vunpack.c.l.b16 %v903
        %v976 = vunpack.c.l.b16 %v917
        %v977 = vunpack.c.l.b16 %v931
        %v978 = vunpack.c.l.b16 %v945
        %v979 = vpack.c.b16 %v972, %v971
        %v980 = vpack.c.b16 %v974, %v973
        %v981 = vpack.c.b16 %v976, %v975
        %v982 = vpack.c.b16 %v978, %v977
        %v1003 = vunpack.c.l.b16 %v955
        %v1004 = vunpack.c.l.b16 %v956
        %v1005 = vunpack.c.l.b16 %v957
        %v1006 = vunpack.c.l.b16 %v958
        %v1007 = vunpack.c.l.b16 %v959
        %v1008 = vunpack.c.l.b16 %v960
        %v1009 = vunpack.c.l.b16 %v961
        %v1010 = vunpack.c.l.b16 %v962
        %v1011 = vunpack.c.l.b16 %v963
        %v1012 = vunpack.c.l.b16 %v964
        %v1013 = vunpack.c.l.b16 %v965
        %v1014 = vunpack.c.l.b16 %v966
        %v1015 = vunpack.c.l.b16 %v967
        %v1016 = vunpack.c.l.b16 %v968
        %v1017 = vunpack.c.l.b16 %v969
        %v1018 = vunpack.c.l.b16 %v970
        %v1019 = vpack.c.b16 %v1004, %v1003
        %v1020 = vpack.c.b16 %v1006, %v1005
        %v1021 = vpack.c.b16 %v1008, %v1007
        %v1022 = vpack.c.b16 %v1010, %v1009
        %v1023 = vpack.c.b16 %v1012, %v1011
        %v1024 = vpack.c.b16 %v1014, %v1013
        %v1025 = vpack.c.b16 %v1016, %v1015
        %v1026 = vpack.c.b16 %v1018, %v1017
        %1035 = vmatprep.subr.bf16.mxu0 0
        %1036 = vmatpush1.bf16.msra.mxu0 %v1019
        %1037 = vmatprep.subr.bf16.mxu0 0
        %1038 = vmatpush1.bf16.msra.mxu0 %v1020
        %1039 = vmatprep.subr.bf16.mxu0 0
        %1040 = vmatpush1.bf16.msra.mxu0 %v1021
        %1041 = vmatprep.subr.bf16.mxu0 0
        %1042 = vmatpush1.bf16.msra.mxu0 %v1022
        %1043 = vmatprep.subr.bf16.mxu0 0
        %1044 = vmatpush1.bf16.msra.mxu0 %v1023
        %1045 = vmatprep.subr.bf16.mxu0 0
        %1046 = vmatpush1.bf16.msra.mxu0 %v1024
        %1047 = vmatprep.subr.bf16.mxu0 0
        %1048 = vmatpush1.bf16.msra.mxu0 %v1025
        %1049 = vmatprep.subr.bf16.mxu0 0
        %1050 = vmatpush1.bf16.msra.mxu0 %v1026
        %1051 = vmatprep.subr.bf16.mxu0 0
        %1052 = vmatpush1.bf16.msra.mxu0 0
        %1053 = vmatprep.subr.bf16.mxu0 0
        %1054 = vmatpush1.bf16.msra.mxu0 0
        %1055 = vmatprep.subr.bf16.mxu0 0
        %1056 = vmatpush1.bf16.msra.mxu0 0
        %1057 = vmatprep.subr.bf16.mxu0 0
        %1058 = vmatpush1.bf16.msra.mxu0 0
        %1059 = vmatprep.subr.bf16.mxu0 0
        %1060 = vmatpush1.bf16.msra.mxu0 0
        %1061 = vmatprep.subr.bf16.mxu0 0
        %1062 = vmatpush1.bf16.msra.mxu0 0
        %1063 = vmatprep.subr.bf16.mxu0 0
        %1064 = vmatpush1.bf16.msra.mxu0 0
        %1065 = vmatprep.subr.bf16.mxu0 0
        %1066 = vmatpush1.bf16.msra.mxu0 0
        %1067 = vmatprep.mubr.bf16.mxu0 0
        %1068 = vmatmul.mubr.bf16.gmra.mrb[0].mxu0 %v979
        %v1069 = vpop.f32.mrb[0].mxu0
        %v1070 = vadd.f32 0.0, %v1069
        %v1071 = vpop.f32.mrb[0].mxu0
        %v1072 = vpop.f32.mrb[0].mxu0
        %v1073 = vadd.f32 0.0, %v1072
        %v1074 = vpop.f32.mrb[0].mxu0
        %1075 = vmatprep.mubr.bf16.mxu0 0
        %1076 = vmatmul.mubr.bf16.gmra.mrb[0].mxu0 %v980
        %v1077 = vpop.f32.mrb[0].mxu0
        %v1078 = vadd.f32 0.0, %v1077
        %v1079 = vpop.f32.mrb[0].mxu0
        %v1080 = vpop.f32.mrb[0].mxu0
        %v1081 = vadd.f32 0.0, %v1080
        %v1082 = vpop.f32.mrb[0].mxu0
        %1083 = vmatprep.mubr.bf16.mxu0 0
        %1084 = vmatmul.mubr.bf16.gmra.mrb[0].mxu0 %v981
        %v1085 = vpop.f32.mrb[0].mxu0
        %v1086 = vadd.f32 0.0, %v1085
        %v1087 = vpop.f32.mrb[0].mxu0
        %v1088 = vpop.f32.mrb[0].mxu0
        %v1089 = vadd.f32 0.0, %v1088
        %v1090 = vpop.f32.mrb[0].mxu0
        %1091 = vmatprep.mubr.bf16.mxu0 0
        %1092 = vmatmul.mubr.bf16.gmra.mrb[0].mxu0 %v982
        %v1093 = vpop.f32.mrb[0].mxu0
        %v1094 = vadd.f32 0.0, %v1093
        %v1095 = vpop.f32.mrb[0].mxu0
        %v1096 = vpop.f32.mrb[0].mxu0
        %v1097 = vadd.f32 0.0, %v1096
        %v1098 = vpop.f32.mrb[0].mxu0
        %1099 = vdwg.mxu0
        %v1100 = vadd.f32 %v946, %v1070
        %v1101 = vadd.f32 %v947, %v1073
        %v1102 = vadd.f32 %v948, %v1078
        %v1103 = vadd.f32 %v949, %v1081
        %v1104 = vadd.f32 %v950, %v1086
        %v1105 = vadd.f32 %v951, %v1089
        %v1106 = vadd.f32 %v952, %v1094
        %v1107 = vadd.f32 %v953, %v1097
        %1108 = vst [vmem:[#allocation2] sm:$0xff] %v1100
        %1109 = vst [vmem:[#allocation2 + $0x8] sm:$0xff] %v1101
        %1110 = vst [vmem:[#allocation2 + $0x10] sm:$0xff] %v1102
        %1111 = vst [vmem:[#allocation2 + $0x18] sm:$0xff] %v1103
        %1112 = vst [vmem:[#allocation2 + $0x20] sm:$0xff] %v1104
        %1113 = vst [vmem:[#allocation2 + $0x28] sm:$0xff] %v1105
        %1114 = vst [vmem:[#allocation2 + $0x30] sm:$0xff] %v1106
        %1115 = vst [vmem:[#allocation2 + $0x38] sm:$0xff] %v1107
        %v1116 = vld [vmem:[%s373] sm:$0xf]
        %v1117 = vld [vmem:[%s373 + $0x8] sm:$0xf]
        %v1118 = vld [vmem:[%s373 + $0x10] sm:$0xf]
        %v1119 = vld [vmem:[%s373 + $0x18] sm:$0xf]
        %v1120 = vld [vmem:[%s373 + $0x20] sm:$0xf]
        %v1121 = vld [vmem:[%s373 + $0x28] sm:$0xf]
        %v1122 = vld [vmem:[%s373 + $0x30] sm:$0xf]
        %v1123 = vld [vmem:[%s373 + $0x38] sm:$0xf]
        %v1124 = vld [vmem:[#allocation2] sm:$0xff]
        %v1125 = vld [vmem:[#allocation2 + $0x8] sm:$0xff]
        %v1126 = vld [vmem:[#allocation2 + $0x10] sm:$0xff]
        %v1127 = vld [vmem:[#allocation2 + $0x18] sm:$0xff]
        %v1128 = vld [vmem:[#allocation2 + $0x20] sm:$0xff]
        %v1129 = vld [vmem:[#allocation2 + $0x28] sm:$0xff]
        %v1130 = vld [vmem:[#allocation2 + $0x30] sm:$0xff]
        %v1131 = vld [vmem:[#allocation2 + $0x38] sm:$0xff]
        %s1132 = scalar_lea.vmem [#allocation11], 192
        %v1133 = vld [vmem:[%s1132] sm:$0xf]
        %v1134 = vld [vmem:[%s1132 + $0x4] sm:$0xf]
        %v1135 = vld [vmem:[%s1132 + $0x8] sm:$0xf]
        %v1136 = vld [vmem:[%s1132 + $0xc] sm:$0xf]
        %v1137 = vld [vmem:[%s1132 + $0x10] sm:$0xf]
        %v1138 = vld [vmem:[%s1132 + $0x14] sm:$0xf]
        %v1139 = vld [vmem:[%s1132 + $0x18] sm:$0xf]
        %v1140 = vld [vmem:[%s1132 + $0x1c] sm:$0xf]
        %v1141 = vld [vmem:[%s1132 + $0x20] sm:$0xf]
        %v1142 = vld [vmem:[%s1132 + $0x24] sm:$0xf]
        %v1143 = vld [vmem:[%s1132 + $0x28] sm:$0xf]
        %v1144 = vld [vmem:[%s1132 + $0x2c] sm:$0xf]
        %v1145 = vld [vmem:[%s1132 + $0x30] sm:$0xf]
        %v1146 = vld [vmem:[%s1132 + $0x34] sm:$0xf]
        %v1147 = vld [vmem:[%s1132 + $0x38] sm:$0xf]
        %v1148 = vld [vmem:[%s1132 + $0x3c] sm:$0xf]
        %v1157 = vunpack.c.l.b16 %v1116
        %v1158 = vunpack.c.l.b16 %v1117
        %v1159 = vunpack.c.l.b16 %v1118
        %v1160 = vunpack.c.l.b16 %v1119
        %v1161 = vunpack.c.l.b16 %v1120
        %v1162 = vunpack.c.l.b16 %v1121
        %v1163 = vunpack.c.l.b16 %v1122
        %v1164 = vunpack.c.l.b16 %v1123
        %v1165 = vpack.c.b16 %v1158, %v1157
        %v1166 = vpack.c.b16 %v1160, %v1159
        %v1167 = vpack.c.b16 %v1162, %v1161
        %v1168 = vpack.c.b16 %v1164, %v1163
        %v1189 = vunpack.c.l.b16 %v1133
        %v1190 = vunpack.c.l.b16 %v1134
        %v1191 = vunpack.c.l.b16 %v1135
        %v1192 = vunpack.c.l.b16 %v1136
        %v1193 = vunpack.c.l.b16 %v1137
        %v1194 = vunpack.c.l.b16 %v1138
        %v1195 = vunpack.c.l.b16 %v1139
        %v1196 = vunpack.c.l.b16 %v1140
        %v1197 = vunpack.c.l.b16 %v1141
        %v1198 = vunpack.c.l.b16 %v1142
        %v1199 = vunpack.c.l.b16 %v1143
        %v1200 = vunpack.c.l.b16 %v1144
        %v1201 = vunpack.c.l.b16 %v1145
        %v1202 = vunpack.c.l.b16 %v1146
        %v1203 = vunpack.c.l.b16 %v1147
        %v1204 = vunpack.c.l.b16 %v1148
        %v1205 = vpack.c.b16 %v1190, %v1189
        %v1206 = vpack.c.b16 %v1192, %v1191
        %v1207 = vpack.c.b16 %v1194, %v1193
        %v1208 = vpack.c.b16 %v1196, %v1195
        %v1209 = vpack.c.b16 %v1198, %v1197
        %v1210 = vpack.c.b16 %v1200, %v1199
        %v1211 = vpack.c.b16 %v1202, %v1201
        %v1212 = vpack.c.b16 %v1204, %v1203
        %1221 = vmatprep.subr.bf16.mxu0 0
        %1222 = vmatpush1.bf16.msra.mxu0 %v1205
        %1223 = vmatprep.subr.bf16.mxu0 0
        %1224 = vmatpush1.bf16.msra.mxu0 %v1206
        %1225 = vmatprep.subr.bf16.mxu0 0
        %1226 = vmatpush1.bf16.msra.mxu0 %v1207
        %1227 = vmatprep.subr.bf16.mxu0 0
        %1228 = vmatpush1.bf16.msra.mxu0 %v1208
        %1229 = vmatprep.subr.bf16.mxu0 0
        %1230 = vmatpush1.bf16.msra.mxu0 %v1209
        %1231 = vmatprep.subr.bf16.mxu0 0
        %1232 = vmatpush1.bf16.msra.mxu0 %v1210
        %1233 = vmatprep.subr.bf16.mxu0 0
        %1234 = vmatpush1.bf16.msra.mxu0 %v1211
        %1235 = vmatprep.subr.bf16.mxu0 0
        %1236 = vmatpush1.bf16.msra.mxu0 %v1212
        %1237 = vmatprep.subr.bf16.mxu0 0
        %1238 = vmatpush1.bf16.msra.mxu0 0
        %1239 = vmatprep.subr.bf16.mxu0 0
        %1240 = vmatpush1.bf16.msra.mxu0 0
        %1241 = vmatprep.subr.bf16.mxu0 0
        %1242 = vmatpush1.bf16.msra.mxu0 0
        %1243 = vmatprep.subr.bf16.mxu0 0
        %1244 = vmatpush1.bf16.msra.mxu0 0
        %1245 = vmatprep.subr.bf16.mxu0 0
        %1246 = vmatpush1.bf16.msra.mxu0 0
        %1247 = vmatprep.subr.bf16.mxu0 0
        %1248 = vmatpush1.bf16.msra.mxu0 0
        %1249 = vmatprep.subr.bf16.mxu0 0
        %1250 = vmatpush1.bf16.msra.mxu0 0
        %1251 = vmatprep.subr.bf16.mxu0 0
        %1252 = vmatpush1.bf16.msra.mxu0 0
        %1253 = vmatprep.mubr.bf16.mxu0 0
        %1254 = vmatmul.mubr.bf16.gmra.mrb[0].mxu0 %v1165
        %v1255 = vpop.f32.mrb[0].mxu0
        %v1256 = vadd.f32 0.0, %v1255
        %v1257 = vpop.f32.mrb[0].mxu0
        %v1258 = vpop.f32.mrb[0].mxu0
        %v1259 = vadd.f32 0.0, %v1258
        %v1260 = vpop.f32.mrb[0].mxu0
        %1261 = vmatprep.mubr.bf16.mxu0 0
        %1262 = vmatmul.mubr.bf16.gmra.mrb[0].mxu0 %v1166
        %v1263 = vpop.f32.mrb[0].mxu0
        %v1264 = vadd.f32 0.0, %v1263
        %v1265 = vpop.f32.mrb[0].mxu0
        %v1266 = vpop.f32.mrb[0].mxu0
        %v1267 = vadd.f32 0.0, %v1266
        %v1268 = vpop.f32.mrb[0].mxu0
        %1269 = vmatprep.mubr.bf16.mxu0 0
        %1270 = vmatmul.mubr.bf16.gmra.mrb[0].mxu0 %v1167
        %v1271 = vpop.f32.mrb[0].mxu0
        %v1272 = vadd.f32 0.0, %v1271
        %v1273 = vpop.f32.mrb[0].mxu0
        %v1274 = vpop.f32.mrb[0].mxu0
        %v1275 = vadd.f32 0.0, %v1274
        %v1276 = vpop.f32.mrb[0].mxu0
        %1277 = vmatprep.mubr.bf16.mxu0 0
        %1278 = vmatmul.mubr.bf16.gmra.mrb[0].mxu0 %v1168
        %v1279 = vpop.f32.mrb[0].mxu0
        %v1280 = vadd.f32 0.0, %v1279
        %v1281 = vpop.f32.mrb[0].mxu0
        %v1282 = vpop.f32.mrb[0].mxu0
        %v1283 = vadd.f32 0.0, %v1282
        %v1284 = vpop.f32.mrb[0].mxu0
        %1285 = vdwg.mxu0
        %v1286 = vadd.f32 %v1124, %v1256
        %v1287 = vadd.f32 %v1125, %v1259
        %v1288 = vadd.f32 %v1126, %v1264
        %v1289 = vadd.f32 %v1127, %v1267
        %v1290 = vadd.f32 %v1128, %v1272
        %v1291 = vadd.f32 %v1129, %v1275
        %v1292 = vadd.f32 %v1130, %v1280
        %v1293 = vadd.f32 %v1131, %v1283
        %1294 = vst [vmem:[#allocation2] sm:$0xff] %v1286
        %1295 = vst [vmem:[#allocation2 + $0x8] sm:$0xff] %v1287
        %1296 = vst [vmem:[#allocation2 + $0x10] sm:$0xff] %v1288
        %1297 = vst [vmem:[#allocation2 + $0x18] sm:$0xff] %v1289
        %1298 = vst [vmem:[#allocation2 + $0x20] sm:$0xff] %v1290
        %1299 = vst [vmem:[#allocation2 + $0x28] sm:$0xff] %v1291
        %1300 = vst [vmem:[#allocation2 + $0x30] sm:$0xff] %v1292
        %1301 = vst [vmem:[#allocation2 + $0x38] sm:$0xff] %v1293
        %v1302 = vld [vmem:[%s382] sm:$0xf]
        %v1303 = vld [vmem:[%s382 + $0x8] sm:$0xf]
        %v1304 = vld [vmem:[%s382 + $0x10] sm:$0xf]
        %v1305 = vld [vmem:[%s382 + $0x18] sm:$0xf]
        %v1306 = vld [vmem:[%s382 + $0x20] sm:$0xf]
        %v1307 = vld [vmem:[%s382 + $0x28] sm:$0xf]
        %v1308 = vld [vmem:[%s382 + $0x30] sm:$0xf]
        %v1309 = vld [vmem:[%s382 + $0x38] sm:$0xf]
        %v1310 = vld [vmem:[#allocation2] sm:$0xff]
        %v1311 = vld [vmem:[#allocation2 + $0x8] sm:$0xff]
        %v1312 = vld [vmem:[#allocation2 + $0x10] sm:$0xff]
        %v1313 = vld [vmem:[#allocation2 + $0x18] sm:$0xff]
        %v1314 = vld [vmem:[#allocation2 + $0x20] sm:$0xff]
        %v1315 = vld [vmem:[#allocation2 + $0x28] sm:$0xff]
        %v1316 = vld [vmem:[#allocation2 + $0x30] sm:$0xff]
        %v1317 = vld [vmem:[#allocation2 + $0x38] sm:$0xff]
        %s1318 = scalar_lea.vmem [#allocation11], 256
        %v1319 = vld [vmem:[%s1318] sm:$0xf]
        %v1320 = vld [vmem:[%s1318 + $0x4] sm:$0xf]
        %v1321 = vld [vmem:[%s1318 + $0x8] sm:$0xf]
        %v1322 = vld [vmem:[%s1318 + $0xc] sm:$0xf]
        %v1323 = vld [vmem:[%s1318 + $0x10] sm:$0xf]
        %v1324 = vld [vmem:[%s1318 + $0x14] sm:$0xf]
        %v1325 = vld [vmem:[%s1318 + $0x18] sm:$0xf]
        %v1326 = vld [vmem:[%s1318 + $0x1c] sm:$0xf]
        %v1327 = vld [vmem:[%s1318 + $0x20] sm:$0xf]
        %v1328 = vld [vmem:[%s1318 + $0x24] sm:$0xf]
        %v1329 = vld [vmem:[%s1318 + $0x28] sm:$0xf]
        %v1330 = vld [vmem:[%s1318 + $0x2c] sm:$0xf]
        %v1331 = vld [vmem:[%s1318 + $0x30] sm:$0xf]
        %v1332 = vld [vmem:[%s1318 + $0x34] sm:$0xf]
        %v1333 = vld [vmem:[%s1318 + $0x38] sm:$0xf]
        %v1334 = vld [vmem:[%s1318 + $0x3c] sm:$0xf]
        %v1343 = vunpack.c.l.b16 %v1302
        %v1344 = vunpack.c.l.b16 %v1303
        %v1345 = vunpack.c.l.b16 %v1304
        %v1346 = vunpack.c.l.b16 %v1305
        %v1347 = vunpack.c.l.b16 %v1306
        %v1348 = vunpack.c.l.b16 %v1307
        %v1349 = vunpack.c.l.b16 %v1308
        %v1350 = vunpack.c.l.b16 %v1309
        %v1351 = vpack.c.b16 %v1344, %v1343
        %v1352 = vpack.c.b16 %v1346, %v1345
        %v1353 = vpack.c.b16 %v1348, %v1347
        %v1354 = vpack.c.b16 %v1350, %v1349
        %v1375 = vunpack.c.l.b16 %v1319
        %v1376 = vunpack.c.l.b16 %v1320
        %v1377 = vunpack.c.l.b16 %v1321
        %v1378 = vunpack.c.l.b16 %v1322
        %v1379 = vunpack.c.l.b16 %v1323
        %v1380 = vunpack.c.l.b16 %v1324
        %v1381 = vunpack.c.l.b16 %v1325
        %v1382 = vunpack.c.l.b16 %v1326
        %v1383 = vunpack.c.l.b16 %v1327
        %v1384 = vunpack.c.l.b16 %v1328
        %v1385 = vunpack.c.l.b16 %v1329
        %v1386 = vunpack.c.l.b16 %v1330
        %v1387 = vunpack.c.l.b16 %v1331
        %v1388 = vunpack.c.l.b16 %v1332
        %v1389 = vunpack.c.l.b16 %v1333
        %v1390 = vunpack.c.l.b16 %v1334
        %v1391 = vpack.c.b16 %v1376, %v1375
        %v1392 = vpack.c.b16 %v1378, %v1377
        %v1393 = vpack.c.b16 %v1380, %v1379
        %v1394 = vpack.c.b16 %v1382, %v1381
        %v1395 = vpack.c.b16 %v1384, %v1383
        %v1396 = vpack.c.b16 %v1386, %v1385
        %v1397 = vpack.c.b16 %v1388, %v1387
        %v1398 = vpack.c.b16 %v1390, %v1389
        %1407 = vmatprep.subr.bf16.mxu0 0
        %1408 = vmatpush1.bf16.msra.mxu0 %v1391
        %1409 = vmatprep.subr.bf16.mxu0 0
        %1410 = vmatpush1.bf16.msra.mxu0 %v1392
        %1411 = vmatprep.subr.bf16.mxu0 0
        %1412 = vmatpush1.bf16.msra.mxu0 %v1393
        %1413 = vmatprep.subr.bf16.mxu0 0
        %1414 = vmatpush1.bf16.msra.mxu0 %v1394
        %1415 = vmatprep.subr.bf16.mxu0 0
        %1416 = vmatpush1.bf16.msra.mxu0 %v1395
        %1417 = vmatprep.subr.bf16.mxu0 0
        %1418 = vmatpush1.bf16.msra.mxu0 %v1396
        %1419 = vmatprep.subr.bf16.mxu0 0
        %1420 = vmatpush1.bf16.msra.mxu0 %v1397
        %1421 = vmatprep.subr.bf16.mxu0 0
        %1422 = vmatpush1.bf16.msra.mxu0 %v1398
        %1423 = vmatprep.subr.bf16.mxu0 0
        %1424 = vmatpush1.bf16.msra.mxu0 0
        %1425 = vmatprep.subr.bf16.mxu0 0
        %1426 = vmatpush1.bf16.msra.mxu0 0
        %1427 = vmatprep.subr.bf16.mxu0 0
        %1428 = vmatpush1.bf16.msra.mxu0 0
        %1429 = vmatprep.subr.bf16.mxu0 0
        %1430 = vmatpush1.bf16.msra.mxu0 0
        %1431 = vmatprep.subr.bf16.mxu0 0
        %1432 = vmatpush1.bf16.msra.mxu0 0
        %1433 = vmatprep.subr.bf16.mxu0 0
        %1434 = vmatpush1.bf16.msra.mxu0 0
        %1435 = vmatprep.subr.bf16.mxu0 0
        %1436 = vmatpush1.bf16.msra.mxu0 0
        %1437 = vmatprep.subr.bf16.mxu0 0
        %1438 = vmatpush1.bf16.msra.mxu0 0
        %1439 = vmatprep.mubr.bf16.mxu0 0
        %1440 = vmatmul.mubr.bf16.gmra.mrb[0].mxu0 %v1351
        %v1441 = vpop.f32.mrb[0].mxu0
        %v1442 = vadd.f32 0.0, %v1441
        %v1443 = vpop.f32.mrb[0].mxu0
        %v1444 = vpop.f32.mrb[0].mxu0
        %v1445 = vadd.f32 0.0, %v1444
        %v1446 = vpop.f32.mrb[0].mxu0
        %1447 = vmatprep.mubr.bf16.mxu0 0
        %1448 = vmatmul.mubr.bf16.gmra.mrb[0].mxu0 %v1352
        %v1449 = vpop.f32.mrb[0].mxu0
        %v1450 = vadd.f32 0.0, %v1449
        %v1451 = vpop.f32.mrb[0].mxu0
        %v1452 = vpop.f32.mrb[0].mxu0
        %v1453 = vadd.f32 0.0, %v1452
        %v1454 = vpop.f32.mrb[0].mxu0
        %1455 = vmatprep.mubr.bf16.mxu0 0
        %1456 = vmatmul.mubr.bf16.gmra.mrb[0].mxu0 %v1353
        %v1457 = vpop.f32.mrb[0].mxu0
        %v1458 = vadd.f32 0.0, %v1457
        %v1459 = vpop.f32.mrb[0].mxu0
        %v1460 = vpop.f32.mrb[0].mxu0
        %v1461 = vadd.f32 0.0, %v1460
        %v1462 = vpop.f32.mrb[0].mxu0
        %1463 = vmatprep.mubr.bf16.mxu0 0
        %1464 = vmatmul.mubr.bf16.gmra.mrb[0].mxu0 %v1354
        %v1465 = vpop.f32.mrb[0].mxu0
        %v1466 = vadd.f32 0.0, %v1465
        %v1467 = vpop.f32.mrb[0].mxu0
        %v1468 = vpop.f32.mrb[0].mxu0
        %v1469 = vadd.f32 0.0, %v1468
        %v1470 = vpop.f32.mrb[0].mxu0
        %1471 = vdwg.mxu0
        %v1472 = vadd.f32 %v1310, %v1442
        %v1473 = vadd.f32 %v1311, %v1445
        %v1474 = vadd.f32 %v1312, %v1450
        %v1475 = vadd.f32 %v1313, %v1453
        %v1476 = vadd.f32 %v1314, %v1458
        %v1477 = vadd.f32 %v1315, %v1461
        %v1478 = vadd.f32 %v1316, %v1466
        %v1479 = vadd.f32 %v1317, %v1469
        %1480 = vst [vmem:[#allocation2] sm:$0xff] %v1472
        %1481 = vst [vmem:[#allocation2 + $0x8] sm:$0xff] %v1473
        %1482 = vst [vmem:[#allocation2 + $0x10] sm:$0xff] %v1474
        %1483 = vst [vmem:[#allocation2 + $0x18] sm:$0xff] %v1475
        %1484 = vst [vmem:[#allocation2 + $0x20] sm:$0xff] %v1476
        %1485 = vst [vmem:[#allocation2 + $0x28] sm:$0xff] %v1477
        %1486 = vst [vmem:[#allocation2 + $0x30] sm:$0xff] %v1478
        %1487 = vst [vmem:[#allocation2 + $0x38] sm:$0xff] %v1479
        %v1488 = vld [vmem:[%s373] sm:$0xf]
        %v1489 = vld [vmem:[%s373 + $0x4] sm:$0x1]
        %v1490 = vld [vmem:[%s373 + $0x8] sm:$0xf]
        %v1491 = vld [vmem:[%s373 + $0xc] sm:$0x1]
        %v1492 = vld [vmem:[%s373 + $0x10] sm:$0xf]
        %v1493 = vld [vmem:[%s373 + $0x14] sm:$0x1]
        %v1494 = vld [vmem:[%s373 + $0x18] sm:$0xf]
        %v1495 = vld [vmem:[%s373 + $0x1c] sm:$0x1]
        %v1496 = vld [vmem:[%s373 + $0x20] sm:$0xf]
        %v1497 = vld [vmem:[%s373 + $0x24] sm:$0x1]
        %v1498 = vld [vmem:[%s373 + $0x28] sm:$0xf]
        %v1499 = vld [vmem:[%s373 + $0x2c] sm:$0x1]
        %v1500 = vld [vmem:[%s373 + $0x30] sm:$0xf]
        %v1501 = vld [vmem:[%s373 + $0x34] sm:$0x1]
        %v1502 = vld [vmem:[%s373 + $0x38] sm:$0xf]
        %v1503 = vld [vmem:[%s373 + $0x3c] sm:$0x1]
        %v1505 = vshrl.u32 %v1488, 16
        %v1507 = vrot.slane %v1505, 4
        %v1508 = vshll.u32 %v1488, 16
        %v1510 = vrot.slane %v1508, 5
        %v1511 = vor.u32 %v1507, %v1510
        %v1512 = vrot.slane %v1511, 4
        %v1514 = vshll.u32 %v1489, 16
        %v1516 = vrot.slane %v1514, 5
        %v1517 = vsel %vm833, %v1512, %v1516
        %v1519 = vshrl.u32 %v1490, 16
        %v1521 = vrot.slane %v1519, 4
        %v1522 = vshll.u32 %v1490, 16
        %v1524 = vrot.slane %v1522, 5
        %v1525 = vor.u32 %v1521, %v1524
        %v1526 = vrot.slane %v1525, 4
        %v1528 = vshll.u32 %v1491, 16
        %v1530 = vrot.slane %v1528, 5
        %v1531 = vsel %vm833, %v1526, %v1530
        %v1533 = vshrl.u32 %v1492, 16
        %v1535 = vrot.slane %v1533, 4
        %v1536 = vshll.u32 %v1492, 16
        %v1538 = vrot.slane %v1536, 5
        %v1539 = vor.u32 %v1535, %v1538
        %v1540 = vrot.slane %v1539, 4
        %v1542 = vshll.u32 %v1493, 16
        %v1544 = vrot.slane %v1542, 5
        %v1545 = vsel %vm833, %v1540, %v1544
        %v1547 = vshrl.u32 %v1494, 16
        %v1549 = vrot.slane %v1547, 4
        %v1550 = vshll.u32 %v1494, 16
        %v1552 = vrot.slane %v1550, 5
        %v1553 = vor.u32 %v1549, %v1552
        %v1554 = vrot.slane %v1553, 4
        %v1556 = vshll.u32 %v1495, 16
        %v1558 = vrot.slane %v1556, 5
        %v1559 = vsel %vm833, %v1554, %v1558
        %v1561 = vshrl.u32 %v1496, 16
        %v1563 = vrot.slane %v1561, 4
        %v1564 = vshll.u32 %v1496, 16
        %v1566 = vrot.slane %v1564, 5
        %v1567 = vor.u32 %v1563, %v1566
        %v1568 = vrot.slane %v1567, 4
        %v1570 = vshll.u32 %v1497, 16
        %v1572 = vrot.slane %v1570, 5
        %v1573 = vsel %vm833, %v1568, %v1572
        %v1575 = vshrl.u32 %v1498, 16
        %v1577 = vrot.slane %v1575, 4
        %v1578 = vshll.u32 %v1498, 16
        %v1580 = vrot.slane %v1578, 5
        %v1581 = vor.u32 %v1577, %v1580
        %v1582 = vrot.slane %v1581, 4
        %v1584 = vshll.u32 %v1499, 16
        %v1586 = vrot.slane %v1584, 5
        %v1587 = vsel %vm833, %v1582, %v1586
        %v1589 = vshrl.u32 %v1500, 16
        %v1591 = vrot.slane %v1589, 4
        %v1592 = vshll.u32 %v1500, 16
        %v1594 = vrot.slane %v1592, 5
        %v1595 = vor.u32 %v1591, %v1594
        %v1596 = vrot.slane %v1595, 4
        %v1598 = vshll.u32 %v1501, 16
        %v1600 = vrot.slane %v1598, 5
        %v1601 = vsel %vm833, %v1596, %v1600
        %v1603 = vshrl.u32 %v1502, 16
        %v1605 = vrot.slane %v1603, 4
        %v1606 = vshll.u32 %v1502, 16
        %v1608 = vrot.slane %v1606, 5
        %v1609 = vor.u32 %v1605, %v1608
        %v1610 = vrot.slane %v1609, 4
        %v1612 = vshll.u32 %v1503, 16
        %v1614 = vrot.slane %v1612, 5
        %v1615 = vsel %vm833, %v1610, %v1614
        %v1616 = vld [vmem:[#allocation2] sm:$0xff]
        %v1617 = vld [vmem:[#allocation2 + $0x8] sm:$0xff]
        %v1618 = vld [vmem:[#allocation2 + $0x10] sm:$0xff]
        %v1619 = vld [vmem:[#allocation2 + $0x18] sm:$0xff]
        %v1620 = vld [vmem:[#allocation2 + $0x20] sm:$0xff]
        %v1621 = vld [vmem:[#allocation2 + $0x28] sm:$0xff]
        %v1622 = vld [vmem:[#allocation2 + $0x30] sm:$0xff]
        %v1623 = vld [vmem:[#allocation2 + $0x38] sm:$0xff]
        %s1624 = scalar_lea.vmem [#allocation11], 320
        %v1625 = vld [vmem:[%s1624] sm:$0xf]
        %v1626 = vld [vmem:[%s1624 + $0x4] sm:$0xf]
        %v1627 = vld [vmem:[%s1624 + $0x8] sm:$0xf]
        %v1628 = vld [vmem:[%s1624 + $0xc] sm:$0xf]
        %v1629 = vld [vmem:[%s1624 + $0x10] sm:$0xf]
        %v1630 = vld [vmem:[%s1624 + $0x14] sm:$0xf]
        %v1631 = vld [vmem:[%s1624 + $0x18] sm:$0xf]
        %v1632 = vld [vmem:[%s1624 + $0x1c] sm:$0xf]
        %v1633 = vld [vmem:[%s1624 + $0x20] sm:$0xf]
        %v1634 = vld [vmem:[%s1624 + $0x24] sm:$0xf]
        %v1635 = vld [vmem:[%s1624 + $0x28] sm:$0xf]
        %v1636 = vld [vmem:[%s1624 + $0x2c] sm:$0xf]
        %v1637 = vld [vmem:[%s1624 + $0x30] sm:$0xf]
        %v1638 = vld [vmem:[%s1624 + $0x34] sm:$0xf]
        %v1639 = vld [vmem:[%s1624 + $0x38] sm:$0xf]
        %v1640 = vld [vmem:[%s1624 + $0x3c] sm:$0xf]
        %v1641 = vunpack.c.l.b16 %v1517
        %v1642 = vunpack.c.l.b16 %v1531
        %v1643 = vunpack.c.l.b16 %v1545
        %v1644 = vunpack.c.l.b16 %v1559
        %v1645 = vunpack.c.l.b16 %v1573
        %v1646 = vunpack.c.l.b16 %v1587
        %v1647 = vunpack.c.l.b16 %v1601
        %v1648 = vunpack.c.l.b16 %v1615
        %v1649 = vpack.c.b16 %v1642, %v1641
        %v1650 = vpack.c.b16 %v1644, %v1643
        %v1651 = vpack.c.b16 %v1646, %v1645
        %v1652 = vpack.c.b16 %v1648, %v1647
        %v1673 = vunpack.c.l.b16 %v1625
        %v1674 = vunpack.c.l.b16 %v1626
        %v1675 = vunpack.c.l.b16 %v1627
        %v1676 = vunpack.c.l.b16 %v1628
        %v1677 = vunpack.c.l.b16 %v1629
        %v1678 = vunpack.c.l.b16 %v1630
        %v1679 = vunpack.c.l.b16 %v1631
        %v1680 = vunpack.c.l.b16 %v1632
        %v1681 = vunpack.c.l.b16 %v1633
        %v1682 = vunpack.c.l.b16 %v1634
        %v1683 = vunpack.c.l.b16 %v1635
        %v1684 = vunpack.c.l.b16 %v1636
        %v1685 = vunpack.c.l.b16 %v1637
        %v1686 = vunpack.c.l.b16 %v1638
        %v1687 = vunpack.c.l.b16 %v1639
        %v1688 = vunpack.c.l.b16 %v1640
        %v1689 = vpack.c.b16 %v1674, %v1673
        %v1690 = vpack.c.b16 %v1676, %v1675
        %v1691 = vpack.c.b16 %v1678, %v1677
        %v1692 = vpack.c.b16 %v1680, %v1679
        %v1693 = vpack.c.b16 %v1682, %v1681
        %v1694 = vpack.c.b16 %v1684, %v1683
        %v1695 = vpack.c.b16 %v1686, %v1685
        %v1696 = vpack.c.b16 %v1688, %v1687
        %1705 = vmatprep.subr.bf16.mxu0 0
        %1706 = vmatpush1.bf16.msra.mxu0 %v1689
        %1707 = vmatprep.subr.bf16.mxu0 0
        %1708 = vmatpush1.bf16.msra.mxu0 %v1690
        %1709 = vmatprep.subr.bf16.mxu0 0
        %1710 = vmatpush1.bf16.msra.mxu0 %v1691
        %1711 = vmatprep.subr.bf16.mxu0 0
        %1712 = vmatpush1.bf16.msra.mxu0 %v1692
        %1713 = vmatprep.subr.bf16.mxu0 0
        %1714 = vmatpush1.bf16.msra.mxu0 %v1693
        %1715 = vmatprep.subr.bf16.mxu0 0
        %1716 = vmatpush1.bf16.msra.mxu0 %v1694
        %1717 = vmatprep.subr.bf16.mxu0 0
        %1718 = vmatpush1.bf16.msra.mxu0 %v1695
        %1719 = vmatprep.subr.bf16.mxu0 0
        %1720 = vmatpush1.bf16.msra.mxu0 %v1696
        %1721 = vmatprep.subr.bf16.mxu0 0
        %1722 = vmatpush1.bf16.msra.mxu0 0
        %1723 = vmatprep.subr.bf16.mxu0 0
        %1724 = vmatpush1.bf16.msra.mxu0 0
        %1725 = vmatprep.subr.bf16.mxu0 0
        %1726 = vmatpush1.bf16.msra.mxu0 0
        %1727 = vmatprep.subr.bf16.mxu0 0
        %1728 = vmatpush1.bf16.msra.mxu0 0
        %1729 = vmatprep.subr.bf16.mxu0 0
        %1730 = vmatpush1.bf16.msra.mxu0 0
        %1731 = vmatprep.subr.bf16.mxu0 0
        %1732 = vmatpush1.bf16.msra.mxu0 0
        %1733 = vmatprep.subr.bf16.mxu0 0
        %1734 = vmatpush1.bf16.msra.mxu0 0
        %1735 = vmatprep.subr.bf16.mxu0 0
        %1736 = vmatpush1.bf16.msra.mxu0 0
        %1737 = vmatprep.mubr.bf16.mxu0 0
        %1738 = vmatmul.mubr.bf16.gmra.mrb[0].mxu0 %v1649
        %v1739 = vpop.f32.mrb[0].mxu0
        %v1740 = vadd.f32 0.0, %v1739
        %v1741 = vpop.f32.mrb[0].mxu0
        %v1742 = vpop.f32.mrb[0].mxu0
        %v1743 = vadd.f32 0.0, %v1742
        %v1744 = vpop.f32.mrb[0].mxu0
        %1745 = vmatprep.mubr.bf16.mxu0 0
        %1746 = vmatmul.mubr.bf16.gmra.mrb[0].mxu0 %v1650
        %v1747 = vpop.f32.mrb[0].mxu0
        %v1748 = vadd.f32 0.0, %v1747
        %v1749 = vpop.f32.mrb[0].mxu0
        %v1750 = vpop.f32.mrb[0].mxu0
        %v1751 = vadd.f32 0.0, %v1750
        %v1752 = vpop.f32.mrb[0].mxu0
        %1753 = vmatprep.mubr.bf16.mxu0 0
        %1754 = vmatmul.mubr.bf16.gmra.mrb[0].mxu0 %v1651
        %v1755 = vpop.f32.mrb[0].mxu0
        %v1756 = vadd.f32 0.0, %v1755
        %v1757 = vpop.f32.mrb[0].mxu0
        %v1758 = vpop.f32.mrb[0].mxu0
        %v1759 = vadd.f32 0.0, %v1758
        %v1760 = vpop.f32.mrb[0].mxu0
        %1761 = vmatprep.mubr.bf16.mxu0 0
        %1762 = vmatmul.mubr.bf16.gmra.mrb[0].mxu0 %v1652
        %v1763 = vpop.f32.mrb[0].mxu0
        %v1764 = vadd.f32 0.0, %v1763
        %v1765 = vpop.f32.mrb[0].mxu0
        %v1766 = vpop.f32.mrb[0].mxu0
        %v1767 = vadd.f32 0.0, %v1766
        %v1768 = vpop.f32.mrb[0].mxu0
        %1769 = vdwg.mxu0
        %v1770 = vadd.f32 %v1616, %v1740
        %v1771 = vadd.f32 %v1617, %v1743
        %v1772 = vadd.f32 %v1618, %v1748
        %v1773 = vadd.f32 %v1619, %v1751
        %v1774 = vadd.f32 %v1620, %v1756
        %v1775 = vadd.f32 %v1621, %v1759
        %v1776 = vadd.f32 %v1622, %v1764
        %v1777 = vadd.f32 %v1623, %v1767
        %1778 = vst [vmem:[#allocation2] sm:$0xff] %v1770
        %1779 = vst [vmem:[#allocation2 + $0x8] sm:$0xff] %v1771
        %1780 = vst [vmem:[#allocation2 + $0x10] sm:$0xff] %v1772
        %1781 = vst [vmem:[#allocation2 + $0x18] sm:$0xff] %v1773
        %1782 = vst [vmem:[#allocation2 + $0x20] sm:$0xff] %v1774
        %1783 = vst [vmem:[#allocation2 + $0x28] sm:$0xff] %v1775
        %1784 = vst [vmem:[#allocation2 + $0x30] sm:$0xff] %v1776
        %1785 = vst [vmem:[#allocation2 + $0x38] sm:$0xff] %v1777
        %s1786 = scalar_lea.vmem %s355, 8 [#allocation3]
        %v1787 = vld [vmem:[%s1786] sm:$0xf]
        %v1788 = vld [vmem:[%s1786 + $0x8] sm:$0xf]
        %v1789 = vld [vmem:[%s1786 + $0x10] sm:$0xf]
        %v1790 = vld [vmem:[%s1786 + $0x18] sm:$0xf]
        %v1791 = vld [vmem:[%s1786 + $0x20] sm:$0xf]
        %v1792 = vld [vmem:[%s1786 + $0x28] sm:$0xf]
        %v1793 = vld [vmem:[%s1786 + $0x30] sm:$0xf]
        %v1794 = vld [vmem:[%s1786 + $0x38] sm:$0xf]
        %v1795 = vld [vmem:[#allocation2] sm:$0xff]
        %v1796 = vld [vmem:[#allocation2 + $0x8] sm:$0xff]
        %v1797 = vld [vmem:[#allocation2 + $0x10] sm:$0xff]
        %v1798 = vld [vmem:[#allocation2 + $0x18] sm:$0xff]
        %v1799 = vld [vmem:[#allocation2 + $0x20] sm:$0xff]
        %v1800 = vld [vmem:[#allocation2 + $0x28] sm:$0xff]
        %v1801 = vld [vmem:[#allocation2 + $0x30] sm:$0xff]
        %v1802 = vld [vmem:[#allocation2 + $0x38] sm:$0xff]
        %s1803 = scalar_lea.vmem [#allocation11], 384
        %v1804 = vld [vmem:[%s1803] sm:$0xf]
        %v1805 = vld [vmem:[%s1803 + $0x4] sm:$0xf]
        %v1806 = vld [vmem:[%s1803 + $0x8] sm:$0xf]
        %v1807 = vld [vmem:[%s1803 + $0xc] sm:$0xf]
        %v1808 = vld [vmem:[%s1803 + $0x10] sm:$0xf]
        %v1809 = vld [vmem:[%s1803 + $0x14] sm:$0xf]
        %v1810 = vld [vmem:[%s1803 + $0x18] sm:$0xf]
        %v1811 = vld [vmem:[%s1803 + $0x1c] sm:$0xf]
        %v1812 = vld [vmem:[%s1803 + $0x20] sm:$0xf]
        %v1813 = vld [vmem:[%s1803 + $0x24] sm:$0xf]
        %v1814 = vld [vmem:[%s1803 + $0x28] sm:$0xf]
        %v1815 = vld [vmem:[%s1803 + $0x2c] sm:$0xf]
        %v1816 = vld [vmem:[%s1803 + $0x30] sm:$0xf]
        %v1817 = vld [vmem:[%s1803 + $0x34] sm:$0xf]
        %v1818 = vld [vmem:[%s1803 + $0x38] sm:$0xf]
        %v1819 = vld [vmem:[%s1803 + $0x3c] sm:$0xf]
        %v1828 = vunpack.c.l.b16 %v1787
        %v1829 = vunpack.c.l.b16 %v1788
        %v1830 = vunpack.c.l.b16 %v1789
        %v1831 = vunpack.c.l.b16 %v1790
        %v1832 = vunpack.c.l.b16 %v1791
        %v1833 = vunpack.c.l.b16 %v1792
        %v1834 = vunpack.c.l.b16 %v1793
        %v1835 = vunpack.c.l.b16 %v1794
        %v1836 = vpack.c.b16 %v1829, %v1828
        %v1837 = vpack.c.b16 %v1831, %v1830
        %v1838 = vpack.c.b16 %v1833, %v1832
        %v1839 = vpack.c.b16 %v1835, %v1834
        %v1860 = vunpack.c.l.b16 %v1804
        %v1861 = vunpack.c.l.b16 %v1805
        %v1862 = vunpack.c.l.b16 %v1806
        %v1863 = vunpack.c.l.b16 %v1807
        %v1864 = vunpack.c.l.b16 %v1808
        %v1865 = vunpack.c.l.b16 %v1809
        %v1866 = vunpack.c.l.b16 %v1810
        %v1867 = vunpack.c.l.b16 %v1811
        %v1868 = vunpack.c.l.b16 %v1812
        %v1869 = vunpack.c.l.b16 %v1813
        %v1870 = vunpack.c.l.b16 %v1814
        %v1871 = vunpack.c.l.b16 %v1815
        %v1872 = vunpack.c.l.b16 %v1816
        %v1873 = vunpack.c.l.b16 %v1817
        %v1874 = vunpack.c.l.b16 %v1818
        %v1875 = vunpack.c.l.b16 %v1819
        %v1876 = vpack.c.b16 %v1861, %v1860
        %v1877 = vpack.c.b16 %v1863, %v1862
        %v1878 = vpack.c.b16 %v1865, %v1864
        %v1879 = vpack.c.b16 %v1867, %v1866
        %v1880 = vpack.c.b16 %v1869, %v1868
        %v1881 = vpack.c.b16 %v1871, %v1870
        %v1882 = vpack.c.b16 %v1873, %v1872
        %v1883 = vpack.c.b16 %v1875, %v1874
        %1892 = vmatprep.subr.bf16.mxu0 0
        %1893 = vmatpush1.bf16.msra.mxu0 %v1876
        %1894 = vmatprep.subr.bf16.mxu0 0
        %1895 = vmatpush1.bf16.msra.mxu0 %v1877
        %1896 = vmatprep.subr.bf16.mxu0 0
        %1897 = vmatpush1.bf16.msra.mxu0 %v1878
        %1898 = vmatprep.subr.bf16.mxu0 0
        %1899 = vmatpush1.bf16.msra.mxu0 %v1879
        %1900 = vmatprep.subr.bf16.mxu0 0
        %1901 = vmatpush1.bf16.msra.mxu0 %v1880
        %1902 = vmatprep.subr.bf16.mxu0 0
        %1903 = vmatpush1.bf16.msra.mxu0 %v1881
        %1904 = vmatprep.subr.bf16.mxu0 0
        %1905 = vmatpush1.bf16.msra.mxu0 %v1882
        %1906 = vmatprep.subr.bf16.mxu0 0
        %1907 = vmatpush1.bf16.msra.mxu0 %v1883
        %1908 = vmatprep.subr.bf16.mxu0 0
        %1909 = vmatpush1.bf16.msra.mxu0 0
        %1910 = vmatprep.subr.bf16.mxu0 0
        %1911 = vmatpush1.bf16.msra.mxu0 0
        %1912 = vmatprep.subr.bf16.mxu0 0
        %1913 = vmatpush1.bf16.msra.mxu0 0
        %1914 = vmatprep.subr.bf16.mxu0 0
        %1915 = vmatpush1.bf16.msra.mxu0 0
        %1916 = vmatprep.subr.bf16.mxu0 0
        %1917 = vmatpush1.bf16.msra.mxu0 0
        %1918 = vmatprep.subr.bf16.mxu0 0
        %1919 = vmatpush1.bf16.msra.mxu0 0
        %1920 = vmatprep.subr.bf16.mxu0 0
        %1921 = vmatpush1.bf16.msra.mxu0 0
        %1922 = vmatprep.subr.bf16.mxu0 0
        %1923 = vmatpush1.bf16.msra.mxu0 0
        %1924 = vmatprep.mubr.bf16.mxu0 0
        %1925 = vmatmul.mubr.bf16.gmra.mrb[0].mxu0 %v1836
        %v1926 = vpop.f32.mrb[0].mxu0
        %v1927 = vadd.f32 0.0, %v1926
        %v1928 = vpop.f32.mrb[0].mxu0
        %v1929 = vpop.f32.mrb[0].mxu0
        %v1930 = vadd.f32 0.0, %v1929
        %v1931 = vpop.f32.mrb[0].mxu0
        %1932 = vmatprep.mubr.bf16.mxu0 0
        %1933 = vmatmul.mubr.bf16.gmra.mrb[0].mxu0 %v1837
        %v1934 = vpop.f32.mrb[0].mxu0
        %v1935 = vadd.f32 0.0, %v1934
        %v1936 = vpop.f32.mrb[0].mxu0
        %v1937 = vpop.f32.mrb[0].mxu0
        %v1938 = vadd.f32 0.0, %v1937
        %v1939 = vpop.f32.mrb[0].mxu0
        %1940 = vmatprep.mubr.bf16.mxu0 0
        %1941 = vmatmul.mubr.bf16.gmra.mrb[0].mxu0 %v1838
        %v1942 = vpop.f32.mrb[0].mxu0
        %v1943 = vadd.f32 0.0, %v1942
        %v1944 = vpop.f32.mrb[0].mxu0
        %v1945 = vpop.f32.mrb[0].mxu0
        %v1946 = vadd.f32 0.0, %v1945
        %v1947 = vpop.f32.mrb[0].mxu0
        %1948 = vmatprep.mubr.bf16.mxu0 0
        %1949 = vmatmul.mubr.bf16.gmra.mrb[0].mxu0 %v1839
        %v1950 = vpop.f32.mrb[0].mxu0
        %v1951 = vadd.f32 0.0, %v1950
        %v1952 = vpop.f32.mrb[0].mxu0
        %v1953 = vpop.f32.mrb[0].mxu0
        %v1954 = vadd.f32 0.0, %v1953
        %v1955 = vpop.f32.mrb[0].mxu0
        %1956 = vdwg.mxu0
        %v1957 = vadd.f32 %v1795, %v1927
        %v1958 = vadd.f32 %v1796, %v1930
        %v1959 = vadd.f32 %v1797, %v1935
        %v1960 = vadd.f32 %v1798, %v1938
        %v1961 = vadd.f32 %v1799, %v1943
        %v1962 = vadd.f32 %v1800, %v1946
        %v1963 = vadd.f32 %v1801, %v1951
        %v1964 = vadd.f32 %v1802, %v1954
        %1965 = vst [vmem:[#allocation2] sm:$0xff] %v1957
        %1966 = vst [vmem:[#allocation2 + $0x8] sm:$0xff] %v1958
        %1967 = vst [vmem:[#allocation2 + $0x10] sm:$0xff] %v1959
        %1968 = vst [vmem:[#allocation2 + $0x18] sm:$0xff] %v1960
        %1969 = vst [vmem:[#allocation2 + $0x20] sm:$0xff] %v1961
        %1970 = vst [vmem:[#allocation2 + $0x28] sm:$0xff] %v1962
        %1971 = vst [vmem:[#allocation2 + $0x30] sm:$0xff] %v1963
        %1972 = vst [vmem:[#allocation2 + $0x38] sm:$0xff] %v1964
        %s1973 = scalar_lea.vmem %s364, 8 [#allocation6]
        %v1974 = vld [vmem:[%s1973] sm:$0xf]
        %v1975 = vld [vmem:[%s1973 + $0x8] sm:$0xf]
        %v1976 = vld [vmem:[%s1973 + $0x10] sm:$0xf]
        %v1977 = vld [vmem:[%s1973 + $0x18] sm:$0xf]
        %v1978 = vld [vmem:[%s1973 + $0x20] sm:$0xf]
        %v1979 = vld [vmem:[%s1973 + $0x28] sm:$0xf]
        %v1980 = vld [vmem:[%s1973 + $0x30] sm:$0xf]
        %v1981 = vld [vmem:[%s1973 + $0x38] sm:$0xf]
        %v1982 = vld [vmem:[#allocation2] sm:$0xff]
        %v1983 = vld [vmem:[#allocation2 + $0x8] sm:$0xff]
        %v1984 = vld [vmem:[#allocation2 + $0x10] sm:$0xff]
        %v1985 = vld [vmem:[#allocation2 + $0x18] sm:$0xff]
        %v1986 = vld [vmem:[#allocation2 + $0x20] sm:$0xff]
        %v1987 = vld [vmem:[#allocation2 + $0x28] sm:$0xff]
        %v1988 = vld [vmem:[#allocation2 + $0x30] sm:$0xff]
        %v1989 = vld [vmem:[#allocation2 + $0x38] sm:$0xff]
        %s1990 = scalar_lea.vmem [#allocation11], 448
        %v1991 = vld [vmem:[%s1990] sm:$0xf]
        %v1992 = vld [vmem:[%s1990 + $0x4] sm:$0xf]
        %v1993 = vld [vmem:[%s1990 + $0x8] sm:$0xf]
        %v1994 = vld [vmem:[%s1990 + $0xc] sm:$0xf]
        %v1995 = vld [vmem:[%s1990 + $0x10] sm:$0xf]
        %v1996 = vld [vmem:[%s1990 + $0x14] sm:$0xf]
        %v1997 = vld [vmem:[%s1990 + $0x18] sm:$0xf]
        %v1998 = vld [vmem:[%s1990 + $0x1c] sm:$0xf]
        %v1999 = vld [vmem:[%s1990 + $0x20] sm:$0xf]
        %v2000 = vld [vmem:[%s1990 + $0x24] sm:$0xf]
        %v2001 = vld [vmem:[%s1990 + $0x28] sm:$0xf]
        %v2002 = vld [vmem:[%s1990 + $0x2c] sm:$0xf]
        %v2003 = vld [vmem:[%s1990 + $0x30] sm:$0xf]
        %v2004 = vld [vmem:[%s1990 + $0x34] sm:$0xf]
        %v2005 = vld [vmem:[%s1990 + $0x38] sm:$0xf]
        %v2006 = vld [vmem:[%s1990 + $0x3c] sm:$0xf]
        %v2015 = vunpack.c.l.b16 %v1974
        %v2016 = vunpack.c.l.b16 %v1975
        %v2017 = vunpack.c.l.b16 %v1976
        %v2018 = vunpack.c.l.b16 %v1977
        %v2019 = vunpack.c.l.b16 %v1978
        %v2020 = vunpack.c.l.b16 %v1979
        %v2021 = vunpack.c.l.b16 %v1980
        %v2022 = vunpack.c.l.b16 %v1981
        %v2023 = vpack.c.b16 %v2016, %v2015
        %v2024 = vpack.c.b16 %v2018, %v2017
        %v2025 = vpack.c.b16 %v2020, %v2019
        %v2026 = vpack.c.b16 %v2022, %v2021
        %v2047 = vunpack.c.l.b16 %v1991
        %v2048 = vunpack.c.l.b16 %v1992
        %v2049 = vunpack.c.l.b16 %v1993
        %v2050 = vunpack.c.l.b16 %v1994
        %v2051 = vunpack.c.l.b16 %v1995
        %v2052 = vunpack.c.l.b16 %v1996
        %v2053 = vunpack.c.l.b16 %v1997
        %v2054 = vunpack.c.l.b16 %v1998
        %v2055 = vunpack.c.l.b16 %v1999
        %v2056 = vunpack.c.l.b16 %v2000
        %v2057 = vunpack.c.l.b16 %v2001
        %v2058 = vunpack.c.l.b16 %v2002
        %v2059 = vunpack.c.l.b16 %v2003
        %v2060 = vunpack.c.l.b16 %v2004
        %v2061 = vunpack.c.l.b16 %v2005
        %v2062 = vunpack.c.l.b16 %v2006
        %v2063 = vpack.c.b16 %v2048, %v2047
        %v2064 = vpack.c.b16 %v2050, %v2049
        %v2065 = vpack.c.b16 %v2052, %v2051
        %v2066 = vpack.c.b16 %v2054, %v2053
        %v2067 = vpack.c.b16 %v2056, %v2055
        %v2068 = vpack.c.b16 %v2058, %v2057
        %v2069 = vpack.c.b16 %v2060, %v2059
        %v2070 = vpack.c.b16 %v2062, %v2061
        %2079 = vmatprep.subr.bf16.mxu0 0
        %2080 = vmatpush1.bf16.msra.mxu0 %v2063
        %2081 = vmatprep.subr.bf16.mxu0 0
        %2082 = vmatpush1.bf16.msra.mxu0 %v2064
        %2083 = vmatprep.subr.bf16.mxu0 0
        %2084 = vmatpush1.bf16.msra.mxu0 %v2065
        %2085 = vmatprep.subr.bf16.mxu0 0
        %2086 = vmatpush1.bf16.msra.mxu0 %v2066
        %2087 = vmatprep.subr.bf16.mxu0 0
        %2088 = vmatpush1.bf16.msra.mxu0 %v2067
        %2089 = vmatprep.subr.bf16.mxu0 0
        %2090 = vmatpush1.bf16.msra.mxu0 %v2068
        %2091 = vmatprep.subr.bf16.mxu0 0
        %2092 = vmatpush1.bf16.msra.mxu0 %v2069
        %2093 = vmatprep.subr.bf16.mxu0 0
        %2094 = vmatpush1.bf16.msra.mxu0 %v2070
        %2095 = vmatprep.subr.bf16.mxu0 0
        %2096 = vmatpush1.bf16.msra.mxu0 0
        %2097 = vmatprep.subr.bf16.mxu0 0
        %2098 = vmatpush1.bf16.msra.mxu0 0
        %2099 = vmatprep.subr.bf16.mxu0 0
        %2100 = vmatpush1.bf16.msra.mxu0 0
        %2101 = vmatprep.subr.bf16.mxu0 0
        %2102 = vmatpush1.bf16.msra.mxu0 0
        %2103 = vmatprep.subr.bf16.mxu0 0
        %2104 = vmatpush1.bf16.msra.mxu0 0
        %2105 = vmatprep.subr.bf16.mxu0 0
        %2106 = vmatpush1.bf16.msra.mxu0 0
        %2107 = vmatprep.subr.bf16.mxu0 0
        %2108 = vmatpush1.bf16.msra.mxu0 0
        %2109 = vmatprep.subr.bf16.mxu0 0
        %2110 = vmatpush1.bf16.msra.mxu0 0
        %2111 = vmatprep.mubr.bf16.mxu0 0
        %2112 = vmatmul.mubr.bf16.gmra.mrb[0].mxu0 %v2023
        %v2113 = vpop.f32.mrb[0].mxu0
        %v2114 = vadd.f32 0.0, %v2113
        %v2115 = vpop.f32.mrb[0].mxu0
        %v2116 = vpop.f32.mrb[0].mxu0
        %v2117 = vadd.f32 0.0, %v2116
        %v2118 = vpop.f32.mrb[0].mxu0
        %2119 = vmatprep.mubr.bf16.mxu0 0
        %2120 = vmatmul.mubr.bf16.gmra.mrb[0].mxu0 %v2024
        %v2121 = vpop.f32.mrb[0].mxu0
        %v2122 = vadd.f32 0.0, %v2121
        %v2123 = vpop.f32.mrb[0].mxu0
        %v2124 = vpop.f32.mrb[0].mxu0
        %v2125 = vadd.f32 0.0, %v2124
        %v2126 = vpop.f32.mrb[0].mxu0
        %2127 = vmatprep.mubr.bf16.mxu0 0
        %2128 = vmatmul.mubr.bf16.gmra.mrb[0].mxu0 %v2025
        %v2129 = vpop.f32.mrb[0].mxu0
        %v2130 = vadd.f32 0.0, %v2129
        %v2131 = vpop.f32.mrb[0].mxu0
        %v2132 = vpop.f32.mrb[0].mxu0
        %v2133 = vadd.f32 0.0, %v2132
        %v2134 = vpop.f32.mrb[0].mxu0
        %2135 = vmatprep.mubr.bf16.mxu0 0
        %2136 = vmatmul.mubr.bf16.gmra.mrb[0].mxu0 %v2026
        %v2137 = vpop.f32.mrb[0].mxu0
        %v2138 = vadd.f32 0.0, %v2137
        %v2139 = vpop.f32.mrb[0].mxu0
        %v2140 = vpop.f32.mrb[0].mxu0
        %v2141 = vadd.f32 0.0, %v2140
        %v2142 = vpop.f32.mrb[0].mxu0
        %2143 = vdwg.mxu0
        %v2144 = vadd.f32 %v1982, %v2114
        %v2145 = vadd.f32 %v1983, %v2117
        %v2146 = vadd.f32 %v1984, %v2122
        %v2147 = vadd.f32 %v1985, %v2125
        %v2148 = vadd.f32 %v1986, %v2130
        %v2149 = vadd.f32 %v1987, %v2133
        %v2150 = vadd.f32 %v1988, %v2138
        %v2151 = vadd.f32 %v1989, %v2141
        %2152 = vst [vmem:[#allocation2] sm:$0xff] %v2144
        %2153 = vst [vmem:[#allocation2 + $0x8] sm:$0xff] %v2145
        %2154 = vst [vmem:[#allocation2 + $0x10] sm:$0xff] %v2146
        %2155 = vst [vmem:[#allocation2 + $0x18] sm:$0xff] %v2147
        %2156 = vst [vmem:[#allocation2 + $0x20] sm:$0xff] %v2148
        %2157 = vst [vmem:[#allocation2 + $0x28] sm:$0xff] %v2149
        %2158 = vst [vmem:[#allocation2 + $0x30] sm:$0xff] %v2150
        %2159 = vst [vmem:[#allocation2 + $0x38] sm:$0xff] %v2151
        %v2160 = vld [vmem:[%s1786] sm:$0xf]
        %v2161 = vld [vmem:[%s1786 + $0x4] sm:$0x1]
        %v2162 = vld [vmem:[%s1786 + $0x8] sm:$0xf]
        %v2163 = vld [vmem:[%s1786 + $0xc] sm:$0x1]
        %v2164 = vld [vmem:[%s1786 + $0x10] sm:$0xf]
        %v2165 = vld [vmem:[%s1786 + $0x14] sm:$0x1]
        %v2166 = vld [vmem:[%s1786 + $0x18] sm:$0xf]
        %v2167 = vld [vmem:[%s1786 + $0x1c] sm:$0x1]
        %v2168 = vld [vmem:[%s1786 + $0x20] sm:$0xf]
        %v2169 = vld [vmem:[%s1786 + $0x24] sm:$0x1]
        %v2170 = vld [vmem:[%s1786 + $0x28] sm:$0xf]
        %v2171 = vld [vmem:[%s1786 + $0x2c] sm:$0x1]
        %v2172 = vld [vmem:[%s1786 + $0x30] sm:$0xf]
        %v2173 = vld [vmem:[%s1786 + $0x34] sm:$0x1]
        %v2174 = vld [vmem:[%s1786 + $0x38] sm:$0xf]
        %v2175 = vld [vmem:[%s1786 + $0x3c] sm:$0x1]
        %v2177 = vshrl.u32 %v2160, 16
        %v2179 = vrot.slane %v2177, 4
        %v2180 = vshll.u32 %v2160, 16
        %v2182 = vrot.slane %v2180, 5
        %v2183 = vor.u32 %v2179, %v2182
        %v2184 = vrot.slane %v2183, 4
        %v2186 = vshll.u32 %v2161, 16
        %v2188 = vrot.slane %v2186, 5
        %v2189 = vsel %vm833, %v2184, %v2188
        %v2191 = vshrl.u32 %v2162, 16
        %v2193 = vrot.slane %v2191, 4
        %v2194 = vshll.u32 %v2162, 16
        %v2196 = vrot.slane %v2194, 5
        %v2197 = vor.u32 %v2193, %v2196
        %v2198 = vrot.slane %v2197, 4
        %v2200 = vshll.u32 %v2163, 16
        %v2202 = vrot.slane %v2200, 5
        %v2203 = vsel %vm833, %v2198, %v2202
        %v2205 = vshrl.u32 %v2164, 16
        %v2207 = vrot.slane %v2205, 4
        %v2208 = vshll.u32 %v2164, 16
        %v2210 = vrot.slane %v2208, 5
        %v2211 = vor.u32 %v2207, %v2210
        %v2212 = vrot.slane %v2211, 4
        %v2214 = vshll.u32 %v2165, 16
        %v2216 = vrot.slane %v2214, 5
        %v2217 = vsel %vm833, %v2212, %v2216
        %v2219 = vshrl.u32 %v2166, 16
        %v2221 = vrot.slane %v2219, 4
        %v2222 = vshll.u32 %v2166, 16
        %v2224 = vrot.slane %v2222, 5
        %v2225 = vor.u32 %v2221, %v2224
        %v2226 = vrot.slane %v2225, 4
        %v2228 = vshll.u32 %v2167, 16
        %v2230 = vrot.slane %v2228, 5
        %v2231 = vsel %vm833, %v2226, %v2230
        %v2233 = vshrl.u32 %v2168, 16
        %v2235 = vrot.slane %v2233, 4
        %v2236 = vshll.u32 %v2168, 16
        %v2238 = vrot.slane %v2236, 5
        %v2239 = vor.u32 %v2235, %v2238
        %v2240 = vrot.slane %v2239, 4
        %v2242 = vshll.u32 %v2169, 16
        %v2244 = vrot.slane %v2242, 5
        %v2245 = vsel %vm833, %v2240, %v2244
        %v2247 = vshrl.u32 %v2170, 16
        %v2249 = vrot.slane %v2247, 4
        %v2250 = vshll.u32 %v2170, 16
        %v2252 = vrot.slane %v2250, 5
        %v2253 = vor.u32 %v2249, %v2252
        %v2254 = vrot.slane %v2253, 4
        %v2256 = vshll.u32 %v2171, 16
        %v2258 = vrot.slane %v2256, 5
        %v2259 = vsel %vm833, %v2254, %v2258
        %v2261 = vshrl.u32 %v2172, 16
        %v2263 = vrot.slane %v2261, 4
        %v2264 = vshll.u32 %v2172, 16
        %v2266 = vrot.slane %v2264, 5
        %v2267 = vor.u32 %v2263, %v2266
        %v2268 = vrot.slane %v2267, 4
        %v2270 = vshll.u32 %v2173, 16
        %v2272 = vrot.slane %v2270, 5
        %v2273 = vsel %vm833, %v2268, %v2272
        %v2275 = vshrl.u32 %v2174, 16
        %v2277 = vrot.slane %v2275, 4
        %v2278 = vshll.u32 %v2174, 16
        %v2280 = vrot.slane %v2278, 5
        %v2281 = vor.u32 %v2277, %v2280
        %v2282 = vrot.slane %v2281, 4
        %v2284 = vshll.u32 %v2175, 16
        %v2286 = vrot.slane %v2284, 5
        %v2287 = vsel %vm833, %v2282, %v2286
        %v2288 = vld [vmem:[#allocation2] sm:$0xff]
        %v2289 = vld [vmem:[#allocation2 + $0x8] sm:$0xff]
        %v2290 = vld [vmem:[#allocation2 + $0x10] sm:$0xff]
        %v2291 = vld [vmem:[#allocation2 + $0x18] sm:$0xff]
        %v2292 = vld [vmem:[#allocation2 + $0x20] sm:$0xff]
        %v2293 = vld [vmem:[#allocation2 + $0x28] sm:$0xff]
        %v2294 = vld [vmem:[#allocation2 + $0x30] sm:$0xff]
        %v2295 = vld [vmem:[#allocation2 + $0x38] sm:$0xff]
        %s2296 = scalar_lea.vmem [#allocation11], 512
        %v2297 = vld [vmem:[%s2296] sm:$0xf]
        %v2298 = vld [vmem:[%s2296 + $0x4] sm:$0xf]
        %v2299 = vld [vmem:[%s2296 + $0x8] sm:$0xf]
        %v2300 = vld [vmem:[%s2296 + $0xc] sm:$0xf]
        %v2301 = vld [vmem:[%s2296 + $0x10] sm:$0xf]
        %v2302 = vld [vmem:[%s2296 + $0x14] sm:$0xf]
        %v2303 = vld [vmem:[%s2296 + $0x18] sm:$0xf]
        %v2304 = vld [vmem:[%s2296 + $0x1c] sm:$0xf]
        %v2305 = vld [vmem:[%s2296 + $0x20] sm:$0xf]
        %v2306 = vld [vmem:[%s2296 + $0x24] sm:$0xf]
        %v2307 = vld [vmem:[%s2296 + $0x28] sm:$0xf]
        %v2308 = vld [vmem:[%s2296 + $0x2c] sm:$0xf]
        %v2309 = vld [vmem:[%s2296 + $0x30] sm:$0xf]
        %v2310 = vld [vmem:[%s2296 + $0x34] sm:$0xf]
        %v2311 = vld [vmem:[%s2296 + $0x38] sm:$0xf]
        %v2312 = vld [vmem:[%s2296 + $0x3c] sm:$0xf]
        %v2313 = vunpack.c.l.b16 %v2189
        %v2314 = vunpack.c.l.b16 %v2203
        %v2315 = vunpack.c.l.b16 %v2217
        %v2316 = vunpack.c.l.b16 %v2231
        %v2317 = vunpack.c.l.b16 %v2245
        %v2318 = vunpack.c.l.b16 %v2259
        %v2319 = vunpack.c.l.b16 %v2273
        %v2320 = vunpack.c.l.b16 %v2287
        %v2321 = vpack.c.b16 %v2314, %v2313
        %v2322 = vpack.c.b16 %v2316, %v2315
        %v2323 = vpack.c.b16 %v2318, %v2317
        %v2324 = vpack.c.b16 %v2320, %v2319
        %v2345 = vunpack.c.l.b16 %v2297
        %v2346 = vunpack.c.l.b16 %v2298
        %v2347 = vunpack.c.l.b16 %v2299
        %v2348 = vunpack.c.l.b16 %v2300
        %v2349 = vunpack.c.l.b16 %v2301
        %v2350 = vunpack.c.l.b16 %v2302
        %v2351 = vunpack.c.l.b16 %v2303
        %v2352 = vunpack.c.l.b16 %v2304
        %v2353 = vunpack.c.l.b16 %v2305
        %v2354 = vunpack.c.l.b16 %v2306
        %v2355 = vunpack.c.l.b16 %v2307
        %v2356 = vunpack.c.l.b16 %v2308
        %v2357 = vunpack.c.l.b16 %v2309
        %v2358 = vunpack.c.l.b16 %v2310
        %v2359 = vunpack.c.l.b16 %v2311
        %v2360 = vunpack.c.l.b16 %v2312
        %v2361 = vpack.c.b16 %v2346, %v2345
        %v2362 = vpack.c.b16 %v2348, %v2347
        %v2363 = vpack.c.b16 %v2350, %v2349
        %v2364 = vpack.c.b16 %v2352, %v2351
        %v2365 = vpack.c.b16 %v2354, %v2353
        %v2366 = vpack.c.b16 %v2356, %v2355
        %v2367 = vpack.c.b16 %v2358, %v2357
        %v2368 = vpack.c.b16 %v2360, %v2359
        %2377 = vmatprep.subr.bf16.mxu0 0
        %2378 = vmatpush1.bf16.msra.mxu0 %v2361
        %2379 = vmatprep.subr.bf16.mxu0 0
        %2380 = vmatpush1.bf16.msra.mxu0 %v2362
        %2381 = vmatprep.subr.bf16.mxu0 0
        %2382 = vmatpush1.bf16.msra.mxu0 %v2363
        %2383 = vmatprep.subr.bf16.mxu0 0
        %2384 = vmatpush1.bf16.msra.mxu0 %v2364
        %2385 = vmatprep.subr.bf16.mxu0 0
        %2386 = vmatpush1.bf16.msra.mxu0 %v2365
        %2387 = vmatprep.subr.bf16.mxu0 0
        %2388 = vmatpush1.bf16.msra.mxu0 %v2366
        %2389 = vmatprep.subr.bf16.mxu0 0
        %2390 = vmatpush1.bf16.msra.mxu0 %v2367
        %2391 = vmatprep.subr.bf16.mxu0 0
        %2392 = vmatpush1.bf16.msra.mxu0 %v2368
        %2393 = vmatprep.subr.bf16.mxu0 0
        %2394 = vmatpush1.bf16.msra.mxu0 0
        %2395 = vmatprep.subr.bf16.mxu0 0
        %2396 = vmatpush1.bf16.msra.mxu0 0
        %2397 = vmatprep.subr.bf16.mxu0 0
        %2398 = vmatpush1.bf16.msra.mxu0 0
        %2399 = vmatprep.subr.bf16.mxu0 0
        %2400 = vmatpush1.bf16.msra.mxu0 0
        %2401 = vmatprep.subr.bf16.mxu0 0
        %2402 = vmatpush1.bf16.msra.mxu0 0
        %2403 = vmatprep.subr.bf16.mxu0 0
        %2404 = vmatpush1.bf16.msra.mxu0 0
        %2405 = vmatprep.subr.bf16.mxu0 0
        %2406 = vmatpush1.bf16.msra.mxu0 0
        %2407 = vmatprep.subr.bf16.mxu0 0
        %2408 = vmatpush1.bf16.msra.mxu0 0
        %2409 = vmatprep.mubr.bf16.mxu0 0
        %2410 = vmatmul.mubr.bf16.gmra.mrb[0].mxu0 %v2321
        %v2411 = vpop.f32.mrb[0].mxu0
        %v2412 = vadd.f32 0.0, %v2411
        %v2413 = vpop.f32.mrb[0].mxu0
        %v2414 = vpop.f32.mrb[0].mxu0
        %v2415 = vadd.f32 0.0, %v2414
        %v2416 = vpop.f32.mrb[0].mxu0
        %2417 = vmatprep.mubr.bf16.mxu0 0
        %2418 = vmatmul.mubr.bf16.gmra.mrb[0].mxu0 %v2322
        %v2419 = vpop.f32.mrb[0].mxu0
        %v2420 = vadd.f32 0.0, %v2419
        %v2421 = vpop.f32.mrb[0].mxu0
        %v2422 = vpop.f32.mrb[0].mxu0
        %v2423 = vadd.f32 0.0, %v2422
        %v2424 = vpop.f32.mrb[0].mxu0
        %2425 = vmatprep.mubr.bf16.mxu0 0
        %2426 = vmatmul.mubr.bf16.gmra.mrb[0].mxu0 %v2323
        %v2427 = vpop.f32.mrb[0].mxu0
        %v2428 = vadd.f32 0.0, %v2427
        %v2429 = vpop.f32.mrb[0].mxu0
        %v2430 = vpop.f32.mrb[0].mxu0
        %v2431 = vadd.f32 0.0, %v2430
        %v2432 = vpop.f32.mrb[0].mxu0
        %2433 = vmatprep.mubr.bf16.mxu0 0
        %2434 = vmatmul.mubr.bf16.gmra.mrb[0].mxu0 %v2324
        %v2435 = vpop.f32.mrb[0].mxu0
        %v2436 = vadd.f32 0.0, %v2435
        %v2437 = vpop.f32.mrb[0].mxu0
        %v2438 = vpop.f32.mrb[0].mxu0
        %v2439 = vadd.f32 0.0, %v2438
        %v2440 = vpop.f32.mrb[0].mxu0
        %2441 = vdwg.mxu0
        %v2442 = vadd.f32 %v2288, %v2412
        %v2443 = vadd.f32 %v2289, %v2415
        %v2444 = vadd.f32 %v2290, %v2420
        %v2445 = vadd.f32 %v2291, %v2423
        %v2446 = vadd.f32 %v2292, %v2428
        %v2447 = vadd.f32 %v2293, %v2431
        %v2448 = vadd.f32 %v2294, %v2436
        %v2449 = vadd.f32 %v2295, %v2439
        %2450 = vst [vmem:[#allocation2] sm:$0xff] %v2442
        %2451 = vst [vmem:[#allocation2 + $0x8] sm:$0xff] %v2443
        %2452 = vst [vmem:[#allocation2 + $0x10] sm:$0xff] %v2444
        %2453 = vst [vmem:[#allocation2 + $0x18] sm:$0xff] %v2445
        %2454 = vst [vmem:[#allocation2 + $0x20] sm:$0xff] %v2446
        %2455 = vst [vmem:[#allocation2 + $0x28] sm:$0xff] %v2447
        %2456 = vst [vmem:[#allocation2 + $0x30] sm:$0xff] %v2448
        %2457 = vst [vmem:[#allocation2 + $0x38] sm:$0xff] %v2449
        %v2458 = vld [vmem:[#allocation2] sm:$0xff]
        %v2459 = vld [vmem:[#allocation2 + $0x8] sm:$0xff]
        %v2460 = vld [vmem:[#allocation2 + $0x10] sm:$0xff]
        %v2461 = vld [vmem:[#allocation2 + $0x18] sm:$0xff]
        %v2462 = vld [vmem:[#allocation2 + $0x20] sm:$0xff]
        %v2463 = vld [vmem:[#allocation2 + $0x28] sm:$0xff]
        %v2464 = vld [vmem:[#allocation2 + $0x30] sm:$0xff]
        %v2465 = vld [vmem:[#allocation2 + $0x38] sm:$0xff]
        %v2466 = vpack.c.bf16 %v2459, %v2458
        %v2467 = vpack.c.bf16 %v2461, %v2460
        %v2468 = vpack.c.bf16 %v2463, %v2462
        %v2469 = vpack.c.bf16 %v2465, %v2464
        %v2474 = vunpack.c.l.b16 %v2466
        %v2475 = vunpack.c.h.b16 %v2466
        %v2476 = vunpack.c.l.b16 %v2467
        %v2477 = vunpack.c.h.b16 %v2467
        %v2478 = vunpack.c.l.b16 %v2468
        %v2479 = vunpack.c.h.b16 %v2468
        %v2480 = vunpack.c.l.b16 %v2469
        %v2481 = vunpack.c.h.b16 %v2469
        %v2482 = vpack.c.b16 %v2474, %v2474
        %v2483 = vpack.c.b16 %v2475, %v2475
        %v2484 = vpack.c.b16 %v2476, %v2476
        %v2485 = vpack.c.b16 %v2477, %v2477
        %v2486 = vpack.c.b16 %v2478, %v2478
        %v2487 = vpack.c.b16 %v2479, %v2479
        %v2488 = vpack.c.b16 %v2480, %v2480
        %v2489 = vpack.c.b16 %v2481, %v2481
        %2498 = vst [vmem:[%s427] sm:$0xf] %v2482
        %2499 = vst [vmem:[%s427 + $0x4] sm:$0xf] %v2483
        %2500 = vst [vmem:[%s427 + $0x8] sm:$0xf] %v2484
        %2501 = vst [vmem:[%s427 + $0xc] sm:$0xf] %v2485
        %2502 = vst [vmem:[%s427 + $0x10] sm:$0xf] %v2486
        %2503 = vst [vmem:[%s427 + $0x14] sm:$0xf] %v2487
        %2504 = vst [vmem:[%s427 + $0x18] sm:$0xf] %v2488
        %2505 = vst [vmem:[%s427 + $0x1c] sm:$0xf] %v2489
        %v2506 = vunpack.c.l.bf16 %v2466
        %v2507 = vunpack.c.h.bf16 %v2466
        %v2508 = vunpack.c.l.bf16 %v2467
        %v2509 = vunpack.c.h.bf16 %v2467
        %v2510 = vunpack.c.l.bf16 %v2468
        %v2511 = vunpack.c.h.bf16 %v2468
        %v2512 = vunpack.c.l.bf16 %v2469
        %v2513 = vunpack.c.h.bf16 %v2469
        %v2514 = vadd.f32 %v2506, %v2507
        %v2515 = vadd.f32 %v2514, %v2508
        %v2516 = vadd.f32 %v2515, %v2509
        %v2517 = vadd.f32 %v2516, %v2510
        %v2518 = vadd.f32 %v2517, %v2511
        %v2519 = vadd.f32 %v2518, %v2512
        %v2520 = vadd.f32 %v2519, %v2513
        %v2521 = vrot.slane %v2520, 4
        %v2522 = vadd.f32 %v2520, %v2521
        %v2523 = vrot.slane %v2522, 2
        %v2524 = vadd.f32 %v2522, %v2523
        %v2525 = vrot.slane %v2524, 1
        %v2526 = vadd.f32 %v2524, %v2525
        %v2527 = vmul.f32 %v2506, %v2506
        %v2528 = vmul.f32 %v2507, %v2507
        %v2529 = vmul.f32 %v2508, %v2508
        %v2530 = vmul.f32 %v2509, %v2509
        %v2531 = vmul.f32 %v2510, %v2510
        %v2532 = vmul.f32 %v2511, %v2511
        %v2533 = vmul.f32 %v2512, %v2512
        %v2534 = vmul.f32 %v2513, %v2513
        %v2535 = vadd.f32 %v2527, %v2528
        %v2536 = vadd.f32 %v2535, %v2529
        %v2537 = vadd.f32 %v2536, %v2530
        %v2538 = vadd.f32 %v2537, %v2531
        %v2539 = vadd.f32 %v2538, %v2532
        %v2540 = vadd.f32 %v2539, %v2533
        %v2541 = vadd.f32 %v2540, %v2534
        %v2542 = vrot.slane %v2541, 4
        %v2543 = vadd.f32 %v2541, %v2542
        %v2544 = vrot.slane %v2543, 2
        %v2545 = vadd.f32 %v2543, %v2544
        %v2546 = vrot.slane %v2545, 1
        %v2547 = vadd.f32 %v2545, %v2546
        %v2548 = vlaneseq
        %v2549 = vshrl.u32 %v2548, 7
        %vm2550 = vcmp.eq.s32.totalorder %v2549, 0
        %vm2551 = vcmp.eq.s32.totalorder %v2549, 1
        %v2552 = vsel %vm2551, %v2547, 0.0
        %v2553 = vsel %vm2550, %v2526, %v2552
        %2554 = vst [vmem:[%s434] sm:$0xff] %v2553
        %s2555 = sand.u32 %s185, 1
        %s2556 = scalar_lea.sflag [#allocation5], %s2555
        %s2557 = sand.u32 %s185, 1
        %s2558 = smul.addr %s2557, 32
        %s2559 = scalar_lea.vmem [#allocation12], %s2558
        %s2560 = sand.u32 %s213, 1
        %s2561 = scalar_lea.sflag [#allocation14], %s2560
        %s2562 = sand.u32 %s213, 1
        %s2563 = smul.addr %s2562, 8
        %s2564 = scalar_lea.vmem [#allocation13], %s2563
        // Predicated region
        $region61: #{bottleneck_forward.6} parent=39 // pred_check
          %p2565 = pneg %p195
        $region62: #{bottleneck_forward.6} parent=39 // pred_check_branch
          %2567 = sbr.rel (%p2565) target = $region64
        $region63: #{bottleneck_forward.6} parent=39 // pred_region
          %s2569 = ssub.s32 512, 512
          %2570 = vsyncadd %s2556, %s2569
          %s2571 = smul.addr %s37, 8
          %s2572 = sadd.s32 %s38, %s2571
          %s2573 = smul.addr %s2572, 64
          %s2574 = scalar_lea.hbm %s5, %s2573
          %s2575 = sshll.u32 %s2559, 4
          %s2576 = int_to_ptr.vmem [resolvable:$true] %s2575
          %2581 = dma.vmem_to_hbm [thread:$0]  %s2576, 512, %s2574, %s2556, 64, 64, 4
        $region64: #{bottleneck_forward.6} parent=39 // pred_fallthru
          _
        // Predicated region
        $region65: #{bottleneck_forward.6} parent=39 // pred_check
          %p2582 = pneg %p223
        $region66: #{bottleneck_forward.6} parent=39 // pred_check_branch
          %2584 = sbr.rel (%p2582) target = $region68
        $region67: #{bottleneck_forward.6} parent=39 // pred_region
          %s2586 = ssub.s32 128, 128
          %2587 = vsyncadd %s2561, %s2586
          %s2588 = sadd.s32 %s38, %s37
          %s2589 = smul.addr %s2588, 128
          %s2590 = scalar_lea.hbm %s6, %s2589
          %s2592 = sshll.u32 %s2564, 4
          %s2593 = int_to_ptr.vmem [resolvable:$true] %s2592
          %2595 = dma.vmem_to_hbm [thread:$0]  %s2593, 128, %s2590, %s2561
        $region68: #{bottleneck_forward.6} parent=39 // pred_fallthru
          _
      $region40: #{bottleneck_forward.6} parent=5 // pred_fallthru
        _
      %p2596 = scmp.le.s32.totalorder 2, %s28
      // Predicated region
      $region69: #{bottleneck_forward.6} parent=5 // pred_check
        %p2597 = pneg %p2596
      $region70: #{bottleneck_forward.6} parent=5 // pred_check_branch
        %2599 = sbr.rel (%p2597) target = $region72
      $region71: #{bottleneck_forward.6} parent=5 // pred_region
        %s2600 = ssub.s32 %s28, 2
        // Predicated region
        $region73: #{bottleneck_forward.6} parent=71 // pred_check
          %p2601 = pneg %p201
        $region74: #{bottleneck_forward.6} parent=71 // pred_check_branch
          %2603 = sbr.rel (%p2601) target = $region76
        $region75: #{bottleneck_forward.6} parent=71 // pred_region
          %s2604 = sand.u32 %s186, 1
          %s2605 = scalar_lea.sflag [#allocation5], %s2604
          %s2606 = sand.u32 %s186, 1
          %s2607 = smul.addr %s2606, 32
          %s2608 = scalar_lea.vmem [#allocation12], %s2607
          %2609 = dma.done %s2605, 512
        $region76: #{bottleneck_forward.6} parent=71 // pred_fallthru
          _
        // Predicated region
        $region77: #{bottleneck_forward.6} parent=71 // pred_check
          %p2610 = pneg %p229
        $region78: #{bottleneck_forward.6} parent=71 // pred_check_branch
          %2612 = sbr.rel (%p2610) target = $region80
        $region79: #{bottleneck_forward.6} parent=71 // pred_region
          %s2613 = sand.u32 %s214, 1
          %s2614 = scalar_lea.sflag [#allocation14], %s2613
          %s2615 = sand.u32 %s214, 1
          %s2616 = smul.addr %s2615, 8
          %s2617 = scalar_lea.vmem [#allocation13], %s2616
          %2618 = dma.done %s2614, 128
        $region80: #{bottleneck_forward.6} parent=71 // pred_fallthru
          _
      $region72: #{bottleneck_forward.6} parent=5 // pred_fallthru
        _
    $region6: #{bottleneck_forward.6} parent=1 // loop_footer
      %s32 = sadd.s32 1, %s28
    $region7: #{bottleneck_forward.6} parent=1 // loop_footer_branch
      %27 = sbr.rel target = $region3
    $region8: #{bottleneck_forward.6} parent=1 // loop_exit
      _
    %2619 = vsyncpa [#allocation4], 1
    %s2620 = scalar_lea.sflag [#allocation4], 1
    %2621 = vsyncpa %s2620, 1
    %2622 = vsyncpa [#allocation7], 1
    %s2623 = scalar_lea.sflag [#allocation7], 1
    %2624 = vsyncpa %s2623, 1
    %2625 = vsyncpa [#allocation10], 1
    %s2626 = scalar_lea.sflag [#allocation10], 1
    %2627 = vsyncpa %s2626, 1
    %2628 = vsyncpa [#allocation5], 1
    %s2629 = scalar_lea.sflag [#allocation5], 1
    %2630 = vsyncpa %s2629, 1
    %2631 = vsyncpa [#allocation14], 1
    %s2632 = scalar_lea.sflag [#allocation14], 1
    %2633 = vsyncpa %s2632, 1

// kernel: bottleneck_forward.8
$region0: #{bottleneck_forward.8}
  #allocation0 [shape = 'u32[]', space=smem, size = 0x4, offset = 0x4, fixed_abs, tag = 'smem constant byte address 0x4 - core index']
  #allocation1 [shape = 'u32[144,128]{1,0:T(1,128)}', space=vmem, size = 0x12000, scoped, tag = 'internal scratch']
  %s0 = inlined_call_operand.hbm [shape: bf16[128,128], index: 0, kind: input, shape index: {}]
  %s1 = inlined_call_operand.hbm [shape: bf16[128,128], index: 1, kind: input, shape index: {}]
  %s2 = inlined_call_operand.hbm [shape: bf16[128,128], index: 2, kind: output, shape index: {0}]
  %s3 = inlined_call_operand.hbm [shape: f32[1,8,128], index: 3, kind: output, shape index: {1}]
  %4 = xla_tuple %s2, %s3
  %s5 = sld [smem:[#allocation0]]
  $region34: #{bottleneck_forward.8} parent=0
    _
  %s7 = ssub.s32 1, %s5
  %s8 = scalar_select 0, %s7, %s5
  $region1: #{bottleneck_forward.8} parent=0
    #allocation2 [shape = 'u8[32768]{0}', space=vmem, size = 0x8000, scoped, tag = 'input window, operand 0, single buffered']
    #allocation3 [shape = 's32[1]{0}', space=sflag, size = 0x4, scoped, tag = 'scoped memory for bottleneck_forward.8']
    #allocation4 [shape = 's32[1]{0}', space=sflag, size = 0x4, scoped, tag = 'scoped memory for bottleneck_forward.8']
    #allocation5 [shape = 'u8[32768]{0}', space=vmem, size = 0x8000, scoped, tag = 'input window, operand 1, single buffered']
    #allocation6 [shape = 's32[1]{0}', space=sflag, size = 0x4, scoped, tag = 'scoped memory for bottleneck_forward.8']
    #allocation7 [shape = 'u8[32768]{0}', space=vmem, size = 0x8000, scoped, tag = 'output window, operand 0, single buffered']
    #allocation8 [shape = 'u8[4096]{0}', space=vmem, size = 0x1000, scoped, tag = 'output window, operand 1, single buffered']
    #allocation9 [shape = 's32[1]{0}', space=sflag, size = 0x4, scoped, tag = 'scoped memory for bottleneck_forward.8']
    %9 = vsyncpa [#allocation3], 0
    %10 = vsyncpa [#allocation6], 0
    %11 = vsyncpa [#allocation4], 0
    %12 = vsyncpa [#allocation9], 0
    // Predicated region
    $region2: #{bottleneck_forward.8} parent=1 // pred_check
      _
    $region3: #{bottleneck_forward.8} parent=1 // pred_check_branch
      %14 = sbr.rel (0) target = $region5
    $region4: #{bottleneck_forward.8} parent=1 // pred_region
      %s16 = ssub.s32 1024, 1024
      %17 = vsyncadd [#allocation3], %s16
      %s18 = sshll.u32 [#allocation2], 4
      %s19 = int_to_ptr.vmem [resolvable:$true] %s18
      %24 = dma.hbm_to_vmem [thread:$0]  %s0, 1024, %s19, [#allocation3], 64, 64, 4
    $region5: #{bottleneck_forward.8} parent=1 // pred_fallthru
      _
    // Predicated region
    $region6: #{bottleneck_forward.8} parent=1 // pred_check
      _
    $region7: #{bottleneck_forward.8} parent=1 // pred_check_branch
      %26 = sbr.rel (0) target = $region9
    $region8: #{bottleneck_forward.8} parent=1 // pred_region
      %s28 = ssub.s32 1024, 1024
      %29 = vsyncadd [#allocation6], %s28
      %s30 = sshll.u32 [#allocation5], 4
      %s31 = int_to_ptr.vmem [resolvable:$true] %s30
      %36 = dma.hbm_to_vmem [thread:$0]  %s1, 1024, %s31, [#allocation6], 64, 64, 4
    $region9: #{bottleneck_forward.8} parent=1 // pred_fallthru
      _
    // Predicated region
    $region10: #{bottleneck_forward.8} parent=1 // pred_check
      _
    $region11: #{bottleneck_forward.8} parent=1 // pred_check_branch
      %38 = sbr.rel (0) target = $region13
    $region12: #{bottleneck_forward.8} parent=1 // pred_region
      %39 = dma.done [#allocation3], 1024
    $region13: #{bottleneck_forward.8} parent=1 // pred_fallthru
      _
    // Predicated region
    $region14: #{bottleneck_forward.8} parent=1 // pred_check
      _
    $region15: #{bottleneck_forward.8} parent=1 // pred_check_branch
      %41 = sbr.rel (0) target = $region17
    $region16: #{bottleneck_forward.8} parent=1 // pred_region
      %42 = dma.done [#allocation6], 1024
    $region17: #{bottleneck_forward.8} parent=1 // pred_fallthru
      _
    %v44 = vld [vmem:[#allocation2] sm:$0xf]
    %v45 = vld [vmem:[#allocation2 + $0x4] sm:$0xf]
    %v46 = vld [vmem:[#allocation2 + $0x8] sm:$0xf]
    %v47 = vld [vmem:[#allocation2 + $0xc] sm:$0xf]
    %v48 = vld [vmem:[#allocation2 + $0x10] sm:$0xf]
    %v49 = vld [vmem:[#allocation2 + $0x14] sm:$0xf]
    %v50 = vld [vmem:[#allocation2 + $0x18] sm:$0xf]
    %v51 = vld [vmem:[#allocation2 + $0x1c] sm:$0xf]
    %v52 = vld [vmem:[#allocation2 + $0x20] sm:$0xf]
    %v53 = vld [vmem:[#allocation2 + $0x24] sm:$0xf]
    %v54 = vld [vmem:[#allocation2 + $0x28] sm:$0xf]
    %v55 = vld [vmem:[#allocation2 + $0x2c] sm:$0xf]
    %v56 = vld [vmem:[#allocation2 + $0x30] sm:$0xf]
    %v57 = vld [vmem:[#allocation2 + $0x34] sm:$0xf]
    %v58 = vld [vmem:[#allocation2 + $0x38] sm:$0xf]
    %v59 = vld [vmem:[#allocation2 + $0x3c] sm:$0xf]
    %v60 = vld [vmem:[#allocation5] sm:$0xf]
    %v61 = vld [vmem:[#allocation5 + $0x4] sm:$0xf]
    %v62 = vld [vmem:[#allocation5 + $0x8] sm:$0xf]
    %v63 = vld [vmem:[#allocation5 + $0xc] sm:$0xf]
    %v64 = vld [vmem:[#allocation5 + $0x10] sm:$0xf]
    %v65 = vld [vmem:[#allocation5 + $0x14] sm:$0xf]
    %v66 = vld [vmem:[#allocation5 + $0x18] sm:$0xf]
    %v67 = vld [vmem:[#allocation5 + $0x1c] sm:$0xf]
    %v68 = vld [vmem:[#allocation5 + $0x20] sm:$0xf]
    %v69 = vld [vmem:[#allocation5 + $0x24] sm:$0xf]
    %v70 = vld [vmem:[#allocation5 + $0x28] sm:$0xf]
    %v71 = vld [vmem:[#allocation5 + $0x2c] sm:$0xf]
    %v72 = vld [vmem:[#allocation5 + $0x30] sm:$0xf]
    %v73 = vld [vmem:[#allocation5 + $0x34] sm:$0xf]
    %v74 = vld [vmem:[#allocation5 + $0x38] sm:$0xf]
    %v75 = vld [vmem:[#allocation5 + $0x3c] sm:$0xf]
    %v92 = vunpack.c.l.b16 %v44
    %v93 = vunpack.c.l.b16 %v45
    %v94 = vunpack.c.l.b16 %v46
    %v95 = vunpack.c.l.b16 %v47
    %v96 = vunpack.c.l.b16 %v48
    %v97 = vunpack.c.l.b16 %v49
    %v98 = vunpack.c.l.b16 %v50
    %v99 = vunpack.c.l.b16 %v51
    %v100 = vunpack.c.l.b16 %v52
    %v101 = vunpack.c.l.b16 %v53
    %v102 = vunpack.c.l.b16 %v54
    %v103 = vunpack.c.l.b16 %v55
    %v104 = vunpack.c.l.b16 %v56
    %v105 = vunpack.c.l.b16 %v57
    %v106 = vunpack.c.l.b16 %v58
    %v107 = vunpack.c.l.b16 %v59
    %v108 = vpack.c.b16 %v93, %v92
    %v109 = vpack.c.b16 %v95, %v94
    %v110 = vpack.c.b16 %v97, %v96
    %v111 = vpack.c.b16 %v99, %v98
    %v112 = vpack.c.b16 %v101, %v100
    %v113 = vpack.c.b16 %v103, %v102
    %v114 = vpack.c.b16 %v105, %v104
    %v115 = vpack.c.b16 %v107, %v106
    %v140 = vunpack.c.l.b16 %v60
    %v141 = vunpack.c.l.b16 %v61
    %v142 = vunpack.c.l.b16 %v62
    %v143 = vunpack.c.l.b16 %v63
    %v144 = vunpack.c.l.b16 %v64
    %v145 = vunpack.c.l.b16 %v65
    %v146 = vunpack.c.l.b16 %v66
    %v147 = vunpack.c.l.b16 %v67
    %v148 = vunpack.c.l.b16 %v68
    %v149 = vunpack.c.l.b16 %v69
    %v150 = vunpack.c.l.b16 %v70
    %v151 = vunpack.c.l.b16 %v71
    %v152 = vunpack.c.l.b16 %v72
    %v153 = vunpack.c.l.b16 %v73
    %v154 = vunpack.c.l.b16 %v74
    %v155 = vunpack.c.l.b16 %v75
    %v156 = vpack.c.b16 %v141, %v140
    %v157 = vpack.c.b16 %v143, %v142
    %v158 = vpack.c.b16 %v145, %v144
    %v159 = vpack.c.b16 %v147, %v146
    %v160 = vpack.c.b16 %v149, %v148
    %v161 = vpack.c.b16 %v151, %v150
    %v162 = vpack.c.b16 %v153, %v152
    %v163 = vpack.c.b16 %v155, %v154
    %172 = vmatprep.subr.bf16.mxu0 0
    %173 = vmatpush1.bf16.msra.mxu0 %v156
    %174 = vmatprep.subr.bf16.mxu0 0
    %175 = vmatpush1.bf16.msra.mxu0 %v157
    %176 = vmatprep.subr.bf16.mxu0 0
    %177 = vmatpush1.bf16.msra.mxu0 %v158
    %178 = vmatprep.subr.bf16.mxu0 0
    %179 = vmatpush1.bf16.msra.mxu0 %v159
    %180 = vmatprep.subr.bf16.mxu0 0
    %181 = vmatpush1.bf16.msra.mxu0 %v160
    %182 = vmatprep.subr.bf16.mxu0 0
    %183 = vmatpush1.bf16.msra.mxu0 %v161
    %184 = vmatprep.subr.bf16.mxu0 0
    %185 = vmatpush1.bf16.msra.mxu0 %v162
    %186 = vmatprep.subr.bf16.mxu0 0
    %187 = vmatpush1.bf16.msra.mxu0 %v163
    %188 = vmatprep.subr.bf16.mxu0 0
    %189 = vmatpush1.bf16.msra.mxu0 0
    %190 = vmatprep.subr.bf16.mxu0 0
    %191 = vmatpush1.bf16.msra.mxu0 0
    %192 = vmatprep.subr.bf16.mxu0 0
    %193 = vmatpush1.bf16.msra.mxu0 0
    %194 = vmatprep.subr.bf16.mxu0 0
    %195 = vmatpush1.bf16.msra.mxu0 0
    %196 = vmatprep.subr.bf16.mxu0 0
    %197 = vmatpush1.bf16.msra.mxu0 0
    %198 = vmatprep.subr.bf16.mxu0 0
    %199 = vmatpush1.bf16.msra.mxu0 0
    %200 = vmatprep.subr.bf16.mxu0 0
    %201 = vmatpush1.bf16.msra.mxu0 0
    %202 = vmatprep.subr.bf16.mxu0 0
    %203 = vmatpush1.bf16.msra.mxu0 0
    %204 = vmatprep.mubr.bf16.mxu0 0
    %205 = vmatmul.mubr.bf16.gmra.mrb[0].mxu0 %v108
    %v206 = vpop.f32.mrb[0].mxu0
    %v207 = vadd.f32 0.0, %v206
    %v208 = vpop.f32.mrb[0].mxu0
    %v209 = vpop.f32.mrb[0].mxu0
    %v210 = vadd.f32 0.0, %v209
    %v211 = vpop.f32.mrb[0].mxu0
    %212 = vmatprep.mubr.bf16.mxu0 0
    %213 = vmatmul.mubr.bf16.gmra.mrb[0].mxu0 %v109
    %v214 = vpop.f32.mrb[0].mxu0
    %v215 = vadd.f32 0.0, %v214
    %v216 = vpop.f32.mrb[0].mxu0
    %v217 = vpop.f32.mrb[0].mxu0
    %v218 = vadd.f32 0.0, %v217
    %v219 = vpop.f32.mrb[0].mxu0
    %220 = vmatprep.mubr.bf16.mxu0 0
    %221 = vmatmul.mubr.bf16.gmra.mrb[0].mxu0 %v110
    %v222 = vpop.f32.mrb[0].mxu0
    %v223 = vadd.f32 0.0, %v222
    %v224 = vpop.f32.mrb[0].mxu0
    %v225 = vpop.f32.mrb[0].mxu0
    %v226 = vadd.f32 0.0, %v225
    %v227 = vpop.f32.mrb[0].mxu0
    %228 = vmatprep.mubr.bf16.mxu0 0
    %229 = vmatmul.mubr.bf16.gmra.mrb[0].mxu0 %v111
    %v230 = vpop.f32.mrb[0].mxu0
    %v231 = vadd.f32 0.0, %v230
    %v232 = vpop.f32.mrb[0].mxu0
    %v233 = vpop.f32.mrb[0].mxu0
    %v234 = vadd.f32 0.0, %v233
    %v235 = vpop.f32.mrb[0].mxu0
    %236 = vmatprep.mubr.bf16.mxu0 0
    %237 = vmatmul.mubr.bf16.gmra.mrb[0].mxu0 %v112
    %v238 = vpop.f32.mrb[0].mxu0
    %v239 = vadd.f32 0.0, %v238
    %v240 = vpop.f32.mrb[0].mxu0
    %v241 = vpop.f32.mrb[0].mxu0
    %v242 = vadd.f32 0.0, %v241
    %v243 = vpop.f32.mrb[0].mxu0
    %244 = vmatprep.mubr.bf16.mxu0 0
    %245 = vmatmul.mubr.bf16.gmra.mrb[0].mxu0 %v113
    %v246 = vpop.f32.mrb[0].mxu0
    %v247 = vadd.f32 0.0, %v246
    %v248 = vpop.f32.mrb[0].mxu0
    %v249 = vpop.f32.mrb[0].mxu0
    %v250 = vadd.f32 0.0, %v249
    %v251 = vpop.f32.mrb[0].mxu0
    %252 = vmatprep.mubr.bf16.mxu0 0
    %253 = vmatmul.mubr.bf16.gmra.mrb[0].mxu0 %v114
    %v254 = vpop.f32.mrb[0].mxu0
    %v255 = vadd.f32 0.0, %v254
    %v256 = vpop.f32.mrb[0].mxu0
    %v257 = vpop.f32.mrb[0].mxu0
    %v258 = vadd.f32 0.0, %v257
    %v259 = vpop.f32.mrb[0].mxu0
    %260 = vmatprep.mubr.bf16.mxu0 0
    %261 = vmatmul.mubr.bf16.gmra.mrb[0].mxu0 %v115
    %v262 = vpop.f32.mrb[0].mxu0
    %v263 = vadd.f32 0.0, %v262
    %v264 = vpop.f32.mrb[0].mxu0
    %v265 = vpop.f32.mrb[0].mxu0
    %v266 = vadd.f32 0.0, %v265
    %v267 = vpop.f32.mrb[0].mxu0
    %268 = vdwg.mxu0
    %v269 = vpack.c.bf16 %v210, %v207
    %v270 = vpack.c.bf16 %v218, %v215
    %v271 = vpack.c.bf16 %v226, %v223
    %v272 = vpack.c.bf16 %v234, %v231
    %v273 = vpack.c.bf16 %v242, %v239
    %v274 = vpack.c.bf16 %v250, %v247
    %v275 = vpack.c.bf16 %v258, %v255
    %v276 = vpack.c.bf16 %v266, %v263
    %v285 = vunpack.c.l.b16 %v269
    %v286 = vunpack.c.h.b16 %v269
    %v287 = vunpack.c.l.b16 %v270
    %v288 = vunpack.c.h.b16 %v270
    %v289 = vunpack.c.l.b16 %v271
    %v290 = vunpack.c.h.b16 %v271
    %v291 = vunpack.c.l.b16 %v272
    %v292 = vunpack.c.h.b16 %v272
    %v293 = vunpack.c.l.b16 %v273
    %v294 = vunpack.c.h.b16 %v273
    %v295 = vunpack.c.l.b16 %v274
    %v296 = vunpack.c.h.b16 %v274
    %v297 = vunpack.c.l.b16 %v275
    %v298 = vunpack.c.h.b16 %v275
    %v299 = vunpack.c.l.b16 %v276
    %v300 = vunpack.c.h.b16 %v276
    %v301 = vpack.c.b16 %v285, %v285
    %v302 = vpack.c.b16 %v286, %v286
    %v303 = vpack.c.b16 %v287, %v287
    %v304 = vpack.c.b16 %v288, %v288
    %v305 = vpack.c.b16 %v289, %v289
    %v306 = vpack.c.b16 %v290, %v290
    %v307 = vpack.c.b16 %v291, %v291
    %v308 = vpack.c.b16 %v292, %v292
    %v309 = vpack.c.b16 %v293, %v293
    %v310 = vpack.c.b16 %v294, %v294
    %v311 = vpack.c.b16 %v295, %v295
    %v312 = vpack.c.b16 %v296, %v296
    %v313 = vpack.c.b16 %v297, %v297
    %v314 = vpack.c.b16 %v298, %v298
    %v315 = vpack.c.b16 %v299, %v299
    %v316 = vpack.c.b16 %v300, %v300
    %333 = vst [vmem:[#allocation7] sm:$0xf] %v301
    %334 = vst [vmem:[#allocation7 + $0x4] sm:$0xf] %v302
    %335 = vst [vmem:[#allocation7 + $0x8] sm:$0xf] %v303
    %336 = vst [vmem:[#allocation7 + $0xc] sm:$0xf] %v304
    %337 = vst [vmem:[#allocation7 + $0x10] sm:$0xf] %v305
    %338 = vst [vmem:[#allocation7 + $0x14] sm:$0xf] %v306
    %339 = vst [vmem:[#allocation7 + $0x18] sm:$0xf] %v307
    %340 = vst [vmem:[#allocation7 + $0x1c] sm:$0xf] %v308
    %341 = vst [vmem:[#allocation7 + $0x20] sm:$0xf] %v309
    %342 = vst [vmem:[#allocation7 + $0x24] sm:$0xf] %v310
    %343 = vst [vmem:[#allocation7 + $0x28] sm:$0xf] %v311
    %344 = vst [vmem:[#allocation7 + $0x2c] sm:$0xf] %v312
    %345 = vst [vmem:[#allocation7 + $0x30] sm:$0xf] %v313
    %346 = vst [vmem:[#allocation7 + $0x34] sm:$0xf] %v314
    %347 = vst [vmem:[#allocation7 + $0x38] sm:$0xf] %v315
    %348 = vst [vmem:[#allocation7 + $0x3c] sm:$0xf] %v316
    %v349 = vunpack.c.l.bf16 %v269
    %v350 = vunpack.c.h.bf16 %v269
    %v351 = vunpack.c.l.bf16 %v270
    %v352 = vunpack.c.h.bf16 %v270
    %v353 = vunpack.c.l.bf16 %v271
    %v354 = vunpack.c.h.bf16 %v271
    %v355 = vunpack.c.l.bf16 %v272
    %v356 = vunpack.c.h.bf16 %v272
    %v357 = vunpack.c.l.bf16 %v273
    %v358 = vunpack.c.h.bf16 %v273
    %v359 = vunpack.c.l.bf16 %v274
    %v360 = vunpack.c.h.bf16 %v274
    %v361 = vunpack.c.l.bf16 %v275
    %v362 = vunpack.c.h.bf16 %v275
    %v363 = vunpack.c.l.bf16 %v276
    %v364 = vunpack.c.h.bf16 %v276
    %v365 = vadd.f32 %v349, %v350
    %v366 = vadd.f32 %v365, %v351
    %v367 = vadd.f32 %v366, %v352
    %v368 = vadd.f32 %v367, %v353
    %v369 = vadd.f32 %v368, %v354
    %v370 = vadd.f32 %v369, %v355
    %v371 = vadd.f32 %v370, %v356
    %v372 = vadd.f32 %v371, %v357
    %v373 = vadd.f32 %v372, %v358
    %v374 = vadd.f32 %v373, %v359
    %v375 = vadd.f32 %v374, %v360
    %v376 = vadd.f32 %v375, %v361
    %v377 = vadd.f32 %v376, %v362
    %v378 = vadd.f32 %v377, %v363
    %v379 = vadd.f32 %v378, %v364
    %v380 = vrot.slane %v379, 4
    %v381 = vadd.f32 %v379, %v380
    %v382 = vrot.slane %v381, 2
    %v383 = vadd.f32 %v381, %v382
    %v384 = vrot.slane %v383, 1
    %v385 = vadd.f32 %v383, %v384
    %v386 = vmul.f32 %v349, %v349
    %v387 = vmul.f32 %v350, %v350
    %v388 = vmul.f32 %v351, %v351
    %v389 = vmul.f32 %v352, %v352
    %v390 = vmul.f32 %v353, %v353
    %v391 = vmul.f32 %v354, %v354
    %v392 = vmul.f32 %v355, %v355
    %v393 = vmul.f32 %v356, %v356
    %v394 = vmul.f32 %v357, %v357
    %v395 = vmul.f32 %v358, %v358
    %v396 = vmul.f32 %v359, %v359
    %v397 = vmul.f32 %v360, %v360
    %v398 = vmul.f32 %v361, %v361
    %v399 = vmul.f32 %v362, %v362
    %v400 = vmul.f32 %v363, %v363
    %v401 = vmul.f32 %v364, %v364
    %v402 = vadd.f32 %v386, %v387
    %v403 = vadd.f32 %v402, %v388
    %v404 = vadd.f32 %v403, %v389
    %v405 = vadd.f32 %v404, %v390
    %v406 = vadd.f32 %v405, %v391
    %v407 = vadd.f32 %v406, %v392
    %v408 = vadd.f32 %v407, %v393
    %v409 = vadd.f32 %v408, %v394
    %v410 = vadd.f32 %v409, %v395
    %v411 = vadd.f32 %v410, %v396
    %v412 = vadd.f32 %v411, %v397
    %v413 = vadd.f32 %v412, %v398
    %v414 = vadd.f32 %v413, %v399
    %v415 = vadd.f32 %v414, %v400
    %v416 = vadd.f32 %v415, %v401
    %v417 = vrot.slane %v416, 4
    %v418 = vadd.f32 %v416, %v417
    %v419 = vrot.slane %v418, 2
    %v420 = vadd.f32 %v418, %v419
    %v421 = vrot.slane %v420, 1
    %v422 = vadd.f32 %v420, %v421
    %v423 = vlaneseq
    %v424 = vshrl.u32 %v423, 7
    %vm425 = vcmp.eq.s32.totalorder %v424, 0
    %vm426 = vcmp.eq.s32.totalorder %v424, 1
    %v427 = vsel %vm426, %v422, 0.0
    %v428 = vsel %vm425, %v385, %v427
    %429 = vst [vmem:[#allocation8] sm:$0xff] %v428
    // Predicated region
    $region18: #{bottleneck_forward.8} parent=1 // pred_check
      _
    $region19: #{bottleneck_forward.8} parent=1 // pred_check_branch
      %431 = sbr.rel (0) target = $region21
    $region20: #{bottleneck_forward.8} parent=1 // pred_region
      %s433 = ssub.s32 1024, 1024
      %434 = vsyncadd [#allocation4], %s433
      %s435 = sshll.u32 [#allocation7], 4
      %s436 = int_to_ptr.vmem [resolvable:$true] %s435
      %441 = dma.vmem_to_hbm [thread:$0]  %s436, 1024, %s2, [#allocation4], 64, 64, 4
    $region21: #{bottleneck_forward.8} parent=1 // pred_fallthru
      _
    // Predicated region
    $region22: #{bottleneck_forward.8} parent=1 // pred_check
      _
    $region23: #{bottleneck_forward.8} parent=1 // pred_check_branch
      %443 = sbr.rel (0) target = $region25
    $region24: #{bottleneck_forward.8} parent=1 // pred_region
      %s445 = ssub.s32 128, 128
      %446 = vsyncadd [#allocation9], %s445
      %s448 = sshll.u32 [#allocation8], 4
      %s449 = int_to_ptr.vmem [resolvable:$true] %s448
      %451 = dma.vmem_to_hbm [thread:$0]  %s449, 128, %s3, [#allocation9]
    $region25: #{bottleneck_forward.8} parent=1 // pred_fallthru
      _
    // Predicated region
    $region26: #{bottleneck_forward.8} parent=1 // pred_check
      _
    $region27: #{bottleneck_forward.8} parent=1 // pred_check_branch
      %453 = sbr.rel (0) target = $region29
    $region28: #{bottleneck_forward.8} parent=1 // pred_region
      %454 = dma.done [#allocation4], 1024
    $region29: #{bottleneck_forward.8} parent=1 // pred_fallthru
      _
    // Predicated region
    $region30: #{bottleneck_forward.8} parent=1 // pred_check
      _
    $region31: #{bottleneck_forward.8} parent=1 // pred_check_branch
      %456 = sbr.rel (0) target = $region33
    $region32: #{bottleneck_forward.8} parent=1 // pred_region
      %457 = dma.done [#allocation9], 128
    $region33: #{bottleneck_forward.8} parent=1 // pred_fallthru
      _
    %458 = vsyncpa [#allocation3], 1
    %459 = vsyncpa [#allocation6], 1
    %460 = vsyncpa [#allocation4], 1
    %461 = vsyncpa [#allocation9], 1

// kernel: bottleneck_forward.9
$region0: #{bottleneck_forward.9}
  #allocation0 [shape = 'u32[]', space=smem, size = 0x4, offset = 0x4, fixed_abs, tag = 'smem constant byte address 0x4 - core index']
  #allocation1 [shape = 'u32[144,128]{1,0:T(1,128)}', space=vmem, size = 0x12000, scoped, tag = 'internal scratch']
  %s0 = inlined_call_operand.hbm [shape: bf16[128,128], index: 0, kind: input, shape index: {}, may-alias: {0,6}]
  %s1 = inlined_call_operand.hbm [shape: f32[1,128], index: 1, kind: input, shape index: {}]
  %s2 = inlined_call_operand.hbm [shape: f32[1,128], index: 2, kind: input, shape index: {}]
  %s3 = inlined_call_operand.hbm [shape: bf16[128,128], index: 3, kind: input, shape index: {}]
  %s4 = inlined_call_operand.hbm [shape: f32[1,128], index: 4, kind: input, shape index: {}]
  %s5 = inlined_call_operand.hbm [shape: f32[1,128], index: 5, kind: input, shape index: {}]
  %s6 = inlined_call_operand.hbm [shape: bf16[128,128], index: 6, kind: output, shape index: {}, may-alias: {0,6}]
  %s7 = sld [smem:[#allocation0]]
  $region58: #{bottleneck_forward.9} parent=0
    _
  %s9 = ssub.s32 1, %s7
  %s10 = scalar_select 0, %s9, %s7
  $region1: #{bottleneck_forward.9} parent=0
    #allocation2 [shape = 'u8[32768]{0}', space=vmem, size = 0x8000, scoped, tag = 'input window, operand 0, single buffered']
    #allocation3 [shape = 's32[1]{0}', space=sflag, size = 0x4, scoped, tag = 'scoped memory for bottleneck_forward.9']
    #allocation4 [shape = 's32[1]{0}', space=sflag, size = 0x4, scoped, tag = 'scoped memory for bottleneck_forward.9']
    #allocation5 [shape = 'u8[512]{0}', space=vmem, size = 0x400, scoped, tag = 'input window, operand 1, single buffered']
    #allocation6 [shape = 's32[1]{0}', space=sflag, size = 0x4, scoped, tag = 'scoped memory for bottleneck_forward.9']
    #allocation7 [shape = 'u8[512]{0}', space=vmem, size = 0x400, scoped, tag = 'input window, operand 2, single buffered']
    #allocation8 [shape = 'u8[32768]{0}', space=vmem, size = 0x8000, scoped, tag = 'input window, operand 3, single buffered']
    #allocation9 [shape = 's32[1]{0}', space=sflag, size = 0x4, scoped, tag = 'scoped memory for bottleneck_forward.9']
    #allocation10 [shape = 'u8[512]{0}', space=vmem, size = 0x400, scoped, tag = 'input window, operand 4, single buffered']
    #allocation11 [shape = 'u8[512]{0}', space=vmem, size = 0x400, scoped, tag = 'input window, operand 5, single buffered']
    #allocation12 [shape = 's32[1]{0}', space=sflag, size = 0x4, scoped, tag = 'scoped memory for bottleneck_forward.9']
    #allocation13 [shape = 'u8[32768]{0}', space=vmem, size = 0x8000, scoped, tag = 'output window, operand 0, single buffered']
    %11 = vsyncpa [#allocation3], 0
    %12 = vsyncpa [#allocation6], 0
    %13 = vsyncpa [#allocation9], 0
    %14 = vsyncpa [#allocation12], 0
    %15 = vsyncpa [#allocation4], 0
    // Predicated region
    $region2: #{bottleneck_forward.9} parent=1 // pred_check
      _
    $region3: #{bottleneck_forward.9} parent=1 // pred_check_branch
      %17 = sbr.rel (0) target = $region5
    $region4: #{bottleneck_forward.9} parent=1 // pred_region
      %s19 = ssub.s32 1024, 1024
      %20 = vsyncadd [#allocation3], %s19
      %s21 = sshll.u32 [#allocation2], 4
      %s22 = int_to_ptr.vmem [resolvable:$true] %s21
      %27 = dma.hbm_to_vmem [thread:$0]  %s0, 1024, %s22, [#allocation3], 64, 64, 4
    $region5: #{bottleneck_forward.9} parent=1 // pred_fallthru
      _
    // Predicated region
    $region6: #{bottleneck_forward.9} parent=1 // pred_check
      _
    $region7: #{bottleneck_forward.9} parent=1 // pred_check_branch
      %29 = sbr.rel (0) target = $region9
    $region8: #{bottleneck_forward.9} parent=1 // pred_region
      %s31 = ssub.s32 16, 16
      %32 = vsyncadd [#allocation6], %s31
      %s34 = sshll.u32 [#allocation5], 4
      %s35 = int_to_ptr.vmem [resolvable:$true] %s34
      %37 = dma.hbm_to_vmem [thread:$0]  %s1, 16, %s35, [#allocation6]
    $region9: #{bottleneck_forward.9} parent=1 // pred_fallthru
      _
    // Predicated region
    $region10: #{bottleneck_forward.9} parent=1 // pred_check
      _
    $region11: #{bottleneck_forward.9} parent=1 // pred_check_branch
      %39 = sbr.rel (0) target = $region13
    $region12: #{bottleneck_forward.9} parent=1 // pred_region
      %s41 = ssub.s32 16, 16
      %42 = vsyncadd [#allocation6], %s41
      %s44 = sshll.u32 [#allocation7], 4
      %s45 = int_to_ptr.vmem [resolvable:$true] %s44
      %47 = dma.hbm_to_vmem [thread:$0]  %s2, 16, %s45, [#allocation6]
    $region13: #{bottleneck_forward.9} parent=1 // pred_fallthru
      _
    // Predicated region
    $region14: #{bottleneck_forward.9} parent=1 // pred_check
      _
    $region15: #{bottleneck_forward.9} parent=1 // pred_check_branch
      %49 = sbr.rel (0) target = $region17
    $region16: #{bottleneck_forward.9} parent=1 // pred_region
      %s51 = ssub.s32 1024, 1024
      %52 = vsyncadd [#allocation9], %s51
      %s53 = sshll.u32 [#allocation8], 4
      %s54 = int_to_ptr.vmem [resolvable:$true] %s53
      %59 = dma.hbm_to_vmem [thread:$0]  %s3, 1024, %s54, [#allocation9], 64, 64, 4
    $region17: #{bottleneck_forward.9} parent=1 // pred_fallthru
      _
    // Predicated region
    $region18: #{bottleneck_forward.9} parent=1 // pred_check
      _
    $region19: #{bottleneck_forward.9} parent=1 // pred_check_branch
      %61 = sbr.rel (0) target = $region21
    $region20: #{bottleneck_forward.9} parent=1 // pred_region
      %s63 = ssub.s32 16, 16
      %64 = vsyncadd [#allocation9], %s63
      %s66 = sshll.u32 [#allocation10], 4
      %s67 = int_to_ptr.vmem [resolvable:$true] %s66
      %69 = dma.hbm_to_vmem [thread:$0]  %s4, 16, %s67, [#allocation9]
    $region21: #{bottleneck_forward.9} parent=1 // pred_fallthru
      _
    // Predicated region
    $region22: #{bottleneck_forward.9} parent=1 // pred_check
      _
    $region23: #{bottleneck_forward.9} parent=1 // pred_check_branch
      %71 = sbr.rel (0) target = $region25
    $region24: #{bottleneck_forward.9} parent=1 // pred_region
      %s73 = ssub.s32 16, 16
      %74 = vsyncadd [#allocation12], %s73
      %s76 = sshll.u32 [#allocation11], 4
      %s77 = int_to_ptr.vmem [resolvable:$true] %s76
      %79 = dma.hbm_to_vmem [thread:$0]  %s5, 16, %s77, [#allocation12]
    $region25: #{bottleneck_forward.9} parent=1 // pred_fallthru
      _
    // Predicated region
    $region26: #{bottleneck_forward.9} parent=1 // pred_check
      _
    $region27: #{bottleneck_forward.9} parent=1 // pred_check_branch
      %81 = sbr.rel (0) target = $region29
    $region28: #{bottleneck_forward.9} parent=1 // pred_region
      %82 = dma.done [#allocation3], 1024
    $region29: #{bottleneck_forward.9} parent=1 // pred_fallthru
      _
    // Predicated region
    $region30: #{bottleneck_forward.9} parent=1 // pred_check
      _
    $region31: #{bottleneck_forward.9} parent=1 // pred_check_branch
      %84 = sbr.rel (0) target = $region33
    $region32: #{bottleneck_forward.9} parent=1 // pred_region
      %85 = dma.done [#allocation6], 16
    $region33: #{bottleneck_forward.9} parent=1 // pred_fallthru
      _
    // Predicated region
    $region34: #{bottleneck_forward.9} parent=1 // pred_check
      _
    $region35: #{bottleneck_forward.9} parent=1 // pred_check_branch
      %87 = sbr.rel (0) target = $region37
    $region36: #{bottleneck_forward.9} parent=1 // pred_region
      %88 = dma.done [#allocation6], 16
    $region37: #{bottleneck_forward.9} parent=1 // pred_fallthru
      _
    // Predicated region
    $region38: #{bottleneck_forward.9} parent=1 // pred_check
      _
    $region39: #{bottleneck_forward.9} parent=1 // pred_check_branch
      %90 = sbr.rel (0) target = $region41
    $region40: #{bottleneck_forward.9} parent=1 // pred_region
      %91 = dma.done [#allocation9], 1024
    $region41: #{bottleneck_forward.9} parent=1 // pred_fallthru
      _
    // Predicated region
    $region42: #{bottleneck_forward.9} parent=1 // pred_check
      _
    $region43: #{bottleneck_forward.9} parent=1 // pred_check_branch
      %93 = sbr.rel (0) target = $region45
    $region44: #{bottleneck_forward.9} parent=1 // pred_region
      %94 = dma.done [#allocation9], 16
    $region45: #{bottleneck_forward.9} parent=1 // pred_fallthru
      _
    // Predicated region
    $region46: #{bottleneck_forward.9} parent=1 // pred_check
      _
    $region47: #{bottleneck_forward.9} parent=1 // pred_check_branch
      %96 = sbr.rel (0) target = $region49
    $region48: #{bottleneck_forward.9} parent=1 // pred_region
      %97 = dma.done [#allocation12], 16
    $region49: #{bottleneck_forward.9} parent=1 // pred_fallthru
      _
    %v98 = vld [vmem:[#allocation2] sm:$0xf]
    %v99 = vld [vmem:[#allocation2 + $0x4] sm:$0xf]
    %v100 = vld [vmem:[#allocation2 + $0x8] sm:$0xf]
    %v101 = vld [vmem:[#allocation2 + $0xc] sm:$0xf]
    %v102 = vld [vmem:[#allocation2 + $0x10] sm:$0xf]
    %v103 = vld [vmem:[#allocation2 + $0x14] sm:$0xf]
    %v104 = vld [vmem:[#allocation2 + $0x18] sm:$0xf]
    %v105 = vld [vmem:[#allocation2 + $0x1c] sm:$0xf]
    %v106 = vld [vmem:[#allocation2 + $0x20] sm:$0xf]
    %v107 = vld [vmem:[#allocation2 + $0x24] sm:$0xf]
    %v108 = vld [vmem:[#allocation2 + $0x28] sm:$0xf]
    %v109 = vld [vmem:[#allocation2 + $0x2c] sm:$0xf]
    %v110 = vld [vmem:[#allocation2 + $0x30] sm:$0xf]
    %v111 = vld [vmem:[#allocation2 + $0x34] sm:$0xf]
    %v112 = vld [vmem:[#allocation2 + $0x38] sm:$0xf]
    %v113 = vld [vmem:[#allocation2 + $0x3c] sm:$0xf]
    %v114 = vunpack.c.l.bf16 %v98
    %v115 = vunpack.c.l.bf16 %v99
    %v116 = vunpack.c.l.bf16 %v100
    %v117 = vunpack.c.l.bf16 %v101
    %v118 = vunpack.c.l.bf16 %v102
    %v119 = vunpack.c.l.bf16 %v103
    %v120 = vunpack.c.l.bf16 %v104
    %v121 = vunpack.c.l.bf16 %v105
    %v122 = vunpack.c.l.bf16 %v106
    %v123 = vunpack.c.l.bf16 %v107
    %v124 = vunpack.c.l.bf16 %v108
    %v125 = vunpack.c.l.bf16 %v109
    %v126 = vunpack.c.l.bf16 %v110
    %v127 = vunpack.c.l.bf16 %v111
    %v128 = vunpack.c.l.bf16 %v112
    %v129 = vunpack.c.l.bf16 %v113
    %v130 = vld [vmem:[#allocation5] sm:$0x1]
    %v132 = vlaneseq
    %v133 = vshrl.u32 %v132, 7
    %v134 = vsub.s32 0, %v133
    %v135 = vrot.slane %v130, %v134
    %v137 = vmul.f32 %v114, %v135
    %v138 = vmul.f32 %v115, %v135
    %v139 = vmul.f32 %v116, %v135
    %v140 = vmul.f32 %v117, %v135
    %v141 = vmul.f32 %v118, %v135
    %v142 = vmul.f32 %v119, %v135
    %v143 = vmul.f32 %v120, %v135
    %v144 = vmul.f32 %v121, %v135
    %v145 = vmul.f32 %v122, %v135
    %v146 = vmul.f32 %v123, %v135
    %v147 = vmul.f32 %v124, %v135
    %v148 = vmul.f32 %v125, %v135
    %v149 = vmul.f32 %v126, %v135
    %v150 = vmul.f32 %v127, %v135
    %v151 = vmul.f32 %v128, %v135
    %v152 = vmul.f32 %v129, %v135
    %v153 = vld [vmem:[#allocation7] sm:$0x1]
    %v155 = vlaneseq
    %v156 = vshrl.u32 %v155, 7
    %v157 = vsub.s32 0, %v156
    %v158 = vrot.slane %v153, %v157
    %v160 = vadd.f32 %v137, %v158
    %v161 = vadd.f32 %v138, %v158
    %v162 = vadd.f32 %v139, %v158
    %v163 = vadd.f32 %v140, %v158
    %v164 = vadd.f32 %v141, %v158
    %v165 = vadd.f32 %v142, %v158
    %v166 = vadd.f32 %v143, %v158
    %v167 = vadd.f32 %v144, %v158
    %v168 = vadd.f32 %v145, %v158
    %v169 = vadd.f32 %v146, %v158
    %v170 = vadd.f32 %v147, %v158
    %v171 = vadd.f32 %v148, %v158
    %v172 = vadd.f32 %v149, %v158
    %v173 = vadd.f32 %v150, %v158
    %v174 = vadd.f32 %v151, %v158
    %v175 = vadd.f32 %v152, %v158
    %v176 = vld [vmem:[#allocation8] sm:$0xf]
    %v177 = vld [vmem:[#allocation8 + $0x4] sm:$0xf]
    %v178 = vld [vmem:[#allocation8 + $0x8] sm:$0xf]
    %v179 = vld [vmem:[#allocation8 + $0xc] sm:$0xf]
    %v180 = vld [vmem:[#allocation8 + $0x10] sm:$0xf]
    %v181 = vld [vmem:[#allocation8 + $0x14] sm:$0xf]
    %v182 = vld [vmem:[#allocation8 + $0x18] sm:$0xf]
    %v183 = vld [vmem:[#allocation8 + $0x1c] sm:$0xf]
    %v184 = vld [vmem:[#allocation8 + $0x20] sm:$0xf]
    %v185 = vld [vmem:[#allocation8 + $0x24] sm:$0xf]
    %v186 = vld [vmem:[#allocation8 + $0x28] sm:$0xf]
    %v187 = vld [vmem:[#allocation8 + $0x2c] sm:$0xf]
    %v188 = vld [vmem:[#allocation8 + $0x30] sm:$0xf]
    %v189 = vld [vmem:[#allocation8 + $0x34] sm:$0xf]
    %v190 = vld [vmem:[#allocation8 + $0x38] sm:$0xf]
    %v191 = vld [vmem:[#allocation8 + $0x3c] sm:$0xf]
    %v192 = vunpack.c.l.bf16 %v176
    %v193 = vunpack.c.l.bf16 %v177
    %v194 = vunpack.c.l.bf16 %v178
    %v195 = vunpack.c.l.bf16 %v179
    %v196 = vunpack.c.l.bf16 %v180
    %v197 = vunpack.c.l.bf16 %v181
    %v198 = vunpack.c.l.bf16 %v182
    %v199 = vunpack.c.l.bf16 %v183
    %v200 = vunpack.c.l.bf16 %v184
    %v201 = vunpack.c.l.bf16 %v185
    %v202 = vunpack.c.l.bf16 %v186
    %v203 = vunpack.c.l.bf16 %v187
    %v204 = vunpack.c.l.bf16 %v188
    %v205 = vunpack.c.l.bf16 %v189
    %v206 = vunpack.c.l.bf16 %v190
    %v207 = vunpack.c.l.bf16 %v191
    %v208 = vld [vmem:[#allocation10] sm:$0x1]
    %v210 = vlaneseq
    %v211 = vshrl.u32 %v210, 7
    %v212 = vsub.s32 0, %v211
    %v213 = vrot.slane %v208, %v212
    %v215 = vmul.f32 %v192, %v213
    %v216 = vmul.f32 %v193, %v213
    %v217 = vmul.f32 %v194, %v213
    %v218 = vmul.f32 %v195, %v213
    %v219 = vmul.f32 %v196, %v213
    %v220 = vmul.f32 %v197, %v213
    %v221 = vmul.f32 %v198, %v213
    %v222 = vmul.f32 %v199, %v213
    %v223 = vmul.f32 %v200, %v213
    %v224 = vmul.f32 %v201, %v213
    %v225 = vmul.f32 %v202, %v213
    %v226 = vmul.f32 %v203, %v213
    %v227 = vmul.f32 %v204, %v213
    %v228 = vmul.f32 %v205, %v213
    %v229 = vmul.f32 %v206, %v213
    %v230 = vmul.f32 %v207, %v213
    %v231 = vld [vmem:[#allocation11] sm:$0x1]
    %v233 = vlaneseq
    %v234 = vshrl.u32 %v233, 7
    %v235 = vsub.s32 0, %v234
    %v236 = vrot.slane %v231, %v235
    %v238 = vadd.f32 %v215, %v236
    %v239 = vadd.f32 %v216, %v236
    %v240 = vadd.f32 %v217, %v236
    %v241 = vadd.f32 %v218, %v236
    %v242 = vadd.f32 %v219, %v236
    %v243 = vadd.f32 %v220, %v236
    %v244 = vadd.f32 %v221, %v236
    %v245 = vadd.f32 %v222, %v236
    %v246 = vadd.f32 %v223, %v236
    %v247 = vadd.f32 %v224, %v236
    %v248 = vadd.f32 %v225, %v236
    %v249 = vadd.f32 %v226, %v236
    %v250 = vadd.f32 %v227, %v236
    %v251 = vadd.f32 %v228, %v236
    %v252 = vadd.f32 %v229, %v236
    %v253 = vadd.f32 %v230, %v236
    %v254 = vadd.f32 %v160, %v238
    %v255 = vadd.f32 %v161, %v239
    %v256 = vadd.f32 %v162, %v240
    %v257 = vadd.f32 %v163, %v241
    %v258 = vadd.f32 %v164, %v242
    %v259 = vadd.f32 %v165, %v243
    %v260 = vadd.f32 %v166, %v244
    %v261 = vadd.f32 %v167, %v245
    %v262 = vadd.f32 %v168, %v246
    %v263 = vadd.f32 %v169, %v247
    %v264 = vadd.f32 %v170, %v248
    %v265 = vadd.f32 %v171, %v249
    %v266 = vadd.f32 %v172, %v250
    %v267 = vadd.f32 %v173, %v251
    %v268 = vadd.f32 %v174, %v252
    %v269 = vadd.f32 %v175, %v253
    %v270 = vmax.f32 %v254, 0.0
    %v271 = vmax.f32 %v255, 0.0
    %v272 = vmax.f32 %v256, 0.0
    %v273 = vmax.f32 %v257, 0.0
    %v274 = vmax.f32 %v258, 0.0
    %v275 = vmax.f32 %v259, 0.0
    %v276 = vmax.f32 %v260, 0.0
    %v277 = vmax.f32 %v261, 0.0
    %v278 = vmax.f32 %v262, 0.0
    %v279 = vmax.f32 %v263, 0.0
    %v280 = vmax.f32 %v264, 0.0
    %v281 = vmax.f32 %v265, 0.0
    %v282 = vmax.f32 %v266, 0.0
    %v283 = vmax.f32 %v267, 0.0
    %v284 = vmax.f32 %v268, 0.0
    %v285 = vmax.f32 %v269, 0.0
    %v286 = vpack.c.bf16 %v271, %v270
    %v287 = vpack.c.bf16 %v273, %v272
    %v288 = vpack.c.bf16 %v275, %v274
    %v289 = vpack.c.bf16 %v277, %v276
    %v290 = vpack.c.bf16 %v279, %v278
    %v291 = vpack.c.bf16 %v281, %v280
    %v292 = vpack.c.bf16 %v283, %v282
    %v293 = vpack.c.bf16 %v285, %v284
    %v302 = vunpack.c.l.b16 %v286
    %v303 = vunpack.c.h.b16 %v286
    %v304 = vunpack.c.l.b16 %v287
    %v305 = vunpack.c.h.b16 %v287
    %v306 = vunpack.c.l.b16 %v288
    %v307 = vunpack.c.h.b16 %v288
    %v308 = vunpack.c.l.b16 %v289
    %v309 = vunpack.c.h.b16 %v289
    %v310 = vunpack.c.l.b16 %v290
    %v311 = vunpack.c.h.b16 %v290
    %v312 = vunpack.c.l.b16 %v291
    %v313 = vunpack.c.h.b16 %v291
    %v314 = vunpack.c.l.b16 %v292
    %v315 = vunpack.c.h.b16 %v292
    %v316 = vunpack.c.l.b16 %v293
    %v317 = vunpack.c.h.b16 %v293
    %v318 = vpack.c.b16 %v302, %v302
    %v319 = vpack.c.b16 %v303, %v303
    %v320 = vpack.c.b16 %v304, %v304
    %v321 = vpack.c.b16 %v305, %v305
    %v322 = vpack.c.b16 %v306, %v306
    %v323 = vpack.c.b16 %v307, %v307
    %v324 = vpack.c.b16 %v308, %v308
    %v325 = vpack.c.b16 %v309, %v309
    %v326 = vpack.c.b16 %v310, %v310
    %v327 = vpack.c.b16 %v311, %v311
    %v328 = vpack.c.b16 %v312, %v312
    %v329 = vpack.c.b16 %v313, %v313
    %v330 = vpack.c.b16 %v314, %v314
    %v331 = vpack.c.b16 %v315, %v315
    %v332 = vpack.c.b16 %v316, %v316
    %v333 = vpack.c.b16 %v317, %v317
    %350 = vst [vmem:[#allocation13] sm:$0xf] %v318
    %351 = vst [vmem:[#allocation13 + $0x4] sm:$0xf] %v319
    %352 = vst [vmem:[#allocation13 + $0x8] sm:$0xf] %v320
    %353 = vst [vmem:[#allocation13 + $0xc] sm:$0xf] %v321
    %354 = vst [vmem:[#allocation13 + $0x10] sm:$0xf] %v322
    %355 = vst [vmem:[#allocation13 + $0x14] sm:$0xf] %v323
    %356 = vst [vmem:[#allocation13 + $0x18] sm:$0xf] %v324
    %357 = vst [vmem:[#allocation13 + $0x1c] sm:$0xf] %v325
    %358 = vst [vmem:[#allocation13 + $0x20] sm:$0xf] %v326
    %359 = vst [vmem:[#allocation13 + $0x24] sm:$0xf] %v327
    %360 = vst [vmem:[#allocation13 + $0x28] sm:$0xf] %v328
    %361 = vst [vmem:[#allocation13 + $0x2c] sm:$0xf] %v329
    %362 = vst [vmem:[#allocation13 + $0x30] sm:$0xf] %v330
    %363 = vst [vmem:[#allocation13 + $0x34] sm:$0xf] %v331
    %364 = vst [vmem:[#allocation13 + $0x38] sm:$0xf] %v332
    %365 = vst [vmem:[#allocation13 + $0x3c] sm:$0xf] %v333
    // Predicated region
    $region50: #{bottleneck_forward.9} parent=1 // pred_check
      _
    $region51: #{bottleneck_forward.9} parent=1 // pred_check_branch
      %367 = sbr.rel (0) target = $region53
    $region52: #{bottleneck_forward.9} parent=1 // pred_region
      %s369 = ssub.s32 1024, 1024
      %370 = vsyncadd [#allocation4], %s369
      %s371 = sshll.u32 [#allocation13], 4
      %s372 = int_to_ptr.vmem [resolvable:$true] %s371
      %377 = dma.vmem_to_hbm [thread:$0]  %s372, 1024, %s6, [#allocation4], 64, 64, 4
    $region53: #{bottleneck_forward.9} parent=1 // pred_fallthru
      _
    // Predicated region
    $region54: #{bottleneck_forward.9} parent=1 // pred_check
      _
    $region55: #{bottleneck_forward.9} parent=1 // pred_check_branch
      %379 = sbr.rel (0) target = $region57
    $region56: #{bottleneck_forward.9} parent=1 // pred_region
      %380 = dma.done [#allocation4], 1024
    $region57: #{bottleneck_forward.9} parent=1 // pred_fallthru
      _
    %381 = vsyncpa [#allocation3], 1
    %382 = vsyncpa [#allocation6], 1
    %383 = vsyncpa [#allocation9], 1
    %384 = vsyncpa [#allocation12], 1
    %385 = vsyncpa [#allocation4], 1

</llo_original>
